<compile_context>
chip_gen: v7x
topology: tpu7x:2x2x1
jax: 0.10.0
libtpu: 0.0.40
codegen_flags: <defaults>
</compile_context>

<pallas_src>
import functools

import jax
import jax.numpy as jnp
from jax.experimental import pallas as pl
from jax.experimental.pallas import tpu as pltpu

_BN_EPS = 1e-5
_VMEM_LIMIT = 48 * 1024 * 1024  # conservative: fits v7x (64 MiB) and v5e/v6e


def _conv_stats_kernel(x_ref, w_ref, y_ref, stats_ref, *, K, stride, OH, OW):
    """One padded image -> conv output + per-channel partial BN statistics.

    x_ref:     (Hp, Wp, C_in)     padded NHWC image (f32)
    w_ref:     (K*K, C_in, C_out) conv weight, tap-major (bf16 MXU operand)
    y_ref:     (OH*OW, C_out)     conv output rows for this image (f32)
    stats_ref: (2, C_out)         [sum, sum_of_squares] over this image's rows
    """
    C_in = x_ref.shape[-1]
    C_out = w_ref.shape[-1]

    acc = jnp.zeros((OH * OW, C_out), dtype=jnp.float32)
    # K*K taps: small, static -> fully unrolled shifted-slice matmuls.
    for ki in range(K):
        for kj in range(K):
            if stride == 1:
                patch = x_ref[ki:ki + OH, kj:kj + OW, :]
            else:
                patch = x_ref[pl.ds(ki, OH, stride=stride),
                              pl.ds(kj, OW, stride=stride), :]
            # collapse (OH, OW, C_in) -> (OH*OW, C_in); bf16 operands, f32 acc.
            patch2d = patch.reshape(OH * OW, C_in).astype(jnp.bfloat16)
            acc = acc + jnp.dot(patch2d, w_ref[ki * K + kj],
                                preferred_element_type=jnp.float32)

    y_ref[...] = acc
    ssum = jnp.sum(acc, axis=0, keepdims=True)
    ssq = jnp.sum(acc * acc, axis=0, keepdims=True)
    stats_ref[...] = jnp.concatenate([ssum, ssq], axis=0)


def _bn_relu_kernel(y_ref, scale_ref, shift_ref, o_ref):
    """Fused y*scale + shift + ReLU on a lane-dense (rows, OW*C_out) tile."""
    o_ref[...] = jnp.maximum(
        y_ref[...] * scale_ref[...] + shift_ref[...], 0.0
    ).astype(o_ref.dtype)


def _pick_row_tile(rows, target=512):
    """Largest multiple-of-8 divisor of `rows` that is <= target (else rows)."""
    if rows <= target:
        return rows
    t = (target // 8) * 8
    while t >= 8:
        if rows % t == 0:
            return t
        t -= 8
    return rows


@functools.partial(jax.jit, static_argnames=("kernel_size", "stride", "padding"))
def conv_block_forward(x, weight, bias, gamma, beta, *, kernel_size, stride, padding):
    """x: (N, C_in, H, W) NCHW; weight: (C_out, C_in, K, K) (PyTorch layouts)."""
    del bias  # exactly cancelled by training-mode BN mean subtraction
    N, C_in, H, W = x.shape
    C_out = weight.shape[0]
    K = kernel_size
    OH = (H + 2 * padding - K) // stride + 1
    OW = (W + 2 * padding - K) // stride + 1
    Hp, Wp = H + 2 * padding, W + 2 * padding
    M = N * OH * OW

    # Layout glue (transpose is fused by XLA into the pad): NCHW -> padded NHWC.
    x_nhwc = jnp.transpose(x, (0, 2, 3, 1)).astype(jnp.float32)
    x_pad = jnp.pad(x_nhwc, ((0, 0), (padding, padding), (padding, padding), (0, 0)))

    # Conv weight (C_out, C_in, K, K) -> (K*K, C_in, C_out), bf16 MXU operand.
    w = jnp.transpose(weight, (2, 3, 1, 0)).reshape(K * K, C_in, C_out)
    w = w.astype(jnp.bfloat16)

    # ---- Pass 1: convolution + per-image partial BN statistics --------------
    y2d, part_stats = pl.pallas_call(
        functools.partial(_conv_stats_kernel, K=K, stride=stride, OH=OH, OW=OW),
        out_shape=(
            jax.ShapeDtypeStruct((M, C_out), jnp.float32),     # conv output rows
            jax.ShapeDtypeStruct((N, 2, C_out), jnp.float32),  # per-image stats
        ),
        grid_spec=pltpu.PrefetchScalarGridSpec(
            num_scalar_prefetch=0,
            grid=(N,),
            in_specs=[
                pl.BlockSpec((None, Hp, Wp, C_in), lambda n: (n, 0, 0, 0)),
                pl.BlockSpec((K * K, C_in, C_out), lambda n: (0, 0, 0)),
            ],
            out_specs=[
                pl.BlockSpec((OH * OW, C_out), lambda n: (n, 0)),
                pl.BlockSpec((None, 2, C_out), lambda n: (n, 0, 0)),
            ],
        ),
        compiler_params=pltpu.CompilerParams(
            dimension_semantics=("parallel",),
            vmem_limit_bytes=_VMEM_LIMIT,
        ),
    )(x_pad, w)

    # ---- Tiny cross-image reduction + BN affine folding (O(C) glue) ---------
    stats = jnp.sum(part_stats, axis=0)                       # (2, C_out)
    inv_M = 1.0 / M
    mean = stats[0] * inv_M
    var = jnp.maximum(stats[1] * inv_M - mean * mean, 0.0)    # biased variance
    scale = gamma * jax.lax.rsqrt(var + _BN_EPS)
    shift = beta - scale * mean
    # Lane-dense per-channel broadcast so pass 2 is a pure fused FMA + ReLU.
    scale_w = jnp.tile(scale.reshape(1, C_out), (1, OW))      # (1, OW*C_out)
    shift_w = jnp.tile(shift.reshape(1, C_out), (1, OW))

    # ---- Pass 2: normalize + ReLU over a lane-dense layout ------------------
    rows = N * OH
    lanes = OW * C_out
    y_wide = y2d.reshape(rows, lanes)                         # free HBM reshape
    tile_rows = _pick_row_tile(rows)

    out_wide = pl.pallas_call(
        _bn_relu_kernel,
        out_shape=jax.ShapeDtypeStruct((rows, lanes), x.dtype),
        grid_spec=pltpu.PrefetchScalarGridSpec(
            num_scalar_prefetch=0,
            grid=(rows // tile_rows,),
            in_specs=[
                pl.BlockSpec((tile_rows, lanes), lambda i: (i, 0)),
                pl.BlockSpec((1, lanes), lambda i: (0, 0)),
                pl.BlockSpec((1, lanes), lambda i: (0, 0)),
            ],
            out_specs=pl.BlockSpec((tile_rows, lanes), lambda i: (i, 0)),
        ),
        compiler_params=pltpu.CompilerParams(
            dimension_semantics=("parallel",),
            vmem_limit_bytes=_VMEM_LIMIT,
        ),
    )(y_wide, scale_w, shift_w)

    # Back to NCHW for the PyTorch-style API.
    return jnp.transpose(out_wide.reshape(N, OH, OW, C_out), (0, 3, 1, 2))


def _reference(x, weight, bias, gamma, beta, *, stride, padding):
    # Conv operands cast to bf16 (f32 accumulation) to mirror the kernel's
    # intentional MXU dtype choice; all BN math stays in f32.
    y = jax.lax.conv_general_dilated(
        x.astype(jnp.bfloat16), weight.astype(jnp.bfloat16),
        window_strides=(stride, stride),
        padding=[(padding, padding), (padding, padding)],
        dimension_numbers=("NCHW", "OIHW", "NCHW"),
        preferred_element_type=jnp.float32,
    ) + bias.reshape(1, -1, 1, 1)
    mean = jnp.mean(y, axis=(0, 2, 3), keepdims=True)
    var = jnp.mean((y - mean) ** 2, axis=(0, 2, 3), keepdims=True)
    y_hat = (y - mean) * jax.lax.rsqrt(var + _BN_EPS)
    return jnp.maximum(
        gamma.reshape(1, -1, 1, 1) * y_hat + beta.reshape(1, -1, 1, 1), 0.0)


if __name__ == "__main__":
    # ConvBlock(in_channels=4, out_channels=8, kernel_size=3, stride=1, padding=1)
    N, C_in, H, W = 2, 4, 16, 16
    C_out, K, stride, padding = 8, 3, 1, 1

    key = jax.random.PRNGKey(0)
    k_x, k_w, k_b, k_g, k_be = jax.random.split(key, 5)

    x = jax.random.normal(k_x, (N, C_in, H, W), dtype=jnp.float32)
    # deterministic synthetic parameters (not a checkpoint)
    weight = jax.random.normal(k_w, (C_out, C_in, K, K), dtype=jnp.float32) * 0.1
    bias = jax.random.normal(k_b, (C_out,), dtype=jnp.float32) * 0.1
    gamma = jnp.ones((C_out,), dtype=jnp.float32) + 0.1 * jax.random.normal(k_g, (C_out,))
    beta = 0.1 * jax.random.normal(k_be, (C_out,), dtype=jnp.float32)

    out = conv_block_forward(
        x, weight, bias, gamma, beta,
        kernel_size=K, stride=stride, padding=padding,
    )
    out = jax.block_until_ready(out)

    ref = _reference(x, weight, bias, gamma, beta, stride=stride, padding=padding)
    assert out.shape == (N, C_out, H, W)
    assert jnp.allclose(out, ref, atol=2e-3, rtol=2e-3), (
        "mismatch vs reference: max |diff| = "
        f"{jnp.max(jnp.abs(out - ref))}")

    print("KERNEL_OK")
</pallas_src>

<mosaic_0001>
module attributes {stable_mosaic.version = 11 : i64} {
  func.func @_conv_stats_kernel(%arg0: i32, %arg1: memref<1x18x18x4xf32, #tpu.memory_space<vmem>>, %arg2: memref<9x4x8xbf16, #tpu.memory_space<vmem>>, %arg3: memref<256x8xf32, #tpu.memory_space<vmem>>, %arg4: memref<1x2x8xf32, #tpu.memory_space<vmem>>) attributes {dimension_semantics = [#tpu.dimension_semantics<parallel>], iteration_bounds = array<i64: 2>, scalar_prefetch = 0 : i64, scratch_operands = 0 : i64, tpu.core_type = #tpu.core_type<tc>, window_params = [{transform_indices = @transform_0, window_bounds = array<i64: 1, 18, 18, 4>}, {pipeline_mode = #tpu.pipeline_mode<synchronous>, transform_indices = @transform_1, window_bounds = array<i64: 9, 4, 8>}, {transform_indices = @transform_2, window_bounds = array<i64: 256, 8>}, {transform_indices = @transform_3, window_bounds = array<i64: 1, 2, 8>}]} {
    %cst = arith.constant 0.000000e+00 : f32
    %0 = vector.broadcast %cst : f32 to vector<256x8xf32>
    %c0 = arith.constant 0 : index
    %c0_0 = arith.constant 0 : index
    %c0_1 = arith.constant 0 : index
    %c0_2 = arith.constant 0 : index
    %1 = vector.load %arg1[%c0, %c0_0, %c0_1, %c0_2] : memref<1x18x18x4xf32, #tpu.memory_space<vmem>>, vector<1x16x16x4xf32>
    %2 = vector.shape_cast %1 : vector<1x16x16x4xf32> to vector<16x16x4xf32>
    %3 = vector.shape_cast %2 : vector<16x16x4xf32> to vector<256x4xf32>
    %4 = arith.truncf %3 : vector<256x4xf32> to vector<256x4xbf16>
    %c0_3 = arith.constant 0 : index
    %c0_4 = arith.constant 0 : index
    %c0_5 = arith.constant 0 : index
    %5 = vector.load %arg2[%c0_3, %c0_4, %c0_5] : memref<9x4x8xbf16, #tpu.memory_space<vmem>>, vector<1x4x8xbf16>
    %6 = vector.shape_cast %5 : vector<1x4x8xbf16> to vector<4x8xbf16>
    %cst_6 = arith.constant dense<0.000000e+00> : vector<256x8xf32>
    %7 = tpu.matmul %4, %6, %cst_6 {dimension_numbers = #tpu.dot_dimension_numbers<[1], [0], [0], [1], [0, 0, 1, 1], [], []>} : vector<256x4xbf16>, vector<4x8xbf16>, vector<256x8xf32> -> vector<256x8xf32>
    %8 = arith.addf %0, %7 : vector<256x8xf32>
    %c0_7 = arith.constant 0 : index
    %c0_8 = arith.constant 0 : index
    %c1 = arith.constant 1 : index
    %c0_9 = arith.constant 0 : index
    %9 = vector.load %arg1[%c0_7, %c0_8, %c1, %c0_9] : memref<1x18x18x4xf32, #tpu.memory_space<vmem>>, vector<1x16x16x4xf32>
    %10 = vector.shape_cast %9 : vector<1x16x16x4xf32> to vector<16x16x4xf32>
    %11 = vector.shape_cast %10 : vector<16x16x4xf32> to vector<256x4xf32>
    %12 = arith.truncf %11 : vector<256x4xf32> to vector<256x4xbf16>
    %c1_10 = arith.constant 1 : index
    %c0_11 = arith.constant 0 : index
    %c0_12 = arith.constant 0 : index
    %13 = vector.load %arg2[%c1_10, %c0_11, %c0_12] : memref<9x4x8xbf16, #tpu.memory_space<vmem>>, vector<1x4x8xbf16>
    %14 = vector.shape_cast %13 : vector<1x4x8xbf16> to vector<4x8xbf16>
    %cst_13 = arith.constant dense<0.000000e+00> : vector<256x8xf32>
    %15 = tpu.matmul %12, %14, %cst_13 {dimension_numbers = #tpu.dot_dimension_numbers<[1], [0], [0], [1], [0, 0, 1, 1], [], []>} : vector<256x4xbf16>, vector<4x8xbf16>, vector<256x8xf32> -> vector<256x8xf32>
    %16 = arith.addf %8, %15 : vector<256x8xf32>
    %c0_14 = arith.constant 0 : index
    %c0_15 = arith.constant 0 : index
    %c2 = arith.constant 2 : index
    %c0_16 = arith.constant 0 : index
    %17 = vector.load %arg1[%c0_14, %c0_15, %c2, %c0_16] : memref<1x18x18x4xf32, #tpu.memory_space<vmem>>, vector<1x16x16x4xf32>
    %18 = vector.shape_cast %17 : vector<1x16x16x4xf32> to vector<16x16x4xf32>
    %19 = vector.shape_cast %18 : vector<16x16x4xf32> to vector<256x4xf32>
    %20 = arith.truncf %19 : vector<256x4xf32> to vector<256x4xbf16>
    %c2_17 = arith.constant 2 : index
    %c0_18 = arith.constant 0 : index
    %c0_19 = arith.constant 0 : index
    %21 = vector.load %arg2[%c2_17, %c0_18, %c0_19] : memref<9x4x8xbf16, #tpu.memory_space<vmem>>, vector<1x4x8xbf16>
    %22 = vector.shape_cast %21 : vector<1x4x8xbf16> to vector<4x8xbf16>
    %cst_20 = arith.constant dense<0.000000e+00> : vector<256x8xf32>
    %23 = tpu.matmul %20, %22, %cst_20 {dimension_numbers = #tpu.dot_dimension_numbers<[1], [0], [0], [1], [0, 0, 1, 1], [], []>} : vector<256x4xbf16>, vector<4x8xbf16>, vector<256x8xf32> -> vector<256x8xf32>
    %24 = arith.addf %16, %23 : vector<256x8xf32>
    %c0_21 = arith.constant 0 : index
    %c1_22 = arith.constant 1 : index
    %c0_23 = arith.constant 0 : index
    %c0_24 = arith.constant 0 : index
    %25 = vector.load %arg1[%c0_21, %c1_22, %c0_23, %c0_24] : memref<1x18x18x4xf32, #tpu.memory_space<vmem>>, vector<1x16x16x4xf32>
    %26 = vector.shape_cast %25 : vector<1x16x16x4xf32> to vector<16x16x4xf32>
    %27 = vector.shape_cast %26 : vector<16x16x4xf32> to vector<256x4xf32>
    %28 = arith.truncf %27 : vector<256x4xf32> to vector<256x4xbf16>
    %c3 = arith.constant 3 : index
    %c0_25 = arith.constant 0 : index
    %c0_26 = arith.constant 0 : index
    %29 = vector.load %arg2[%c3, %c0_25, %c0_26] : memref<9x4x8xbf16, #tpu.memory_space<vmem>>, vector<1x4x8xbf16>
    %30 = vector.shape_cast %29 : vector<1x4x8xbf16> to vector<4x8xbf16>
    %cst_27 = arith.constant dense<0.000000e+00> : vector<256x8xf32>
    %31 = tpu.matmul %28, %30, %cst_27 {dimension_numbers = #tpu.dot_dimension_numbers<[1], [0], [0], [1], [0, 0, 1, 1], [], []>} : vector<256x4xbf16>, vector<4x8xbf16>, vector<256x8xf32> -> vector<256x8xf32>
    %32 = arith.addf %24, %31 : vector<256x8xf32>
    %c0_28 = arith.constant 0 : index
    %c1_29 = arith.constant 1 : index
    %c1_30 = arith.constant 1 : index
    %c0_31 = arith.constant 0 : index
    %33 = vector.load %arg1[%c0_28, %c1_29, %c1_30, %c0_31] : memref<1x18x18x4xf32, #tpu.memory_space<vmem>>, vector<1x16x16x4xf32>
    %34 = vector.shape_cast %33 : vector<1x16x16x4xf32> to vector<16x16x4xf32>
    %35 = vector.shape_cast %34 : vector<16x16x4xf32> to vector<256x4xf32>
    %36 = arith.truncf %35 : vector<256x4xf32> to vector<256x4xbf16>
    %c4 = arith.constant 4 : index
    %c0_32 = arith.constant 0 : index
    %c0_33 = arith.constant 0 : index
    %37 = vector.load %arg2[%c4, %c0_32, %c0_33] : memref<9x4x8xbf16, #tpu.memory_space<vmem>>, vector<1x4x8xbf16>
    %38 = vector.shape_cast %37 : vector<1x4x8xbf16> to vector<4x8xbf16>
    %cst_34 = arith.constant dense<0.000000e+00> : vector<256x8xf32>
    %39 = tpu.matmul %36, %38, %cst_34 {dimension_numbers = #tpu.dot_dimension_numbers<[1], [0], [0], [1], [0, 0, 1, 1], [], []>} : vector<256x4xbf16>, vector<4x8xbf16>, vector<256x8xf32> -> vector<256x8xf32>
    %40 = arith.addf %32, %39 : vector<256x8xf32>
    %c0_35 = arith.constant 0 : index
    %c1_36 = arith.constant 1 : index
    %c2_37 = arith.constant 2 : index
    %c0_38 = arith.constant 0 : index
    %41 = vector.load %arg1[%c0_35, %c1_36, %c2_37, %c0_38] : memref<1x18x18x4xf32, #tpu.memory_space<vmem>>, vector<1x16x16x4xf32>
    %42 = vector.shape_cast %41 : vector<1x16x16x4xf32> to vector<16x16x4xf32>
    %43 = vector.shape_cast %42 : vector<16x16x4xf32> to vector<256x4xf32>
    %44 = arith.truncf %43 : vector<256x4xf32> to vector<256x4xbf16>
    %c5 = arith.constant 5 : index
    %c0_39 = arith.constant 0 : index
    %c0_40 = arith.constant 0 : index
    %45 = vector.load %arg2[%c5, %c0_39, %c0_40] : memref<9x4x8xbf16, #tpu.memory_space<vmem>>, vector<1x4x8xbf16>
    %46 = vector.shape_cast %45 : vector<1x4x8xbf16> to vector<4x8xbf16>
    %cst_41 = arith.constant dense<0.000000e+00> : vector<256x8xf32>
    %47 = tpu.matmul %44, %46, %cst_41 {dimension_numbers = #tpu.dot_dimension_numbers<[1], [0], [0], [1], [0, 0, 1, 1], [], []>} : vector<256x4xbf16>, vector<4x8xbf16>, vector<256x8xf32> -> vector<256x8xf32>
    %48 = arith.addf %40, %47 : vector<256x8xf32>
    %c0_42 = arith.constant 0 : index
    %c2_43 = arith.constant 2 : index
    %c0_44 = arith.constant 0 : index
    %c0_45 = arith.constant 0 : index
    %49 = vector.load %arg1[%c0_42, %c2_43, %c0_44, %c0_45] : memref<1x18x18x4xf32, #tpu.memory_space<vmem>>, vector<1x16x16x4xf32>
    %50 = vector.shape_cast %49 : vector<1x16x16x4xf32> to vector<16x16x4xf32>
    %51 = vector.shape_cast %50 : vector<16x16x4xf32> to vector<256x4xf32>
    %52 = arith.truncf %51 : vector<256x4xf32> to vector<256x4xbf16>
    %c6 = arith.constant 6 : index
    %c0_46 = arith.constant 0 : index
    %c0_47 = arith.constant 0 : index
    %53 = vector.load %arg2[%c6, %c0_46, %c0_47] : memref<9x4x8xbf16, #tpu.memory_space<vmem>>, vector<1x4x8xbf16>
    %54 = vector.shape_cast %53 : vector<1x4x8xbf16> to vector<4x8xbf16>
    %cst_48 = arith.constant dense<0.000000e+00> : vector<256x8xf32>
    %55 = tpu.matmul %52, %54, %cst_48 {dimension_numbers = #tpu.dot_dimension_numbers<[1], [0], [0], [1], [0, 0, 1, 1], [], []>} : vector<256x4xbf16>, vector<4x8xbf16>, vector<256x8xf32> -> vector<256x8xf32>
    %56 = arith.addf %48, %55 : vector<256x8xf32>
    %c0_49 = arith.constant 0 : index
    %c2_50 = arith.constant 2 : index
    %c1_51 = arith.constant 1 : index
    %c0_52 = arith.constant 0 : index
    %57 = vector.load %arg1[%c0_49, %c2_50, %c1_51, %c0_52] : memref<1x18x18x4xf32, #tpu.memory_space<vmem>>, vector<1x16x16x4xf32>
    %58 = vector.shape_cast %57 : vector<1x16x16x4xf32> to vector<16x16x4xf32>
    %59 = vector.shape_cast %58 : vector<16x16x4xf32> to vector<256x4xf32>
    %60 = arith.truncf %59 : vector<256x4xf32> to vector<256x4xbf16>
    %c7 = arith.constant 7 : index
    %c0_53 = arith.constant 0 : index
    %c0_54 = arith.constant 0 : index
    %61 = vector.load %arg2[%c7, %c0_53, %c0_54] : memref<9x4x8xbf16, #tpu.memory_space<vmem>>, vector<1x4x8xbf16>
    %62 = vector.shape_cast %61 : vector<1x4x8xbf16> to vector<4x8xbf16>
    %cst_55 = arith.constant dense<0.000000e+00> : vector<256x8xf32>
    %63 = tpu.matmul %60, %62, %cst_55 {dimension_numbers = #tpu.dot_dimension_numbers<[1], [0], [0], [1], [0, 0, 1, 1], [], []>} : vector<256x4xbf16>, vector<4x8xbf16>, vector<256x8xf32> -> vector<256x8xf32>
    %64 = arith.addf %56, %63 : vector<256x8xf32>
    %c0_56 = arith.constant 0 : index
    %c2_57 = arith.constant 2 : index
    %c2_58 = arith.constant 2 : index
    %c0_59 = arith.constant 0 : index
    %65 = vector.load %arg1[%c0_56, %c2_57, %c2_58, %c0_59] : memref<1x18x18x4xf32, #tpu.memory_space<vmem>>, vector<1x16x16x4xf32>
    %66 = vector.shape_cast %65 : vector<1x16x16x4xf32> to vector<16x16x4xf32>
    %67 = vector.shape_cast %66 : vector<16x16x4xf32> to vector<256x4xf32>
    %68 = arith.truncf %67 : vector<256x4xf32> to vector<256x4xbf16>
    %c8 = arith.constant 8 : index
    %c0_60 = arith.constant 0 : index
    %c0_61 = arith.constant 0 : index
    %69 = vector.load %arg2[%c8, %c0_60, %c0_61] : memref<9x4x8xbf16, #tpu.memory_space<vmem>>, vector<1x4x8xbf16>
    %70 = vector.shape_cast %69 : vector<1x4x8xbf16> to vector<4x8xbf16>
    %cst_62 = arith.constant dense<0.000000e+00> : vector<256x8xf32>
    %71 = tpu.matmul %68, %70, %cst_62 {dimension_numbers = #tpu.dot_dimension_numbers<[1], [0], [0], [1], [0, 0, 1, 1], [], []>} : vector<256x4xbf16>, vector<4x8xbf16>, vector<256x8xf32> -> vector<256x8xf32>
    %72 = arith.addf %64, %71 : vector<256x8xf32>
    %c0_63 = arith.constant 0 : index
    %c0_64 = arith.constant 0 : index
    %73 = vector.load %arg3[%c0_63, %c0_64] : memref<256x8xf32, #tpu.memory_space<vmem>>, vector<256x8xf32>
    tpu.vector_store %arg3[%c0_63, %c0_64], %72 {strides = array<i32>} : memref<256x8xf32, #tpu.memory_space<vmem>>, vector<256x8xf32>,
    %cst_65 = arith.constant dense<0.000000e+00> : vector<8xf32>
    %74 = vector.multi_reduction <add>, %72, %cst_65 [0] : vector<256x8xf32> to vector<8xf32>
    %75 = vector.shape_cast %74 : vector<8xf32> to vector<1x8xf32>
    %76 = arith.mulf %72, %72 : vector<256x8xf32>
    %cst_66 = arith.constant dense<0.000000e+00> : vector<8xf32>
    %77 = vector.multi_reduction <add>, %76, %cst_66 [0] : vector<256x8xf32> to vector<8xf32>
    %78 = vector.shape_cast %77 : vector<8xf32> to vector<1x8xf32>
    %79 = tpu.concatenate %75, %78 in 0 : vector<1x8xf32>, vector<1x8xf32> -> vector<2x8xf32>
    %c0_67 = arith.constant 0 : index
    %c0_68 = arith.constant 0 : index
    %c0_69 = arith.constant 0 : index
    %80 = vector.load %arg4[%c0_67, %c0_68, %c0_69] : memref<1x2x8xf32, #tpu.memory_space<vmem>>, vector<1x2x8xf32>
    %81 = vector.shape_cast %80 : vector<1x2x8xf32> to vector<2x8xf32>
    %82 = vector.shape_cast %79 : vector<2x8xf32> to vector<1x2x8xf32>
    tpu.vector_store %arg4[%c0_67, %c0_68, %c0_69], %82 {strides = array<i32>} : memref<1x2x8xf32, #tpu.memory_space<vmem>>, vector<1x2x8xf32>,
    return
  }
  func.func @transform_0(%arg0: i32) -> (i32, i32, i32, i32) {
    %c0_i32 = arith.constant 0 : i32
    %c0_i32_0 = arith.constant 0 : i32
    %c0_i32_1 = arith.constant 0 : i32
    %c0_i32_2 = arith.constant 0 : i32
    return %arg0, %c0_i32, %c0_i32_0, %c0_i32_1 : i32, i32, i32, i32
  }
  func.func @transform_1(%arg0: i32) -> (i32, i32, i32) {
    %c0_i32 = arith.constant 0 : i32
    %c0_i32_0 = arith.constant 0 : i32
    %c0_i32_1 = arith.constant 0 : i32
    %c0_i32_2 = arith.constant 0 : i32
    return %c0_i32, %c0_i32_0, %c0_i32_1 : i32, i32, i32
  }
  func.func @transform_2(%arg0: i32) -> (i32, i32) {
    %c0_i32 = arith.constant 0 : i32
    %c0_i32_0 = arith.constant 0 : i32
    return %arg0, %c0_i32 : i32, i32
  }
  func.func @transform_3(%arg0: i32) -> (i32, i32, i32) {
    %c0_i32 = arith.constant 0 : i32
    %c0_i32_0 = arith.constant 0 : i32
    %c0_i32_1 = arith.constant 0 : i32
    return %arg0, %c0_i32, %c0_i32_0 : i32, i32, i32
  }
}

module attributes {stable_mosaic.version = 11 : i64} {
  func.func @_bn_relu_kernel(%arg0: i32, %arg1: memref<32x128xf32, #tpu.memory_space<vmem>>, %arg2: memref<1x128xf32, #tpu.memory_space<vmem>>, %arg3: memref<1x128xf32, #tpu.memory_space<vmem>>, %arg4: memref<32x128xf32, #tpu.memory_space<vmem>>) attributes {dimension_semantics = [#tpu.dimension_semantics<parallel>], iteration_bounds = array<i64: 1>, scalar_prefetch = 0 : i64, scratch_operands = 0 : i64, tpu.core_type = #tpu.core_type<tc>, window_params = [{transform_indices = @transform_0, window_bounds = array<i64: 32, 128>}, {pipeline_mode = #tpu.pipeline_mode<synchronous>, transform_indices = @transform_1, window_bounds = array<i64: 1, 128>}, {pipeline_mode = #tpu.pipeline_mode<synchronous>, transform_indices = @transform_2, window_bounds = array<i64: 1, 128>}, {transform_indices = @transform_3, window_bounds = array<i64: 32, 128>}]} {
    %c0 = arith.constant 0 : index
    %c0_0 = arith.constant 0 : index
    %0 = vector.load %arg1[%c0, %c0_0] : memref<32x128xf32, #tpu.memory_space<vmem>>, vector<32x128xf32>
    %c0_1 = arith.constant 0 : index
    %c0_2 = arith.constant 0 : index
    %1 = vector.load %arg2[%c0_1, %c0_2] : memref<1x128xf32, #tpu.memory_space<vmem>>, vector<1x128xf32>
    %2 = vector.broadcast %1 : vector<1x128xf32> to vector<32x128xf32>
    %3 = arith.mulf %0, %2 : vector<32x128xf32>
    %c0_3 = arith.constant 0 : index
    %c0_4 = arith.constant 0 : index
    %4 = vector.load %arg3[%c0_3, %c0_4] : memref<1x128xf32, #tpu.memory_space<vmem>>, vector<1x128xf32>
    %5 = vector.broadcast %4 : vector<1x128xf32> to vector<32x128xf32>
    %6 = arith.addf %3, %5 : vector<32x128xf32>
    %cst = arith.constant 0.000000e+00 : f32
    %7 = vector.broadcast %cst : f32 to vector<32x128xf32>
    %8 = arith.maximumf %6, %7 : vector<32x128xf32>
    %c0_5 = arith.constant 0 : index
    %c0_6 = arith.constant 0 : index
    %9 = vector.load %arg4[%c0_5, %c0_6] : memref<32x128xf32, #tpu.memory_space<vmem>>, vector<32x128xf32>
    tpu.vector_store %arg4[%c0_5, %c0_6], %8 {strides = array<i32>} : memref<32x128xf32, #tpu.memory_space<vmem>>, vector<32x128xf32>,
    return
  }
  func.func @transform_0(%arg0: i32) -> (i32, i32) {
    %c0_i32 = arith.constant 0 : i32
    %c0_i32_0 = arith.constant 0 : i32
    return %arg0, %c0_i32 : i32, i32
  }
  func.func @transform_1(%arg0: i32) -> (i32, i32) {
    %c0_i32 = arith.constant 0 : i32
    %c0_i32_0 = arith.constant 0 : i32
    %c0_i32_1 = arith.constant 0 : i32
    return %c0_i32, %c0_i32_0 : i32, i32
  }
  func.func @transform_2(%arg0: i32) -> (i32, i32) {
    %c0_i32 = arith.constant 0 : i32
    %c0_i32_0 = arith.constant 0 : i32
    %c0_i32_1 = arith.constant 0 : i32
    return %c0_i32, %c0_i32_0 : i32, i32
  }
  func.func @transform_3(%arg0: i32) -> (i32, i32) {
    %c0_i32 = arith.constant 0 : i32
    %c0_i32_0 = arith.constant 0 : i32
    return %arg0, %c0_i32 : i32, i32
  }
}

</mosaic_0001>

<llo_original>
// kernel: conv_block_forward.3
$region0: #{conv_block_forward.3}
  #allocation0 [shape = 'u32[]', space=smem, size = 0x4, offset = 0x4, fixed_abs, tag = 'smem constant byte address 0x4 - core index']
  #allocation1 [shape = 'u32[144,128]{1,0:T(1,128)}', space=vmem, size = 0x12000, scoped, tag = 'internal scratch']
  %s0 = inlined_call_operand.vmem [shape: f32[32,128], index: 0, kind: input, shape index: {}]
  %s1 = inlined_call_operand.vmem [shape: f32[1,128], index: 1, kind: input, shape index: {}]
  %s2 = inlined_call_operand.vmem [shape: f32[1,128], index: 2, kind: input, shape index: {}]
  %s3 = inlined_call_operand.vmem [shape: f32[32,128], index: 3, kind: output, shape index: {}]
  %s4 = sld [smem:[#allocation0]]
  $region22: #{conv_block_forward.3} parent=0
    _
  %s6 = ssub.s32 1, %s4
  %s7 = scalar_select 0, %s6, %s4
  // Predicated region
  $region2: #{conv_block_forward.3} parent=0 // pred_check
    _
  $region3: #{conv_block_forward.3} parent=0 // pred_check_branch
    %9 = sbr.rel (0) target = $region5
  $region4: #{conv_block_forward.3} parent=0 // pred_region
    _
  $region5: #{conv_block_forward.3} parent=0 // pred_fallthru
    _
  // Predicated region
  $region6: #{conv_block_forward.3} parent=0 // pred_check
    _
  $region7: #{conv_block_forward.3} parent=0 // pred_check_branch
    %11 = sbr.rel (0) target = $region9
  $region8: #{conv_block_forward.3} parent=0 // pred_region
    _
  $region9: #{conv_block_forward.3} parent=0 // pred_fallthru
    _
  // Predicated region
  $region10: #{conv_block_forward.3} parent=0 // pred_check
    _
  $region11: #{conv_block_forward.3} parent=0 // pred_check_branch
    %13 = sbr.rel (0) target = $region13
  $region12: #{conv_block_forward.3} parent=0 // pred_region
    _
  $region13: #{conv_block_forward.3} parent=0 // pred_fallthru
    _
  %v14 = vld [vmem:[%s0] sm:$0xff]
  %v15 = vld [vmem:[%s0 + $0x8] sm:$0xff]
  %v16 = vld [vmem:[%s0 + $0x10] sm:$0xff]
  %v17 = vld [vmem:[%s0 + $0x18] sm:$0xff]
  %v18 = vld [vmem:[%s1] sm:$0x1]
  %v20 = vlaneseq
  %v21 = vshrl.u32 %v20, 7
  %v22 = vsub.s32 0, %v21
  %v23 = vrot.slane %v18, %v22
  %v25 = vmul.f32 %v14, %v23
  %v26 = vmul.f32 %v15, %v23
  %v27 = vmul.f32 %v16, %v23
  %v28 = vmul.f32 %v17, %v23
  %v29 = vld [vmem:[%s2] sm:$0x1]
  %v31 = vlaneseq
  %v32 = vshrl.u32 %v31, 7
  %v33 = vsub.s32 0, %v32
  %v34 = vrot.slane %v29, %v33
  %v36 = vadd.f32 %v25, %v34
  %v37 = vadd.f32 %v26, %v34
  %v38 = vadd.f32 %v27, %v34
  %v39 = vadd.f32 %v28, %v34
  %v40 = vmax.f32 %v36, 0.0
  %v41 = vmax.f32 %v37, 0.0
  %v42 = vmax.f32 %v38, 0.0
  %v43 = vmax.f32 %v39, 0.0
  %44 = vst [vmem:[%s3] sm:$0xff] %v40
  %45 = vst [vmem:[%s3 + $0x8] sm:$0xff] %v41
  %46 = vst [vmem:[%s3 + $0x10] sm:$0xff] %v42
  %47 = vst [vmem:[%s3 + $0x18] sm:$0xff] %v43
  // Predicated region
  $region14: #{conv_block_forward.3} parent=0 // pred_check
    _
  $region15: #{conv_block_forward.3} parent=0 // pred_check_branch
    %49 = sbr.rel (0) target = $region17
  $region16: #{conv_block_forward.3} parent=0 // pred_region
    _
  $region17: #{conv_block_forward.3} parent=0 // pred_fallthru
    _
  // Predicated region
  $region18: #{conv_block_forward.3} parent=0 // pred_check
    _
  $region19: #{conv_block_forward.3} parent=0 // pred_check_branch
    %51 = sbr.rel (0) target = $region21
  $region20: #{conv_block_forward.3} parent=0 // pred_region
    _
  $region21: #{conv_block_forward.3} parent=0 // pred_fallthru
    _

// kernel: conv_block_forward.2
$region0: #{conv_block_forward.2}
  #allocation0 [shape = 'u32[]', space=smem, size = 0x4, offset = 0x4, fixed_abs, tag = 'smem constant byte address 0x4 - core index']
  #allocation1 [shape = 'u32[144,128]{1,0:T(1,128)}', space=vmem, size = 0x12000, scoped, tag = 'internal scratch']
  %s0 = inlined_call_operand.vmem [shape: f32[2,18,18,4], index: 0, kind: input, shape index: {}]
  %s1 = inlined_call_operand.vmem [shape: bf16[9,4,8], index: 1, kind: input, shape index: {}]
  %s2 = inlined_call_operand.vmem [shape: f32[512,8], index: 2, kind: output, shape index: {0}]
  %s3 = inlined_call_operand.vmem [shape: f32[2,2,8], index: 3, kind: output, shape index: {1}]
  %4 = xla_tuple %s2, %s3
  %s5 = sld [smem:[#allocation0]]
  $region49: #{conv_block_forward.2} parent=0
    _
  %s7 = ssub.s32 1, %s5
  %s8 = scalar_select 0, %s7, %s5
  loop: start=0, step=1, limit=4
  $region2: #{conv_block_forward.2} parent=0 // loop_pre_header
    _
  $region3: #{conv_block_forward.2} parent=0 // loop_header
    %s10 = sphi 0, %s14
    %p11 = scmp.ge.s32.totalorder %s10, 4
    %s20 = sphi 0, %s22
    %s23 = sphi 0, %s20
    %s24 = sphi 0, %s23
    %s40 = sphi 0, %s24
    %s44 = sphi 0, %s44
    %s46 = sphi 0, %s44
    %s47 = sphi 0, %s46
    %s61 = sphi 0, %s47
    %s67 = sphi 0, %s69
    %s70 = sphi 0, %s67
    %s71 = sphi 0, %s70
    %s87 = sphi 0, %s71
    %s93 = sphi 0, %s95
    %s96 = sphi 0, %s93
    %s97 = sphi 0, %s96
    %s113 = sphi 0, %s97
  $region4: #{conv_block_forward.2} parent=0 // loop_header_branch
    %13 = sbr.rel (%p11) target = $region8
  $region5: #{conv_block_forward.2} parent=0 // loop_body
    %s15 = ssub.s32 %s10, 1
    %s16 = ssub.s32 %s10, 2
    %s17 = sadd.s32 %s10, 1
    %s18 = ssub.s32 %s10, %s17
    %p19 = scmp.eq.s32.totalorder %s18, 0
    %s21 = sadd.s32 %s20, 1
    %s22 = scalar_select %p19, %s20, %s21
    %p25 = pneg %p19
    %p26 = scmp.eq.s32.totalorder %s10, 1
    %p27 = por %p25, %p26
    %p28 = scmp.ne.s32.totalorder %s20, %s23
    %p29 = scmp.eq.s32.totalorder %s10, 0
    %p30 = por %p28, %p29
    %p31 = scmp.ne.s32.totalorder %s20, %s23
    %p32 = scmp.eq.s32.totalorder %s15, 1
    %p33 = por %p31, %p32
    %p34 = scmp.ne.s32.totalorder %s23, %s24
    %p35 = scmp.eq.s32.totalorder %s15, 0
    %p36 = por %p34, %p35
    %p37 = scmp.ne.s32.totalorder %s23, %s24
    %p38 = scmp.eq.s32.totalorder %s16, 1
    %p39 = por %p37, %p38
    %p41 = scmp.ne.s32.totalorder %s24, %s40
    %p42 = scmp.eq.s32.totalorder %s16, 0
    %p43 = por %p41, %p42
    %s45 = sadd.s32 %s44, 1
    %p48 = scmp.eq.s32.totalorder %s10, 1
    %p49 = scmp.ne.s32.totalorder %s44, %s46
    %p50 = scmp.eq.s32.totalorder %s10, 0
    %p51 = por %p49, %p50
    %p52 = scmp.ne.s32.totalorder %s44, %s46
    %p53 = scmp.eq.s32.totalorder %s15, 1
    %p54 = por %p52, %p53
    %p55 = scmp.ne.s32.totalorder %s46, %s47
    %p56 = scmp.eq.s32.totalorder %s15, 0
    %p57 = por %p55, %p56
    %p58 = scmp.ne.s32.totalorder %s46, %s47
    %p59 = scmp.eq.s32.totalorder %s16, 1
    %p60 = por %p58, %p59
    %p62 = scmp.ne.s32.totalorder %s47, %s61
    %p63 = scmp.eq.s32.totalorder %s16, 0
    %p64 = por %p62, %p63
    %s65 = ssub.s32 %s10, %s17
    %p66 = scmp.eq.s32.totalorder %s65, 0
    %s68 = sadd.s32 %s67, 1
    %s69 = scalar_select %p66, %s67, %s68
    %p72 = pneg %p66
    %p73 = scmp.eq.s32.totalorder %s10, 1
    %p74 = por %p72, %p73
    %p75 = scmp.ne.s32.totalorder %s67, %s70
    %p76 = scmp.eq.s32.totalorder %s10, 0
    %p77 = por %p75, %p76
    %p78 = scmp.ne.s32.totalorder %s67, %s70
    %p79 = scmp.eq.s32.totalorder %s15, 1
    %p80 = por %p78, %p79
    %p81 = scmp.ne.s32.totalorder %s70, %s71
    %p82 = scmp.eq.s32.totalorder %s15, 0
    %p83 = por %p81, %p82
    %p84 = scmp.ne.s32.totalorder %s70, %s71
    %p85 = scmp.eq.s32.totalorder %s16, 1
    %p86 = por %p84, %p85
    %p88 = scmp.ne.s32.totalorder %s71, %s87
    %p89 = scmp.eq.s32.totalorder %s16, 0
    %p90 = por %p88, %p89
    %s91 = ssub.s32 %s10, %s17
    %p92 = scmp.eq.s32.totalorder %s91, 0
    %s94 = sadd.s32 %s93, 1
    %s95 = scalar_select %p92, %s93, %s94
    %p98 = pneg %p92
    %p99 = scmp.eq.s32.totalorder %s10, 1
    %p100 = por %p98, %p99
    %p101 = scmp.ne.s32.totalorder %s93, %s96
    %p102 = scmp.eq.s32.totalorder %s10, 0
    %p103 = por %p101, %p102
    %p104 = scmp.ne.s32.totalorder %s93, %s96
    %p105 = scmp.eq.s32.totalorder %s15, 1
    %p106 = por %p104, %p105
    %p107 = scmp.ne.s32.totalorder %s96, %s97
    %p108 = scmp.eq.s32.totalorder %s15, 0
    %p109 = por %p107, %p108
    %p110 = scmp.ne.s32.totalorder %s96, %s97
    %p111 = scmp.eq.s32.totalorder %s16, 1
    %p112 = por %p110, %p111
    %p114 = scmp.ne.s32.totalorder %s97, %s113
    %p115 = scmp.eq.s32.totalorder %s16, 0
    %p116 = por %p114, %p115
    %p117 = scmp.le.s32.totalorder 1, %s10
    %p118 = scmp.lt.s32.totalorder %s10, 3
    %p119 = pnand %p117, %p118
    %p120 = pneg %p119
    // Predicated region
    $region9: #{conv_block_forward.2} parent=5 // pred_check
      _
    $region10: #{conv_block_forward.2} parent=5 // pred_check_branch
      %122 = sbr.rel (%p119) target = $region12
    $region11: #{conv_block_forward.2} parent=5 // pred_region
      %s123 = ssub.s32 %s10, 1
      // Predicated region
      $region13: #{conv_block_forward.2} parent=11 // pred_check
        %p124 = pneg %p57
      $region14: #{conv_block_forward.2} parent=11 // pred_check_branch
        %126 = sbr.rel (%p124) target = $region16
      $region15: #{conv_block_forward.2} parent=11 // pred_region
        _
      $region16: #{conv_block_forward.2} parent=11 // pred_fallthru
        _
    $region12: #{conv_block_forward.2} parent=5 // pred_fallthru
      _
    %p127 = scmp.lt.s32.totalorder %s10, 2
    // Predicated region
    $region17: #{conv_block_forward.2} parent=5 // pred_check
      %p128 = pneg %p127
    $region18: #{conv_block_forward.2} parent=5 // pred_check_branch
      %130 = sbr.rel (%p128) target = $region20
    $region19: #{conv_block_forward.2} parent=5 // pred_region
      // Predicated region
      $region21: #{conv_block_forward.2} parent=19 // pred_check
        %p131 = pneg %p30
      $region22: #{conv_block_forward.2} parent=19 // pred_check_branch
        %133 = sbr.rel (%p131) target = $region24
      $region23: #{conv_block_forward.2} parent=19 // pred_region
        %p134 = scmp.lt.s32.totalorder %s10, 1
        %s135 = scalar_select %p134, %s10, 1
        %s136 = smul.addr %s135, 54
        %s137 = smul.addr %s136, 8
        %s138 = scalar_lea.vmem %s0, %s137
      $region24: #{conv_block_forward.2} parent=19 // pred_fallthru
        _
    $region20: #{conv_block_forward.2} parent=5 // pred_fallthru
      _
    %p139 = scmp.le.s32.totalorder 1, %s10
    %p140 = scmp.lt.s32.totalorder %s10, 3
    %p141 = pnand %p139, %p140
    %p142 = pneg %p141
    // Predicated region
    $region25: #{conv_block_forward.2} parent=5 // pred_check
      _
    $region26: #{conv_block_forward.2} parent=5 // pred_check_branch
      %144 = sbr.rel (%p141) target = $region28
    $region27: #{conv_block_forward.2} parent=5 // pred_region
      %s145 = ssub.s32 %s10, 1
      %p146 = scmp.lt.s32.totalorder %s15, 1
      %s147 = scalar_select %p146, %s15, 1
      %s148 = smul.addr %s147, 54
      %s149 = smul.addr %s148, 8
      %s150 = scalar_lea.vmem %s0, %s149
      %p151 = pneg %p36
      %p152 = pneg %p33
      %p153 = pneg %p57
      %p154 = pneg %p54
      %p155 = pneg %p83
      %p156 = pneg %p80
      %s157 = smul.u32 32, %s15
      %p158 = scmp.lt.s32.totalorder %s157, 63
      %s159 = scalar_select %p158, %s157, 63
      %s160 = smul.addr %s159, 8
      %s161 = scalar_lea.vmem %s2, %s160
      %p162 = pneg %p109
      %p163 = pneg %p106
      %p164 = scmp.lt.s32.totalorder %s15, 1
      %s165 = scalar_select %p164, %s15, 1
      %s166 = smul.addr %s165, 2
      %s167 = scalar_lea.vmem %s3, %s166
      %p168 = scmp.lt.s32.totalorder %s15, 1
      %s169 = scalar_select %p168, %s15, 1
      %s170 = smul.addr %s169, 54
      %s171 = smul.addr %s170, 8
      %s172 = scalar_lea.vmem %s0, %s171
      %s173 = smul.u32 32, %s15
      %p174 = scmp.lt.s32.totalorder %s173, 63
      %s175 = scalar_select %p174, %s173, 63
      %s176 = smul.addr %s175, 8
      %s177 = scalar_lea.vmem %s2, %s176
      %s178 = smul.u32 32, %s15
      %p179 = scmp.lt.s32.totalorder %s15, 1
      %s180 = scalar_select %p179, %s15, 1
      %s181 = smul.addr %s180, 2
      %s182 = scalar_lea.vmem %s3, %s181
      %v184 = vld [vmem:[%s172] sm:$0xff]
      %v185 = vld [vmem:[%s172 + $0x8] sm:$0xff]
      %v186 = vld [vmem:[%s172 + $0x18] sm:$0xff]
      %v187 = vld [vmem:[%s172 + $0x20] sm:$0xff]
      %v188 = vld [vmem:[%s172 + $0x30] sm:$0xff]
      %v189 = vld [vmem:[%s172 + $0x38] sm:$0xff]
      %v190 = vld [vmem:[%s172 + $0x48] sm:$0xff]
      %v191 = vld [vmem:[%s172 + $0x50] sm:$0xff]
      %v192 = vld [vmem:[%s172 + $0x60] sm:$0xff]
      %v193 = vld [vmem:[%s172 + $0x68] sm:$0xff]
      %v194 = vld [vmem:[%s172 + $0x78] sm:$0xff]
      %v195 = vld [vmem:[%s172 + $0x80] sm:$0xff]
      %v196 = vld [vmem:[%s172 + $0x90] sm:$0xff]
      %v197 = vld [vmem:[%s172 + $0x98] sm:$0xff]
      %v198 = vld [vmem:[%s172 + $0xa8] sm:$0xff]
      %v199 = vld [vmem:[%s172 + $0xb0] sm:$0xff]
      %v200 = vld [vmem:[%s172 + $0xc0] sm:$0xff]
      %v201 = vld [vmem:[%s172 + $0xc8] sm:$0xff]
      %v202 = vld [vmem:[%s172 + $0xd8] sm:$0xff]
      %v203 = vld [vmem:[%s172 + $0xe0] sm:$0xff]
      %v204 = vld [vmem:[%s172 + $0xf0] sm:$0xff]
      %v205 = vld [vmem:[%s172 + $0xf8] sm:$0xff]
      %v206 = vld [vmem:[%s172 + $0x108] sm:$0xff]
      %v207 = vld [vmem:[%s172 + $0x110] sm:$0xff]
      %v208 = vld [vmem:[%s172 + $0x120] sm:$0xff]
      %v209 = vld [vmem:[%s172 + $0x128] sm:$0xff]
      %v210 = vld [vmem:[%s172 + $0x138] sm:$0xff]
      %v211 = vld [vmem:[%s172 + $0x140] sm:$0xff]
      %v212 = vld [vmem:[%s172 + $0x150] sm:$0xff]
      %v213 = vld [vmem:[%s172 + $0x158] sm:$0xff]
      %v214 = vld [vmem:[%s172 + $0x168] sm:$0xff]
      %v215 = vld [vmem:[%s172 + $0x170] sm:$0xff]
      %v216 = vpack.c.bf16 %v185, %v184
      %v217 = vpack.c.bf16 %v187, %v186
      %v218 = vpack.c.bf16 %v189, %v188
      %v219 = vpack.c.bf16 %v191, %v190
      %v220 = vpack.c.bf16 %v193, %v192
      %v221 = vpack.c.bf16 %v195, %v194
      %v222 = vpack.c.bf16 %v197, %v196
      %v223 = vpack.c.bf16 %v199, %v198
      %v224 = vpack.c.bf16 %v201, %v200
      %v225 = vpack.c.bf16 %v203, %v202
      %v226 = vpack.c.bf16 %v205, %v204
      %v227 = vpack.c.bf16 %v207, %v206
      %v228 = vpack.c.bf16 %v209, %v208
      %v229 = vpack.c.bf16 %v211, %v210
      %v230 = vpack.c.bf16 %v213, %v212
      %v231 = vpack.c.bf16 %v215, %v214
      %v232 = vld [vmem:[%s1] sm:$0x3]
      %v233 = vld [vmem:[%s172 + $0x1] sm:$0xff]
      %v234 = vld [vmem:[%s172 + $0x9] sm:$0xff]
      %v235 = vld [vmem:[%s172 + $0x19] sm:$0xff]
      %v236 = vld [vmem:[%s172 + $0x21] sm:$0xff]
      %v237 = vld [vmem:[%s172 + $0x31] sm:$0xff]
      %v238 = vld [vmem:[%s172 + $0x39] sm:$0xff]
      %v239 = vld [vmem:[%s172 + $0x49] sm:$0xff]
      %v240 = vld [vmem:[%s172 + $0x51] sm:$0xff]
      %v241 = vld [vmem:[%s172 + $0x61] sm:$0xff]
      %v242 = vld [vmem:[%s172 + $0x69] sm:$0xff]
      %v243 = vld [vmem:[%s172 + $0x79] sm:$0xff]
      %v244 = vld [vmem:[%s172 + $0x81] sm:$0xff]
      %v245 = vld [vmem:[%s172 + $0x91] sm:$0xff]
      %v246 = vld [vmem:[%s172 + $0x99] sm:$0xff]
      %v247 = vld [vmem:[%s172 + $0xa9] sm:$0xff]
      %v248 = vld [vmem:[%s172 + $0xb1] sm:$0xff]
      %v249 = vld [vmem:[%s172 + $0xc1] sm:$0xff]
      %v250 = vld [vmem:[%s172 + $0xc9] sm:$0xff]
      %v251 = vld [vmem:[%s172 + $0xd9] sm:$0xff]
      %v252 = vld [vmem:[%s172 + $0xe1] sm:$0xff]
      %v253 = vld [vmem:[%s172 + $0xf1] sm:$0xff]
      %v254 = vld [vmem:[%s172 + $0xf9] sm:$0xff]
      %v255 = vld [vmem:[%s172 + $0x109] sm:$0xff]
      %v256 = vld [vmem:[%s172 + $0x111] sm:$0xff]
      %v257 = vld [vmem:[%s172 + $0x121] sm:$0xff]
      %v258 = vld [vmem:[%s172 + $0x129] sm:$0xff]
      %v259 = vld [vmem:[%s172 + $0x139] sm:$0xff]
      %v260 = vld [vmem:[%s172 + $0x141] sm:$0xff]
      %v261 = vld [vmem:[%s172 + $0x151] sm:$0xff]
      %v262 = vld [vmem:[%s172 + $0x159] sm:$0xff]
      %v263 = vld [vmem:[%s172 + $0x169] sm:$0xff]
      %v264 = vld [vmem:[%s172 + $0x171] sm:$0xff]
      %v265 = vpack.c.bf16 %v234, %v233
      %v266 = vpack.c.bf16 %v236, %v235
      %v267 = vpack.c.bf16 %v238, %v237
      %v268 = vpack.c.bf16 %v240, %v239
      %v269 = vpack.c.bf16 %v242, %v241
      %v270 = vpack.c.bf16 %v244, %v243
      %v271 = vpack.c.bf16 %v246, %v245
      %v272 = vpack.c.bf16 %v248, %v247
      %v273 = vpack.c.bf16 %v250, %v249
      %v274 = vpack.c.bf16 %v252, %v251
      %v275 = vpack.c.bf16 %v254, %v253
      %v276 = vpack.c.bf16 %v256, %v255
      %v277 = vpack.c.bf16 %v258, %v257
      %v278 = vpack.c.bf16 %v260, %v259
      %v279 = vpack.c.bf16 %v262, %v261
      %v280 = vpack.c.bf16 %v264, %v263
      %s281 = scalar_lea.vmem %s1, 2
      %v282 = vld [vmem:[%s281] sm:$0x3]
      %vm283 = vcmask 31744
      %v285 = vsel %vm283, %v265, 0
      %v288 = vsel %vm283, %v266, 0
      %v291 = vsel %vm283, %v267, 0
      %v294 = vsel %vm283, %v268, 0
      %v297 = vsel %vm283, %v269, 0
      %v300 = vsel %vm283, %v270, 0
      %v303 = vsel %vm283, %v271, 0
      %v306 = vsel %vm283, %v272, 0
      %v309 = vsel %vm283, %v273, 0
      %v312 = vsel %vm283, %v274, 0
      %v315 = vsel %vm283, %v275, 0
      %v318 = vsel %vm283, %v276, 0
      %v321 = vsel %vm283, %v277, 0
      %v324 = vsel %vm283, %v278, 0
      %v327 = vsel %vm283, %v279, 0
      %v330 = vsel %vm283, %v280, 0
      %vm332 = vcmask 1041408
      %v334 = vsel %vm332, %v282, 0
      %336 = vmatprep.subr.bf16.mxu0 0
      %337 = vmatpush1.bf16.msra.mxu0 %v334
      %338 = vmatprep.subr.bf16.mxu0 0
      %339 = vmatpush1.bf16.msra.mxu0 0
      %340 = vmatprep.subr.bf16.mxu0 0
      %341 = vmatpush1.bf16.msra.mxu0 0
      %342 = vmatprep.subr.bf16.mxu0 0
      %343 = vmatpush1.bf16.msra.mxu0 0
      %344 = vmatprep.subr.bf16.mxu0 0
      %345 = vmatpush1.bf16.msra.mxu0 0
      %346 = vmatprep.subr.bf16.mxu0 0
      %347 = vmatpush1.bf16.msra.mxu0 0
      %348 = vmatprep.subr.bf16.mxu0 0
      %349 = vmatpush1.bf16.msra.mxu0 0
      %350 = vmatprep.subr.bf16.mxu0 0
      %351 = vmatpush1.bf16.msra.mxu0 0
      %352 = vmatprep.subr.bf16.mxu0 0
      %353 = vmatpush1.bf16.msra.mxu0 0
      %354 = vmatprep.subr.bf16.mxu0 0
      %355 = vmatpush1.bf16.msra.mxu0 0
      %356 = vmatprep.subr.bf16.mxu0 0
      %357 = vmatpush1.bf16.msra.mxu0 0
      %358 = vmatprep.subr.bf16.mxu0 0
      %359 = vmatpush1.bf16.msra.mxu0 0
      %360 = vmatprep.subr.bf16.mxu0 0
      %361 = vmatpush1.bf16.msra.mxu0 0
      %362 = vmatprep.subr.bf16.mxu0 0
      %363 = vmatpush1.bf16.msra.mxu0 0
      %364 = vmatprep.subr.bf16.mxu0 0
      %365 = vmatpush1.bf16.msra.mxu0 0
      %366 = vmatprep.subr.bf16.mxu0 0
      %367 = vmatpush1.bf16.msra.mxu0 0
      %368 = vmatprep.mubr.bf16.mxu0 0
      %369 = vmatmul.mubr.bf16.gmra.mrb[0].mxu0 %v285
      %v370 = vpop.f32.mrb[0].mxu0
      %v371 = vadd.f32 0.0, %v370
      %v372 = vpop.f32.mrb[0].mxu0
      %v373 = vpop.f32.mrb[0].mxu0
      %v374 = vadd.f32 0.0, %v373
      %v375 = vpop.f32.mrb[0].mxu0
      %376 = vmatprep.mubr.bf16.mxu0 0
      %377 = vmatmul.mubr.bf16.gmra.mrb[0].mxu0 %v288
      %v378 = vpop.f32.mrb[0].mxu0
      %v379 = vadd.f32 0.0, %v378
      %v380 = vpop.f32.mrb[0].mxu0
      %v381 = vpop.f32.mrb[0].mxu0
      %v382 = vadd.f32 0.0, %v381
      %v383 = vpop.f32.mrb[0].mxu0
      %384 = vmatprep.mubr.bf16.mxu0 0
      %385 = vmatmul.mubr.bf16.gmra.mrb[0].mxu0 %v291
      %v386 = vpop.f32.mrb[0].mxu0
      %v387 = vadd.f32 0.0, %v386
      %v388 = vpop.f32.mrb[0].mxu0
      %v389 = vpop.f32.mrb[0].mxu0
      %v390 = vadd.f32 0.0, %v389
      %v391 = vpop.f32.mrb[0].mxu0
      %392 = vmatprep.mubr.bf16.mxu0 0
      %393 = vmatmul.mubr.bf16.gmra.mrb[0].mxu0 %v294
      %v394 = vpop.f32.mrb[0].mxu0
      %v395 = vadd.f32 0.0, %v394
      %v396 = vpop.f32.mrb[0].mxu0
      %v397 = vpop.f32.mrb[0].mxu0
      %v398 = vadd.f32 0.0, %v397
      %v399 = vpop.f32.mrb[0].mxu0
      %400 = vmatprep.mubr.bf16.mxu0 0
      %401 = vmatmul.mubr.bf16.gmra.mrb[0].mxu0 %v297
      %v402 = vpop.f32.mrb[0].mxu0
      %v403 = vadd.f32 0.0, %v402
      %v404 = vpop.f32.mrb[0].mxu0
      %v405 = vpop.f32.mrb[0].mxu0
      %v406 = vadd.f32 0.0, %v405
      %v407 = vpop.f32.mrb[0].mxu0
      %408 = vmatprep.mubr.bf16.mxu0 0
      %409 = vmatmul.mubr.bf16.gmra.mrb[0].mxu0 %v300
      %v410 = vpop.f32.mrb[0].mxu0
      %v411 = vadd.f32 0.0, %v410
      %v412 = vpop.f32.mrb[0].mxu0
      %v413 = vpop.f32.mrb[0].mxu0
      %v414 = vadd.f32 0.0, %v413
      %v415 = vpop.f32.mrb[0].mxu0
      %416 = vmatprep.mubr.bf16.mxu0 0
      %417 = vmatmul.mubr.bf16.gmra.mrb[0].mxu0 %v303
      %v418 = vpop.f32.mrb[0].mxu0
      %v419 = vadd.f32 0.0, %v418
      %v420 = vpop.f32.mrb[0].mxu0
      %v421 = vpop.f32.mrb[0].mxu0
      %v422 = vadd.f32 0.0, %v421
      %v423 = vpop.f32.mrb[0].mxu0
      %424 = vmatprep.mubr.bf16.mxu0 0
      %425 = vmatmul.mubr.bf16.gmra.mrb[0].mxu0 %v306
      %v426 = vpop.f32.mrb[0].mxu0
      %v427 = vadd.f32 0.0, %v426
      %v428 = vpop.f32.mrb[0].mxu0
      %v429 = vpop.f32.mrb[0].mxu0
      %v430 = vadd.f32 0.0, %v429
      %v431 = vpop.f32.mrb[0].mxu0
      %432 = vmatprep.mubr.bf16.mxu0 0
      %433 = vmatmul.mubr.bf16.gmra.mrb[0].mxu0 %v309
      %v434 = vpop.f32.mrb[0].mxu0
      %v435 = vadd.f32 0.0, %v434
      %v436 = vpop.f32.mrb[0].mxu0
      %v437 = vpop.f32.mrb[0].mxu0
      %v438 = vadd.f32 0.0, %v437
      %v439 = vpop.f32.mrb[0].mxu0
      %440 = vmatprep.mubr.bf16.mxu0 0
      %441 = vmatmul.mubr.bf16.gmra.mrb[0].mxu0 %v312
      %v442 = vpop.f32.mrb[0].mxu0
      %v443 = vadd.f32 0.0, %v442
      %v444 = vpop.f32.mrb[0].mxu0
      %v445 = vpop.f32.mrb[0].mxu0
      %v446 = vadd.f32 0.0, %v445
      %v447 = vpop.f32.mrb[0].mxu0
      %448 = vmatprep.mubr.bf16.mxu0 0
      %449 = vmatmul.mubr.bf16.gmra.mrb[0].mxu0 %v315
      %v450 = vpop.f32.mrb[0].mxu0
      %v451 = vadd.f32 0.0, %v450
      %v452 = vpop.f32.mrb[0].mxu0
      %v453 = vpop.f32.mrb[0].mxu0
      %v454 = vadd.f32 0.0, %v453
      %v455 = vpop.f32.mrb[0].mxu0
      %456 = vmatprep.mubr.bf16.mxu0 0
      %457 = vmatmul.mubr.bf16.gmra.mrb[0].mxu0 %v318
      %v458 = vpop.f32.mrb[0].mxu0
      %v459 = vadd.f32 0.0, %v458
      %v460 = vpop.f32.mrb[0].mxu0
      %v461 = vpop.f32.mrb[0].mxu0
      %v462 = vadd.f32 0.0, %v461
      %v463 = vpop.f32.mrb[0].mxu0
      %464 = vmatprep.mubr.bf16.mxu0 0
      %465 = vmatmul.mubr.bf16.gmra.mrb[0].mxu0 %v321
      %v466 = vpop.f32.mrb[0].mxu0
      %v467 = vadd.f32 0.0, %v466
      %v468 = vpop.f32.mrb[0].mxu0
      %v469 = vpop.f32.mrb[0].mxu0
      %v470 = vadd.f32 0.0, %v469
      %v471 = vpop.f32.mrb[0].mxu0
      %472 = vmatprep.mubr.bf16.mxu0 0
      %473 = vmatmul.mubr.bf16.gmra.mrb[0].mxu0 %v324
      %v474 = vpop.f32.mrb[0].mxu0
      %v475 = vadd.f32 0.0, %v474
      %v476 = vpop.f32.mrb[0].mxu0
      %v477 = vpop.f32.mrb[0].mxu0
      %v478 = vadd.f32 0.0, %v477
      %v479 = vpop.f32.mrb[0].mxu0
      %480 = vmatprep.mubr.bf16.mxu0 0
      %481 = vmatmul.mubr.bf16.gmra.mrb[0].mxu0 %v327
      %v482 = vpop.f32.mrb[0].mxu0
      %v483 = vadd.f32 0.0, %v482
      %v484 = vpop.f32.mrb[0].mxu0
      %v485 = vpop.f32.mrb[0].mxu0
      %v486 = vadd.f32 0.0, %v485
      %v487 = vpop.f32.mrb[0].mxu0
      %488 = vmatprep.mubr.bf16.mxu0 0
      %489 = vmatmul.mubr.bf16.gmra.mrb[0].mxu0 %v330
      %v490 = vpop.f32.mrb[0].mxu0
      %v491 = vadd.f32 0.0, %v490
      %v492 = vpop.f32.mrb[0].mxu0
      %v493 = vpop.f32.mrb[0].mxu0
      %v494 = vadd.f32 0.0, %v493
      %v495 = vpop.f32.mrb[0].mxu0
      %496 = vdwg.mxu0
      %v498 = vsel %vm283, %v216, 0
      %v501 = vsel %vm283, %v217, 0
      %v504 = vsel %vm283, %v218, 0
      %v507 = vsel %vm283, %v219, 0
      %v510 = vsel %vm283, %v220, 0
      %v513 = vsel %vm283, %v221, 0
      %v516 = vsel %vm283, %v222, 0
      %v519 = vsel %vm283, %v223, 0
      %v522 = vsel %vm283, %v224, 0
      %v525 = vsel %vm283, %v225, 0
      %v528 = vsel %vm283, %v226, 0
      %v531 = vsel %vm283, %v227, 0
      %v534 = vsel %vm283, %v228, 0
      %v537 = vsel %vm283, %v229, 0
      %v540 = vsel %vm283, %v230, 0
      %v543 = vsel %vm283, %v231, 0
      %v546 = vsel %vm332, %v232, 0
      %548 = vmatprep.subr.bf16.mxu0 0
      %549 = vmatpush1.bf16.msra.mxu0 %v546
      %550 = vmatprep.subr.bf16.mxu0 0
      %551 = vmatpush1.bf16.msra.mxu0 0
      %552 = vmatprep.subr.bf16.mxu0 0
      %553 = vmatpush1.bf16.msra.mxu0 0
      %554 = vmatprep.subr.bf16.mxu0 0
      %555 = vmatpush1.bf16.msra.mxu0 0
      %556 = vmatprep.subr.bf16.mxu0 0
      %557 = vmatpush1.bf16.msra.mxu0 0
      %558 = vmatprep.subr.bf16.mxu0 0
      %559 = vmatpush1.bf16.msra.mxu0 0
      %560 = vmatprep.subr.bf16.mxu0 0
      %561 = vmatpush1.bf16.msra.mxu0 0
      %562 = vmatprep.subr.bf16.mxu0 0
      %563 = vmatpush1.bf16.msra.mxu0 0
      %564 = vmatprep.subr.bf16.mxu0 0
      %565 = vmatpush1.bf16.msra.mxu0 0
      %566 = vmatprep.subr.bf16.mxu0 0
      %567 = vmatpush1.bf16.msra.mxu0 0
      %568 = vmatprep.subr.bf16.mxu0 0
      %569 = vmatpush1.bf16.msra.mxu0 0
      %570 = vmatprep.subr.bf16.mxu0 0
      %571 = vmatpush1.bf16.msra.mxu0 0
      %572 = vmatprep.subr.bf16.mxu0 0
      %573 = vmatpush1.bf16.msra.mxu0 0
      %574 = vmatprep.subr.bf16.mxu0 0
      %575 = vmatpush1.bf16.msra.mxu0 0
      %576 = vmatprep.subr.bf16.mxu0 0
      %577 = vmatpush1.bf16.msra.mxu0 0
      %578 = vmatprep.subr.bf16.mxu0 0
      %579 = vmatpush1.bf16.msra.mxu0 0
      %580 = vmatprep.mubr.bf16.mxu0 0
      %581 = vmatmul.mubr.bf16.gmra.mrb[0].mxu0 %v498
      %v582 = vpop.f32.mrb[0].mxu0
      %v583 = vadd.f32 %v371, %v582
      %v584 = vpop.f32.mrb[0].mxu0
      %v585 = vpop.f32.mrb[0].mxu0
      %v586 = vadd.f32 %v374, %v585
      %v587 = vpop.f32.mrb[0].mxu0
      %588 = vmatprep.mubr.bf16.mxu0 0
      %589 = vmatmul.mubr.bf16.gmra.mrb[0].mxu0 %v501
      %v590 = vpop.f32.mrb[0].mxu0
      %v591 = vadd.f32 %v379, %v590
      %v592 = vpop.f32.mrb[0].mxu0
      %v593 = vpop.f32.mrb[0].mxu0
      %v594 = vadd.f32 %v382, %v593
      %v595 = vpop.f32.mrb[0].mxu0
      %596 = vmatprep.mubr.bf16.mxu0 0
      %597 = vmatmul.mubr.bf16.gmra.mrb[0].mxu0 %v504
      %v598 = vpop.f32.mrb[0].mxu0
      %v599 = vadd.f32 %v387, %v598
      %v600 = vpop.f32.mrb[0].mxu0
      %v601 = vpop.f32.mrb[0].mxu0
      %v602 = vadd.f32 %v390, %v601
      %v603 = vpop.f32.mrb[0].mxu0
      %604 = vmatprep.mubr.bf16.mxu0 0
      %605 = vmatmul.mubr.bf16.gmra.mrb[0].mxu0 %v507
      %v606 = vpop.f32.mrb[0].mxu0
      %v607 = vadd.f32 %v395, %v606
      %v608 = vpop.f32.mrb[0].mxu0
      %v609 = vpop.f32.mrb[0].mxu0
      %v610 = vadd.f32 %v398, %v609
      %v611 = vpop.f32.mrb[0].mxu0
      %612 = vmatprep.mubr.bf16.mxu0 0
      %613 = vmatmul.mubr.bf16.gmra.mrb[0].mxu0 %v510
      %v614 = vpop.f32.mrb[0].mxu0
      %v615 = vadd.f32 %v403, %v614
      %v616 = vpop.f32.mrb[0].mxu0
      %v617 = vpop.f32.mrb[0].mxu0
      %v618 = vadd.f32 %v406, %v617
      %v619 = vpop.f32.mrb[0].mxu0
      %620 = vmatprep.mubr.bf16.mxu0 0
      %621 = vmatmul.mubr.bf16.gmra.mrb[0].mxu0 %v513
      %v622 = vpop.f32.mrb[0].mxu0
      %v623 = vadd.f32 %v411, %v622
      %v624 = vpop.f32.mrb[0].mxu0
      %v625 = vpop.f32.mrb[0].mxu0
      %v626 = vadd.f32 %v414, %v625
      %v627 = vpop.f32.mrb[0].mxu0
      %628 = vmatprep.mubr.bf16.mxu0 0
      %629 = vmatmul.mubr.bf16.gmra.mrb[0].mxu0 %v516
      %v630 = vpop.f32.mrb[0].mxu0
      %v631 = vadd.f32 %v419, %v630
      %v632 = vpop.f32.mrb[0].mxu0
      %v633 = vpop.f32.mrb[0].mxu0
      %v634 = vadd.f32 %v422, %v633
      %v635 = vpop.f32.mrb[0].mxu0
      %636 = vmatprep.mubr.bf16.mxu0 0
      %637 = vmatmul.mubr.bf16.gmra.mrb[0].mxu0 %v519
      %v638 = vpop.f32.mrb[0].mxu0
      %v639 = vadd.f32 %v427, %v638
      %v640 = vpop.f32.mrb[0].mxu0
      %v641 = vpop.f32.mrb[0].mxu0
      %v642 = vadd.f32 %v430, %v641
      %v643 = vpop.f32.mrb[0].mxu0
      %644 = vmatprep.mubr.bf16.mxu0 0
      %645 = vmatmul.mubr.bf16.gmra.mrb[0].mxu0 %v522
      %v646 = vpop.f32.mrb[0].mxu0
      %v647 = vadd.f32 %v435, %v646
      %v648 = vpop.f32.mrb[0].mxu0
      %v649 = vpop.f32.mrb[0].mxu0
      %v650 = vadd.f32 %v438, %v649
      %v651 = vpop.f32.mrb[0].mxu0
      %652 = vmatprep.mubr.bf16.mxu0 0
      %653 = vmatmul.mubr.bf16.gmra.mrb[0].mxu0 %v525
      %v654 = vpop.f32.mrb[0].mxu0
      %v655 = vadd.f32 %v443, %v654
      %v656 = vpop.f32.mrb[0].mxu0
      %v657 = vpop.f32.mrb[0].mxu0
      %v658 = vadd.f32 %v446, %v657
      %v659 = vpop.f32.mrb[0].mxu0
      %660 = vmatprep.mubr.bf16.mxu0 0
      %661 = vmatmul.mubr.bf16.gmra.mrb[0].mxu0 %v528
      %v662 = vpop.f32.mrb[0].mxu0
      %v663 = vadd.f32 %v451, %v662
      %v664 = vpop.f32.mrb[0].mxu0
      %v665 = vpop.f32.mrb[0].mxu0
      %v666 = vadd.f32 %v454, %v665
      %v667 = vpop.f32.mrb[0].mxu0
      %668 = vmatprep.mubr.bf16.mxu0 0
      %669 = vmatmul.mubr.bf16.gmra.mrb[0].mxu0 %v531
      %v670 = vpop.f32.mrb[0].mxu0
      %v671 = vadd.f32 %v459, %v670
      %v672 = vpop.f32.mrb[0].mxu0
      %v673 = vpop.f32.mrb[0].mxu0
      %v674 = vadd.f32 %v462, %v673
      %v675 = vpop.f32.mrb[0].mxu0
      %676 = vmatprep.mubr.bf16.mxu0 0
      %677 = vmatmul.mubr.bf16.gmra.mrb[0].mxu0 %v534
      %v678 = vpop.f32.mrb[0].mxu0
      %v679 = vadd.f32 %v467, %v678
      %v680 = vpop.f32.mrb[0].mxu0
      %v681 = vpop.f32.mrb[0].mxu0
      %v682 = vadd.f32 %v470, %v681
      %v683 = vpop.f32.mrb[0].mxu0
      %684 = vmatprep.mubr.bf16.mxu0 0
      %685 = vmatmul.mubr.bf16.gmra.mrb[0].mxu0 %v537
      %v686 = vpop.f32.mrb[0].mxu0
      %v687 = vadd.f32 %v475, %v686
      %v688 = vpop.f32.mrb[0].mxu0
      %v689 = vpop.f32.mrb[0].mxu0
      %v690 = vadd.f32 %v478, %v689
      %v691 = vpop.f32.mrb[0].mxu0
      %692 = vmatprep.mubr.bf16.mxu0 0
      %693 = vmatmul.mubr.bf16.gmra.mrb[0].mxu0 %v540
      %v694 = vpop.f32.mrb[0].mxu0
      %v695 = vadd.f32 %v483, %v694
      %v696 = vpop.f32.mrb[0].mxu0
      %v697 = vpop.f32.mrb[0].mxu0
      %v698 = vadd.f32 %v486, %v697
      %v699 = vpop.f32.mrb[0].mxu0
      %700 = vmatprep.mubr.bf16.mxu0 0
      %701 = vmatmul.mubr.bf16.gmra.mrb[0].mxu0 %v543
      %v702 = vpop.f32.mrb[0].mxu0
      %v703 = vadd.f32 %v491, %v702
      %v704 = vpop.f32.mrb[0].mxu0
      %v705 = vpop.f32.mrb[0].mxu0
      %v706 = vadd.f32 %v494, %v705
      %v707 = vpop.f32.mrb[0].mxu0
      %708 = vdwg.mxu0
      %v709 = vld [vmem:[%s172 + $0x2] sm:$0xff]
      %v710 = vld [vmem:[%s172 + $0xa] sm:$0xff]
      %v711 = vld [vmem:[%s172 + $0x1a] sm:$0xff]
      %v712 = vld [vmem:[%s172 + $0x22] sm:$0xff]
      %v713 = vld [vmem:[%s172 + $0x32] sm:$0xff]
      %v714 = vld [vmem:[%s172 + $0x3a] sm:$0xff]
      %v715 = vld [vmem:[%s172 + $0x4a] sm:$0xff]
      %v716 = vld [vmem:[%s172 + $0x52] sm:$0xff]
      %v717 = vld [vmem:[%s172 + $0x62] sm:$0xff]
      %v718 = vld [vmem:[%s172 + $0x6a] sm:$0xff]
      %v719 = vld [vmem:[%s172 + $0x7a] sm:$0xff]
      %v720 = vld [vmem:[%s172 + $0x82] sm:$0xff]
      %v721 = vld [vmem:[%s172 + $0x92] sm:$0xff]
      %v722 = vld [vmem:[%s172 + $0x9a] sm:$0xff]
      %v723 = vld [vmem:[%s172 + $0xaa] sm:$0xff]
      %v724 = vld [vmem:[%s172 + $0xb2] sm:$0xff]
      %v725 = vld [vmem:[%s172 + $0xc2] sm:$0xff]
      %v726 = vld [vmem:[%s172 + $0xca] sm:$0xff]
      %v727 = vld [vmem:[%s172 + $0xda] sm:$0xff]
      %v728 = vld [vmem:[%s172 + $0xe2] sm:$0xff]
      %v729 = vld [vmem:[%s172 + $0xf2] sm:$0xff]
      %v730 = vld [vmem:[%s172 + $0xfa] sm:$0xff]
      %v731 = vld [vmem:[%s172 + $0x10a] sm:$0xff]
      %v732 = vld [vmem:[%s172 + $0x112] sm:$0xff]
      %v733 = vld [vmem:[%s172 + $0x122] sm:$0xff]
      %v734 = vld [vmem:[%s172 + $0x12a] sm:$0xff]
      %v735 = vld [vmem:[%s172 + $0x13a] sm:$0xff]
      %v736 = vld [vmem:[%s172 + $0x142] sm:$0xff]
      %v737 = vld [vmem:[%s172 + $0x152] sm:$0xff]
      %v738 = vld [vmem:[%s172 + $0x15a] sm:$0xff]
      %v739 = vld [vmem:[%s172 + $0x16a] sm:$0xff]
      %v740 = vld [vmem:[%s172 + $0x172] sm:$0xff]
      %v741 = vpack.c.bf16 %v710, %v709
      %v742 = vpack.c.bf16 %v712, %v711
      %v743 = vpack.c.bf16 %v714, %v713
      %v744 = vpack.c.bf16 %v716, %v715
      %v745 = vpack.c.bf16 %v718, %v717
      %v746 = vpack.c.bf16 %v720, %v719
      %v747 = vpack.c.bf16 %v722, %v721
      %v748 = vpack.c.bf16 %v724, %v723
      %v749 = vpack.c.bf16 %v726, %v725
      %v750 = vpack.c.bf16 %v728, %v727
      %v751 = vpack.c.bf16 %v730, %v729
      %v752 = vpack.c.bf16 %v732, %v731
      %v753 = vpack.c.bf16 %v734, %v733
      %v754 = vpack.c.bf16 %v736, %v735
      %v755 = vpack.c.bf16 %v738, %v737
      %v756 = vpack.c.bf16 %v740, %v739
      %s757 = scalar_lea.vmem %s1, 4
      %v758 = vld [vmem:[%s757] sm:$0x3]
      %v760 = vsel %vm283, %v741, 0
      %v763 = vsel %vm283, %v742, 0
      %v766 = vsel %vm283, %v743, 0
      %v769 = vsel %vm283, %v744, 0
      %v772 = vsel %vm283, %v745, 0
      %v775 = vsel %vm283, %v746, 0
      %v778 = vsel %vm283, %v747, 0
      %v781 = vsel %vm283, %v748, 0
      %v784 = vsel %vm283, %v749, 0
      %v787 = vsel %vm283, %v750, 0
      %v790 = vsel %vm283, %v751, 0
      %v793 = vsel %vm283, %v752, 0
      %v796 = vsel %vm283, %v753, 0
      %v799 = vsel %vm283, %v754, 0
      %v802 = vsel %vm283, %v755, 0
      %v805 = vsel %vm283, %v756, 0
      %v808 = vsel %vm332, %v758, 0
      %810 = vmatprep.subr.bf16.mxu0 0
      %811 = vmatpush1.bf16.msra.mxu0 %v808
      %812 = vmatprep.subr.bf16.mxu0 0
      %813 = vmatpush1.bf16.msra.mxu0 0
      %814 = vmatprep.subr.bf16.mxu0 0
      %815 = vmatpush1.bf16.msra.mxu0 0
      %816 = vmatprep.subr.bf16.mxu0 0
      %817 = vmatpush1.bf16.msra.mxu0 0
      %818 = vmatprep.subr.bf16.mxu0 0
      %819 = vmatpush1.bf16.msra.mxu0 0
      %820 = vmatprep.subr.bf16.mxu0 0
      %821 = vmatpush1.bf16.msra.mxu0 0
      %822 = vmatprep.subr.bf16.mxu0 0
      %823 = vmatpush1.bf16.msra.mxu0 0
      %824 = vmatprep.subr.bf16.mxu0 0
      %825 = vmatpush1.bf16.msra.mxu0 0
      %826 = vmatprep.subr.bf16.mxu0 0
      %827 = vmatpush1.bf16.msra.mxu0 0
      %828 = vmatprep.subr.bf16.mxu0 0
      %829 = vmatpush1.bf16.msra.mxu0 0
      %830 = vmatprep.subr.bf16.mxu0 0
      %831 = vmatpush1.bf16.msra.mxu0 0
      %832 = vmatprep.subr.bf16.mxu0 0
      %833 = vmatpush1.bf16.msra.mxu0 0
      %834 = vmatprep.subr.bf16.mxu0 0
      %835 = vmatpush1.bf16.msra.mxu0 0
      %836 = vmatprep.subr.bf16.mxu0 0
      %837 = vmatpush1.bf16.msra.mxu0 0
      %838 = vmatprep.subr.bf16.mxu0 0
      %839 = vmatpush1.bf16.msra.mxu0 0
      %840 = vmatprep.subr.bf16.mxu0 0
      %841 = vmatpush1.bf16.msra.mxu0 0
      %842 = vmatprep.mubr.bf16.mxu0 0
      %843 = vmatmul.mubr.bf16.gmra.mrb[0].mxu0 %v760
      %v844 = vpop.f32.mrb[0].mxu0
      %v845 = vadd.f32 0.0, %v844
      %v846 = vpop.f32.mrb[0].mxu0
      %v847 = vpop.f32.mrb[0].mxu0
      %v848 = vadd.f32 0.0, %v847
      %v849 = vpop.f32.mrb[0].mxu0
      %850 = vmatprep.mubr.bf16.mxu0 0
      %851 = vmatmul.mubr.bf16.gmra.mrb[0].mxu0 %v763
      %v852 = vpop.f32.mrb[0].mxu0
      %v853 = vadd.f32 0.0, %v852
      %v854 = vpop.f32.mrb[0].mxu0
      %v855 = vpop.f32.mrb[0].mxu0
      %v856 = vadd.f32 0.0, %v855
      %v857 = vpop.f32.mrb[0].mxu0
      %858 = vmatprep.mubr.bf16.mxu0 0
      %859 = vmatmul.mubr.bf16.gmra.mrb[0].mxu0 %v766
      %v860 = vpop.f32.mrb[0].mxu0
      %v861 = vadd.f32 0.0, %v860
      %v862 = vpop.f32.mrb[0].mxu0
      %v863 = vpop.f32.mrb[0].mxu0
      %v864 = vadd.f32 0.0, %v863
      %v865 = vpop.f32.mrb[0].mxu0
      %866 = vmatprep.mubr.bf16.mxu0 0
      %867 = vmatmul.mubr.bf16.gmra.mrb[0].mxu0 %v769
      %v868 = vpop.f32.mrb[0].mxu0
      %v869 = vadd.f32 0.0, %v868
      %v870 = vpop.f32.mrb[0].mxu0
      %v871 = vpop.f32.mrb[0].mxu0
      %v872 = vadd.f32 0.0, %v871
      %v873 = vpop.f32.mrb[0].mxu0
      %874 = vmatprep.mubr.bf16.mxu0 0
      %875 = vmatmul.mubr.bf16.gmra.mrb[0].mxu0 %v772
      %v876 = vpop.f32.mrb[0].mxu0
      %v877 = vadd.f32 0.0, %v876
      %v878 = vpop.f32.mrb[0].mxu0
      %v879 = vpop.f32.mrb[0].mxu0
      %v880 = vadd.f32 0.0, %v879
      %v881 = vpop.f32.mrb[0].mxu0
      %882 = vmatprep.mubr.bf16.mxu0 0
      %883 = vmatmul.mubr.bf16.gmra.mrb[0].mxu0 %v775
      %v884 = vpop.f32.mrb[0].mxu0
      %v885 = vadd.f32 0.0, %v884
      %v886 = vpop.f32.mrb[0].mxu0
      %v887 = vpop.f32.mrb[0].mxu0
      %v888 = vadd.f32 0.0, %v887
      %v889 = vpop.f32.mrb[0].mxu0
      %890 = vmatprep.mubr.bf16.mxu0 0
      %891 = vmatmul.mubr.bf16.gmra.mrb[0].mxu0 %v778
      %v892 = vpop.f32.mrb[0].mxu0
      %v893 = vadd.f32 0.0, %v892
      %v894 = vpop.f32.mrb[0].mxu0
      %v895 = vpop.f32.mrb[0].mxu0
      %v896 = vadd.f32 0.0, %v895
      %v897 = vpop.f32.mrb[0].mxu0
      %898 = vmatprep.mubr.bf16.mxu0 0
      %899 = vmatmul.mubr.bf16.gmra.mrb[0].mxu0 %v781
      %v900 = vpop.f32.mrb[0].mxu0
      %v901 = vadd.f32 0.0, %v900
      %v902 = vpop.f32.mrb[0].mxu0
      %v903 = vpop.f32.mrb[0].mxu0
      %v904 = vadd.f32 0.0, %v903
      %v905 = vpop.f32.mrb[0].mxu0
      %906 = vmatprep.mubr.bf16.mxu0 0
      %907 = vmatmul.mubr.bf16.gmra.mrb[0].mxu0 %v784
      %v908 = vpop.f32.mrb[0].mxu0
      %v909 = vadd.f32 0.0, %v908
      %v910 = vpop.f32.mrb[0].mxu0
      %v911 = vpop.f32.mrb[0].mxu0
      %v912 = vadd.f32 0.0, %v911
      %v913 = vpop.f32.mrb[0].mxu0
      %914 = vmatprep.mubr.bf16.mxu0 0
      %915 = vmatmul.mubr.bf16.gmra.mrb[0].mxu0 %v787
      %v916 = vpop.f32.mrb[0].mxu0
      %v917 = vadd.f32 0.0, %v916
      %v918 = vpop.f32.mrb[0].mxu0
      %v919 = vpop.f32.mrb[0].mxu0
      %v920 = vadd.f32 0.0, %v919
      %v921 = vpop.f32.mrb[0].mxu0
      %922 = vmatprep.mubr.bf16.mxu0 0
      %923 = vmatmul.mubr.bf16.gmra.mrb[0].mxu0 %v790
      %v924 = vpop.f32.mrb[0].mxu0
      %v925 = vadd.f32 0.0, %v924
      %v926 = vpop.f32.mrb[0].mxu0
      %v927 = vpop.f32.mrb[0].mxu0
      %v928 = vadd.f32 0.0, %v927
      %v929 = vpop.f32.mrb[0].mxu0
      %930 = vmatprep.mubr.bf16.mxu0 0
      %931 = vmatmul.mubr.bf16.gmra.mrb[0].mxu0 %v793
      %v932 = vpop.f32.mrb[0].mxu0
      %v933 = vadd.f32 0.0, %v932
      %v934 = vpop.f32.mrb[0].mxu0
      %v935 = vpop.f32.mrb[0].mxu0
      %v936 = vadd.f32 0.0, %v935
      %v937 = vpop.f32.mrb[0].mxu0
      %938 = vmatprep.mubr.bf16.mxu0 0
      %939 = vmatmul.mubr.bf16.gmra.mrb[0].mxu0 %v796
      %v940 = vpop.f32.mrb[0].mxu0
      %v941 = vadd.f32 0.0, %v940
      %v942 = vpop.f32.mrb[0].mxu0
      %v943 = vpop.f32.mrb[0].mxu0
      %v944 = vadd.f32 0.0, %v943
      %v945 = vpop.f32.mrb[0].mxu0
      %946 = vmatprep.mubr.bf16.mxu0 0
      %947 = vmatmul.mubr.bf16.gmra.mrb[0].mxu0 %v799
      %v948 = vpop.f32.mrb[0].mxu0
      %v949 = vadd.f32 0.0, %v948
      %v950 = vpop.f32.mrb[0].mxu0
      %v951 = vpop.f32.mrb[0].mxu0
      %v952 = vadd.f32 0.0, %v951
      %v953 = vpop.f32.mrb[0].mxu0
      %954 = vmatprep.mubr.bf16.mxu0 0
      %955 = vmatmul.mubr.bf16.gmra.mrb[0].mxu0 %v802
      %v956 = vpop.f32.mrb[0].mxu0
      %v957 = vadd.f32 0.0, %v956
      %v958 = vpop.f32.mrb[0].mxu0
      %v959 = vpop.f32.mrb[0].mxu0
      %v960 = vadd.f32 0.0, %v959
      %v961 = vpop.f32.mrb[0].mxu0
      %962 = vmatprep.mubr.bf16.mxu0 0
      %963 = vmatmul.mubr.bf16.gmra.mrb[0].mxu0 %v805
      %v964 = vpop.f32.mrb[0].mxu0
      %v965 = vadd.f32 0.0, %v964
      %v966 = vpop.f32.mrb[0].mxu0
      %v967 = vpop.f32.mrb[0].mxu0
      %v968 = vadd.f32 0.0, %v967
      %v969 = vpop.f32.mrb[0].mxu0
      %970 = vdwg.mxu0
      %v971 = vadd.f32 %v583, %v845
      %v972 = vadd.f32 %v586, %v848
      %v973 = vadd.f32 %v591, %v853
      %v974 = vadd.f32 %v594, %v856
      %v975 = vadd.f32 %v599, %v861
      %v976 = vadd.f32 %v602, %v864
      %v977 = vadd.f32 %v607, %v869
      %v978 = vadd.f32 %v610, %v872
      %v979 = vadd.f32 %v615, %v877
      %v980 = vadd.f32 %v618, %v880
      %v981 = vadd.f32 %v623, %v885
      %v982 = vadd.f32 %v626, %v888
      %v983 = vadd.f32 %v631, %v893
      %v984 = vadd.f32 %v634, %v896
      %v985 = vadd.f32 %v639, %v901
      %v986 = vadd.f32 %v642, %v904
      %v987 = vadd.f32 %v647, %v909
      %v988 = vadd.f32 %v650, %v912
      %v989 = vadd.f32 %v655, %v917
      %v990 = vadd.f32 %v658, %v920
      %v991 = vadd.f32 %v663, %v925
      %v992 = vadd.f32 %v666, %v928
      %v993 = vadd.f32 %v671, %v933
      %v994 = vadd.f32 %v674, %v936
      %v995 = vadd.f32 %v679, %v941
      %v996 = vadd.f32 %v682, %v944
      %v997 = vadd.f32 %v687, %v949
      %v998 = vadd.f32 %v690, %v952
      %v999 = vadd.f32 %v695, %v957
      %v1000 = vadd.f32 %v698, %v960
      %v1001 = vadd.f32 %v703, %v965
      %v1002 = vadd.f32 %v706, %v968
      %s1003 = scalar_lea.vmem %s172, 24
      %v1004 = vld [vmem:[%s1003] sm:$0xff]
      %v1005 = vld [vmem:[%s1003 + $0x8] sm:$0xff]
      %v1006 = vld [vmem:[%s1003 + $0x18] sm:$0xff]
      %v1007 = vld [vmem:[%s1003 + $0x20] sm:$0xff]
      %v1008 = vld [vmem:[%s1003 + $0x30] sm:$0xff]
      %v1009 = vld [vmem:[%s1003 + $0x38] sm:$0xff]
      %v1010 = vld [vmem:[%s1003 + $0x48] sm:$0xff]
      %v1011 = vld [vmem:[%s1003 + $0x50] sm:$0xff]
      %v1012 = vld [vmem:[%s1003 + $0x60] sm:$0xff]
      %v1013 = vld [vmem:[%s1003 + $0x68] sm:$0xff]
      %v1014 = vld [vmem:[%s1003 + $0x78] sm:$0xff]
      %v1015 = vld [vmem:[%s1003 + $0x80] sm:$0xff]
      %v1016 = vld [vmem:[%s1003 + $0x90] sm:$0xff]
      %v1017 = vld [vmem:[%s1003 + $0x98] sm:$0xff]
      %v1018 = vld [vmem:[%s1003 + $0xa8] sm:$0xff]
      %v1019 = vld [vmem:[%s1003 + $0xb0] sm:$0xff]
      %v1020 = vld [vmem:[%s1003 + $0xc0] sm:$0xff]
      %v1021 = vld [vmem:[%s1003 + $0xc8] sm:$0xff]
      %v1022 = vld [vmem:[%s1003 + $0xd8] sm:$0xff]
      %v1023 = vld [vmem:[%s1003 + $0xe0] sm:$0xff]
      %v1024 = vld [vmem:[%s1003 + $0xf0] sm:$0xff]
      %v1025 = vld [vmem:[%s1003 + $0xf8] sm:$0xff]
      %v1026 = vld [vmem:[%s1003 + $0x108] sm:$0xff]
      %v1027 = vld [vmem:[%s1003 + $0x110] sm:$0xff]
      %v1028 = vld [vmem:[%s1003 + $0x120] sm:$0xff]
      %v1029 = vld [vmem:[%s1003 + $0x128] sm:$0xff]
      %v1030 = vld [vmem:[%s1003 + $0x138] sm:$0xff]
      %v1031 = vld [vmem:[%s1003 + $0x140] sm:$0xff]
      %v1032 = vld [vmem:[%s1003 + $0x150] sm:$0xff]
      %v1033 = vld [vmem:[%s1003 + $0x158] sm:$0xff]
      %v1034 = vld [vmem:[%s1003 + $0x168] sm:$0xff]
      %v1035 = vld [vmem:[%s1003 + $0x170] sm:$0xff]
      %v1036 = vpack.c.bf16 %v1005, %v1004
      %v1037 = vpack.c.bf16 %v1007, %v1006
      %v1038 = vpack.c.bf16 %v1009, %v1008
      %v1039 = vpack.c.bf16 %v1011, %v1010
      %v1040 = vpack.c.bf16 %v1013, %v1012
      %v1041 = vpack.c.bf16 %v1015, %v1014
      %v1042 = vpack.c.bf16 %v1017, %v1016
      %v1043 = vpack.c.bf16 %v1019, %v1018
      %v1044 = vpack.c.bf16 %v1021, %v1020
      %v1045 = vpack.c.bf16 %v1023, %v1022
      %v1046 = vpack.c.bf16 %v1025, %v1024
      %v1047 = vpack.c.bf16 %v1027, %v1026
      %v1048 = vpack.c.bf16 %v1029, %v1028
      %v1049 = vpack.c.bf16 %v1031, %v1030
      %v1050 = vpack.c.bf16 %v1033, %v1032
      %v1051 = vpack.c.bf16 %v1035, %v1034
      %s1052 = scalar_lea.vmem %s1, 6
      %v1053 = vld [vmem:[%s1052] sm:$0x3]
      %v1055 = vsel %vm283, %v1036, 0
      %v1058 = vsel %vm283, %v1037, 0
      %v1061 = vsel %vm283, %v1038, 0
      %v1064 = vsel %vm283, %v1039, 0
      %v1067 = vsel %vm283, %v1040, 0
      %v1070 = vsel %vm283, %v1041, 0
      %v1073 = vsel %vm283, %v1042, 0
      %v1076 = vsel %vm283, %v1043, 0
      %v1079 = vsel %vm283, %v1044, 0
      %v1082 = vsel %vm283, %v1045, 0
      %v1085 = vsel %vm283, %v1046, 0
      %v1088 = vsel %vm283, %v1047, 0
      %v1091 = vsel %vm283, %v1048, 0
      %v1094 = vsel %vm283, %v1049, 0
      %v1097 = vsel %vm283, %v1050, 0
      %v1100 = vsel %vm283, %v1051, 0
      %v1103 = vsel %vm332, %v1053, 0
      %1105 = vmatprep.subr.bf16.mxu0 0
      %1106 = vmatpush1.bf16.msra.mxu0 %v1103
      %1107 = vmatprep.subr.bf16.mxu0 0
      %1108 = vmatpush1.bf16.msra.mxu0 0
      %1109 = vmatprep.subr.bf16.mxu0 0
      %1110 = vmatpush1.bf16.msra.mxu0 0
      %1111 = vmatprep.subr.bf16.mxu0 0
      %1112 = vmatpush1.bf16.msra.mxu0 0
      %1113 = vmatprep.subr.bf16.mxu0 0
      %1114 = vmatpush1.bf16.msra.mxu0 0
      %1115 = vmatprep.subr.bf16.mxu0 0
      %1116 = vmatpush1.bf16.msra.mxu0 0
      %1117 = vmatprep.subr.bf16.mxu0 0
      %1118 = vmatpush1.bf16.msra.mxu0 0
      %1119 = vmatprep.subr.bf16.mxu0 0
      %1120 = vmatpush1.bf16.msra.mxu0 0
      %1121 = vmatprep.subr.bf16.mxu0 0
      %1122 = vmatpush1.bf16.msra.mxu0 0
      %1123 = vmatprep.subr.bf16.mxu0 0
      %1124 = vmatpush1.bf16.msra.mxu0 0
      %1125 = vmatprep.subr.bf16.mxu0 0
      %1126 = vmatpush1.bf16.msra.mxu0 0
      %1127 = vmatprep.subr.bf16.mxu0 0
      %1128 = vmatpush1.bf16.msra.mxu0 0
      %1129 = vmatprep.subr.bf16.mxu0 0
      %1130 = vmatpush1.bf16.msra.mxu0 0
      %1131 = vmatprep.subr.bf16.mxu0 0
      %1132 = vmatpush1.bf16.msra.mxu0 0
      %1133 = vmatprep.subr.bf16.mxu0 0
      %1134 = vmatpush1.bf16.msra.mxu0 0
      %1135 = vmatprep.subr.bf16.mxu0 0
      %1136 = vmatpush1.bf16.msra.mxu0 0
      %1137 = vmatprep.mubr.bf16.mxu0 0
      %1138 = vmatmul.mubr.bf16.gmra.mrb[0].mxu0 %v1055
      %v1139 = vpop.f32.mrb[0].mxu0
      %v1140 = vadd.f32 0.0, %v1139
      %v1141 = vpop.f32.mrb[0].mxu0
      %v1142 = vpop.f32.mrb[0].mxu0
      %v1143 = vadd.f32 0.0, %v1142
      %v1144 = vpop.f32.mrb[0].mxu0
      %1145 = vmatprep.mubr.bf16.mxu0 0
      %1146 = vmatmul.mubr.bf16.gmra.mrb[0].mxu0 %v1058
      %v1147 = vpop.f32.mrb[0].mxu0
      %v1148 = vadd.f32 0.0, %v1147
      %v1149 = vpop.f32.mrb[0].mxu0
      %v1150 = vpop.f32.mrb[0].mxu0
      %v1151 = vadd.f32 0.0, %v1150
      %v1152 = vpop.f32.mrb[0].mxu0
      %1153 = vmatprep.mubr.bf16.mxu0 0
      %1154 = vmatmul.mubr.bf16.gmra.mrb[0].mxu0 %v1061
      %v1155 = vpop.f32.mrb[0].mxu0
      %v1156 = vadd.f32 0.0, %v1155
      %v1157 = vpop.f32.mrb[0].mxu0
      %v1158 = vpop.f32.mrb[0].mxu0
      %v1159 = vadd.f32 0.0, %v1158
      %v1160 = vpop.f32.mrb[0].mxu0
      %1161 = vmatprep.mubr.bf16.mxu0 0
      %1162 = vmatmul.mubr.bf16.gmra.mrb[0].mxu0 %v1064
      %v1163 = vpop.f32.mrb[0].mxu0
      %v1164 = vadd.f32 0.0, %v1163
      %v1165 = vpop.f32.mrb[0].mxu0
      %v1166 = vpop.f32.mrb[0].mxu0
      %v1167 = vadd.f32 0.0, %v1166
      %v1168 = vpop.f32.mrb[0].mxu0
      %1169 = vmatprep.mubr.bf16.mxu0 0
      %1170 = vmatmul.mubr.bf16.gmra.mrb[0].mxu0 %v1067
      %v1171 = vpop.f32.mrb[0].mxu0
      %v1172 = vadd.f32 0.0, %v1171
      %v1173 = vpop.f32.mrb[0].mxu0
      %v1174 = vpop.f32.mrb[0].mxu0
      %v1175 = vadd.f32 0.0, %v1174
      %v1176 = vpop.f32.mrb[0].mxu0
      %1177 = vmatprep.mubr.bf16.mxu0 0
      %1178 = vmatmul.mubr.bf16.gmra.mrb[0].mxu0 %v1070
      %v1179 = vpop.f32.mrb[0].mxu0
      %v1180 = vadd.f32 0.0, %v1179
      %v1181 = vpop.f32.mrb[0].mxu0
      %v1182 = vpop.f32.mrb[0].mxu0
      %v1183 = vadd.f32 0.0, %v1182
      %v1184 = vpop.f32.mrb[0].mxu0
      %1185 = vmatprep.mubr.bf16.mxu0 0
      %1186 = vmatmul.mubr.bf16.gmra.mrb[0].mxu0 %v1073
      %v1187 = vpop.f32.mrb[0].mxu0
      %v1188 = vadd.f32 0.0, %v1187
      %v1189 = vpop.f32.mrb[0].mxu0
      %v1190 = vpop.f32.mrb[0].mxu0
      %v1191 = vadd.f32 0.0, %v1190
      %v1192 = vpop.f32.mrb[0].mxu0
      %1193 = vmatprep.mubr.bf16.mxu0 0
      %1194 = vmatmul.mubr.bf16.gmra.mrb[0].mxu0 %v1076
      %v1195 = vpop.f32.mrb[0].mxu0
      %v1196 = vadd.f32 0.0, %v1195
      %v1197 = vpop.f32.mrb[0].mxu0
      %v1198 = vpop.f32.mrb[0].mxu0
      %v1199 = vadd.f32 0.0, %v1198
      %v1200 = vpop.f32.mrb[0].mxu0
      %1201 = vmatprep.mubr.bf16.mxu0 0
      %1202 = vmatmul.mubr.bf16.gmra.mrb[0].mxu0 %v1079
      %v1203 = vpop.f32.mrb[0].mxu0
      %v1204 = vadd.f32 0.0, %v1203
      %v1205 = vpop.f32.mrb[0].mxu0
      %v1206 = vpop.f32.mrb[0].mxu0
      %v1207 = vadd.f32 0.0, %v1206
      %v1208 = vpop.f32.mrb[0].mxu0
      %1209 = vmatprep.mubr.bf16.mxu0 0
      %1210 = vmatmul.mubr.bf16.gmra.mrb[0].mxu0 %v1082
      %v1211 = vpop.f32.mrb[0].mxu0
      %v1212 = vadd.f32 0.0, %v1211
      %v1213 = vpop.f32.mrb[0].mxu0
      %v1214 = vpop.f32.mrb[0].mxu0
      %v1215 = vadd.f32 0.0, %v1214
      %v1216 = vpop.f32.mrb[0].mxu0
      %1217 = vmatprep.mubr.bf16.mxu0 0
      %1218 = vmatmul.mubr.bf16.gmra.mrb[0].mxu0 %v1085
      %v1219 = vpop.f32.mrb[0].mxu0
      %v1220 = vadd.f32 0.0, %v1219
      %v1221 = vpop.f32.mrb[0].mxu0
      %v1222 = vpop.f32.mrb[0].mxu0
      %v1223 = vadd.f32 0.0, %v1222
      %v1224 = vpop.f32.mrb[0].mxu0
      %1225 = vmatprep.mubr.bf16.mxu0 0
      %1226 = vmatmul.mubr.bf16.gmra.mrb[0].mxu0 %v1088
      %v1227 = vpop.f32.mrb[0].mxu0
      %v1228 = vadd.f32 0.0, %v1227
      %v1229 = vpop.f32.mrb[0].mxu0
      %v1230 = vpop.f32.mrb[0].mxu0
      %v1231 = vadd.f32 0.0, %v1230
      %v1232 = vpop.f32.mrb[0].mxu0
      %1233 = vmatprep.mubr.bf16.mxu0 0
      %1234 = vmatmul.mubr.bf16.gmra.mrb[0].mxu0 %v1091
      %v1235 = vpop.f32.mrb[0].mxu0
      %v1236 = vadd.f32 0.0, %v1235
      %v1237 = vpop.f32.mrb[0].mxu0
      %v1238 = vpop.f32.mrb[0].mxu0
      %v1239 = vadd.f32 0.0, %v1238
      %v1240 = vpop.f32.mrb[0].mxu0
      %1241 = vmatprep.mubr.bf16.mxu0 0
      %1242 = vmatmul.mubr.bf16.gmra.mrb[0].mxu0 %v1094
      %v1243 = vpop.f32.mrb[0].mxu0
      %v1244 = vadd.f32 0.0, %v1243
      %v1245 = vpop.f32.mrb[0].mxu0
      %v1246 = vpop.f32.mrb[0].mxu0
      %v1247 = vadd.f32 0.0, %v1246
      %v1248 = vpop.f32.mrb[0].mxu0
      %1249 = vmatprep.mubr.bf16.mxu0 0
      %1250 = vmatmul.mubr.bf16.gmra.mrb[0].mxu0 %v1097
      %v1251 = vpop.f32.mrb[0].mxu0
      %v1252 = vadd.f32 0.0, %v1251
      %v1253 = vpop.f32.mrb[0].mxu0
      %v1254 = vpop.f32.mrb[0].mxu0
      %v1255 = vadd.f32 0.0, %v1254
      %v1256 = vpop.f32.mrb[0].mxu0
      %1257 = vmatprep.mubr.bf16.mxu0 0
      %1258 = vmatmul.mubr.bf16.gmra.mrb[0].mxu0 %v1100
      %v1259 = vpop.f32.mrb[0].mxu0
      %v1260 = vadd.f32 0.0, %v1259
      %v1261 = vpop.f32.mrb[0].mxu0
      %v1262 = vpop.f32.mrb[0].mxu0
      %v1263 = vadd.f32 0.0, %v1262
      %v1264 = vpop.f32.mrb[0].mxu0
      %1265 = vdwg.mxu0
      %v1266 = vadd.f32 %v971, %v1140
      %v1267 = vadd.f32 %v972, %v1143
      %v1268 = vadd.f32 %v973, %v1148
      %v1269 = vadd.f32 %v974, %v1151
      %v1270 = vadd.f32 %v975, %v1156
      %v1271 = vadd.f32 %v976, %v1159
      %v1272 = vadd.f32 %v977, %v1164
      %v1273 = vadd.f32 %v978, %v1167
      %v1274 = vadd.f32 %v979, %v1172
      %v1275 = vadd.f32 %v980, %v1175
      %v1276 = vadd.f32 %v981, %v1180
      %v1277 = vadd.f32 %v982, %v1183
      %v1278 = vadd.f32 %v983, %v1188
      %v1279 = vadd.f32 %v984, %v1191
      %v1280 = vadd.f32 %v985, %v1196
      %v1281 = vadd.f32 %v986, %v1199
      %v1282 = vadd.f32 %v987, %v1204
      %v1283 = vadd.f32 %v988, %v1207
      %v1284 = vadd.f32 %v989, %v1212
      %v1285 = vadd.f32 %v990, %v1215
      %v1286 = vadd.f32 %v991, %v1220
      %v1287 = vadd.f32 %v992, %v1223
      %v1288 = vadd.f32 %v993, %v1228
      %v1289 = vadd.f32 %v994, %v1231
      %v1290 = vadd.f32 %v995, %v1236
      %v1291 = vadd.f32 %v996, %v1239
      %v1292 = vadd.f32 %v997, %v1244
      %v1293 = vadd.f32 %v998, %v1247
      %v1294 = vadd.f32 %v999, %v1252
      %v1295 = vadd.f32 %v1000, %v1255
      %v1296 = vadd.f32 %v1001, %v1260
      %v1297 = vadd.f32 %v1002, %v1263
      %v1298 = vld [vmem:[%s1003 + $0x1] sm:$0xff]
      %v1299 = vld [vmem:[%s1003 + $0x9] sm:$0xff]
      %v1300 = vld [vmem:[%s1003 + $0x19] sm:$0xff]
      %v1301 = vld [vmem:[%s1003 + $0x21] sm:$0xff]
      %v1302 = vld [vmem:[%s1003 + $0x31] sm:$0xff]
      %v1303 = vld [vmem:[%s1003 + $0x39] sm:$0xff]
      %v1304 = vld [vmem:[%s1003 + $0x49] sm:$0xff]
      %v1305 = vld [vmem:[%s1003 + $0x51] sm:$0xff]
      %v1306 = vld [vmem:[%s1003 + $0x61] sm:$0xff]
      %v1307 = vld [vmem:[%s1003 + $0x69] sm:$0xff]
      %v1308 = vld [vmem:[%s1003 + $0x79] sm:$0xff]
      %v1309 = vld [vmem:[%s1003 + $0x81] sm:$0xff]
      %v1310 = vld [vmem:[%s1003 + $0x91] sm:$0xff]
      %v1311 = vld [vmem:[%s1003 + $0x99] sm:$0xff]
      %v1312 = vld [vmem:[%s1003 + $0xa9] sm:$0xff]
      %v1313 = vld [vmem:[%s1003 + $0xb1] sm:$0xff]
      %v1314 = vld [vmem:[%s1003 + $0xc1] sm:$0xff]
      %v1315 = vld [vmem:[%s1003 + $0xc9] sm:$0xff]
      %v1316 = vld [vmem:[%s1003 + $0xd9] sm:$0xff]
      %v1317 = vld [vmem:[%s1003 + $0xe1] sm:$0xff]
      %v1318 = vld [vmem:[%s1003 + $0xf1] sm:$0xff]
      %v1319 = vld [vmem:[%s1003 + $0xf9] sm:$0xff]
      %v1320 = vld [vmem:[%s1003 + $0x109] sm:$0xff]
      %v1321 = vld [vmem:[%s1003 + $0x111] sm:$0xff]
      %v1322 = vld [vmem:[%s1003 + $0x121] sm:$0xff]
      %v1323 = vld [vmem:[%s1003 + $0x129] sm:$0xff]
      %v1324 = vld [vmem:[%s1003 + $0x139] sm:$0xff]
      %v1325 = vld [vmem:[%s1003 + $0x141] sm:$0xff]
      %v1326 = vld [vmem:[%s1003 + $0x151] sm:$0xff]
      %v1327 = vld [vmem:[%s1003 + $0x159] sm:$0xff]
      %v1328 = vld [vmem:[%s1003 + $0x169] sm:$0xff]
      %v1329 = vld [vmem:[%s1003 + $0x171] sm:$0xff]
      %v1330 = vpack.c.bf16 %v1299, %v1298
      %v1331 = vpack.c.bf16 %v1301, %v1300
      %v1332 = vpack.c.bf16 %v1303, %v1302
      %v1333 = vpack.c.bf16 %v1305, %v1304
      %v1334 = vpack.c.bf16 %v1307, %v1306
      %v1335 = vpack.c.bf16 %v1309, %v1308
      %v1336 = vpack.c.bf16 %v1311, %v1310
      %v1337 = vpack.c.bf16 %v1313, %v1312
      %v1338 = vpack.c.bf16 %v1315, %v1314
      %v1339 = vpack.c.bf16 %v1317, %v1316
      %v1340 = vpack.c.bf16 %v1319, %v1318
      %v1341 = vpack.c.bf16 %v1321, %v1320
      %v1342 = vpack.c.bf16 %v1323, %v1322
      %v1343 = vpack.c.bf16 %v1325, %v1324
      %v1344 = vpack.c.bf16 %v1327, %v1326
      %v1345 = vpack.c.bf16 %v1329, %v1328
      %s1346 = scalar_lea.vmem %s1, 8
      %v1347 = vld [vmem:[%s1346] sm:$0x3]
      %v1349 = vsel %vm283, %v1330, 0
      %v1352 = vsel %vm283, %v1331, 0
      %v1355 = vsel %vm283, %v1332, 0
      %v1358 = vsel %vm283, %v1333, 0
      %v1361 = vsel %vm283, %v1334, 0
      %v1364 = vsel %vm283, %v1335, 0
      %v1367 = vsel %vm283, %v1336, 0
      %v1370 = vsel %vm283, %v1337, 0
      %v1373 = vsel %vm283, %v1338, 0
      %v1376 = vsel %vm283, %v1339, 0
      %v1379 = vsel %vm283, %v1340, 0
      %v1382 = vsel %vm283, %v1341, 0
      %v1385 = vsel %vm283, %v1342, 0
      %v1388 = vsel %vm283, %v1343, 0
      %v1391 = vsel %vm283, %v1344, 0
      %v1394 = vsel %vm283, %v1345, 0
      %v1397 = vsel %vm332, %v1347, 0
      %1399 = vmatprep.subr.bf16.mxu0 0
      %1400 = vmatpush1.bf16.msra.mxu0 %v1397
      %1401 = vmatprep.subr.bf16.mxu0 0
      %1402 = vmatpush1.bf16.msra.mxu0 0
      %1403 = vmatprep.subr.bf16.mxu0 0
      %1404 = vmatpush1.bf16.msra.mxu0 0
      %1405 = vmatprep.subr.bf16.mxu0 0
      %1406 = vmatpush1.bf16.msra.mxu0 0
      %1407 = vmatprep.subr.bf16.mxu0 0
      %1408 = vmatpush1.bf16.msra.mxu0 0
      %1409 = vmatprep.subr.bf16.mxu0 0
      %1410 = vmatpush1.bf16.msra.mxu0 0
      %1411 = vmatprep.subr.bf16.mxu0 0
      %1412 = vmatpush1.bf16.msra.mxu0 0
      %1413 = vmatprep.subr.bf16.mxu0 0
      %1414 = vmatpush1.bf16.msra.mxu0 0
      %1415 = vmatprep.subr.bf16.mxu0 0
      %1416 = vmatpush1.bf16.msra.mxu0 0
      %1417 = vmatprep.subr.bf16.mxu0 0
      %1418 = vmatpush1.bf16.msra.mxu0 0
      %1419 = vmatprep.subr.bf16.mxu0 0
      %1420 = vmatpush1.bf16.msra.mxu0 0
      %1421 = vmatprep.subr.bf16.mxu0 0
      %1422 = vmatpush1.bf16.msra.mxu0 0
      %1423 = vmatprep.subr.bf16.mxu0 0
      %1424 = vmatpush1.bf16.msra.mxu0 0
      %1425 = vmatprep.subr.bf16.mxu0 0
      %1426 = vmatpush1.bf16.msra.mxu0 0
      %1427 = vmatprep.subr.bf16.mxu0 0
      %1428 = vmatpush1.bf16.msra.mxu0 0
      %1429 = vmatprep.subr.bf16.mxu0 0
      %1430 = vmatpush1.bf16.msra.mxu0 0
      %1431 = vmatprep.mubr.bf16.mxu0 0
      %1432 = vmatmul.mubr.bf16.gmra.mrb[0].mxu0 %v1349
      %v1433 = vpop.f32.mrb[0].mxu0
      %v1434 = vadd.f32 0.0, %v1433
      %v1435 = vpop.f32.mrb[0].mxu0
      %v1436 = vpop.f32.mrb[0].mxu0
      %v1437 = vadd.f32 0.0, %v1436
      %v1438 = vpop.f32.mrb[0].mxu0
      %1439 = vmatprep.mubr.bf16.mxu0 0
      %1440 = vmatmul.mubr.bf16.gmra.mrb[0].mxu0 %v1352
      %v1441 = vpop.f32.mrb[0].mxu0
      %v1442 = vadd.f32 0.0, %v1441
      %v1443 = vpop.f32.mrb[0].mxu0
      %v1444 = vpop.f32.mrb[0].mxu0
      %v1445 = vadd.f32 0.0, %v1444
      %v1446 = vpop.f32.mrb[0].mxu0
      %1447 = vmatprep.mubr.bf16.mxu0 0
      %1448 = vmatmul.mubr.bf16.gmra.mrb[0].mxu0 %v1355
      %v1449 = vpop.f32.mrb[0].mxu0
      %v1450 = vadd.f32 0.0, %v1449
      %v1451 = vpop.f32.mrb[0].mxu0
      %v1452 = vpop.f32.mrb[0].mxu0
      %v1453 = vadd.f32 0.0, %v1452
      %v1454 = vpop.f32.mrb[0].mxu0
      %1455 = vmatprep.mubr.bf16.mxu0 0
      %1456 = vmatmul.mubr.bf16.gmra.mrb[0].mxu0 %v1358
      %v1457 = vpop.f32.mrb[0].mxu0
      %v1458 = vadd.f32 0.0, %v1457
      %v1459 = vpop.f32.mrb[0].mxu0
      %v1460 = vpop.f32.mrb[0].mxu0
      %v1461 = vadd.f32 0.0, %v1460
      %v1462 = vpop.f32.mrb[0].mxu0
      %1463 = vmatprep.mubr.bf16.mxu0 0
      %1464 = vmatmul.mubr.bf16.gmra.mrb[0].mxu0 %v1361
      %v1465 = vpop.f32.mrb[0].mxu0
      %v1466 = vadd.f32 0.0, %v1465
      %v1467 = vpop.f32.mrb[0].mxu0
      %v1468 = vpop.f32.mrb[0].mxu0
      %v1469 = vadd.f32 0.0, %v1468
      %v1470 = vpop.f32.mrb[0].mxu0
      %1471 = vmatprep.mubr.bf16.mxu0 0
      %1472 = vmatmul.mubr.bf16.gmra.mrb[0].mxu0 %v1364
      %v1473 = vpop.f32.mrb[0].mxu0
      %v1474 = vadd.f32 0.0, %v1473
      %v1475 = vpop.f32.mrb[0].mxu0
      %v1476 = vpop.f32.mrb[0].mxu0
      %v1477 = vadd.f32 0.0, %v1476
      %v1478 = vpop.f32.mrb[0].mxu0
      %1479 = vmatprep.mubr.bf16.mxu0 0
      %1480 = vmatmul.mubr.bf16.gmra.mrb[0].mxu0 %v1367
      %v1481 = vpop.f32.mrb[0].mxu0
      %v1482 = vadd.f32 0.0, %v1481
      %v1483 = vpop.f32.mrb[0].mxu0
      %v1484 = vpop.f32.mrb[0].mxu0
      %v1485 = vadd.f32 0.0, %v1484
      %v1486 = vpop.f32.mrb[0].mxu0
      %1487 = vmatprep.mubr.bf16.mxu0 0
      %1488 = vmatmul.mubr.bf16.gmra.mrb[0].mxu0 %v1370
      %v1489 = vpop.f32.mrb[0].mxu0
      %v1490 = vadd.f32 0.0, %v1489
      %v1491 = vpop.f32.mrb[0].mxu0
      %v1492 = vpop.f32.mrb[0].mxu0
      %v1493 = vadd.f32 0.0, %v1492
      %v1494 = vpop.f32.mrb[0].mxu0
      %1495 = vmatprep.mubr.bf16.mxu0 0
      %1496 = vmatmul.mubr.bf16.gmra.mrb[0].mxu0 %v1373
      %v1497 = vpop.f32.mrb[0].mxu0
      %v1498 = vadd.f32 0.0, %v1497
      %v1499 = vpop.f32.mrb[0].mxu0
      %v1500 = vpop.f32.mrb[0].mxu0
      %v1501 = vadd.f32 0.0, %v1500
      %v1502 = vpop.f32.mrb[0].mxu0
      %1503 = vmatprep.mubr.bf16.mxu0 0
      %1504 = vmatmul.mubr.bf16.gmra.mrb[0].mxu0 %v1376
      %v1505 = vpop.f32.mrb[0].mxu0
      %v1506 = vadd.f32 0.0, %v1505
      %v1507 = vpop.f32.mrb[0].mxu0
      %v1508 = vpop.f32.mrb[0].mxu0
      %v1509 = vadd.f32 0.0, %v1508
      %v1510 = vpop.f32.mrb[0].mxu0
      %1511 = vmatprep.mubr.bf16.mxu0 0
      %1512 = vmatmul.mubr.bf16.gmra.mrb[0].mxu0 %v1379
      %v1513 = vpop.f32.mrb[0].mxu0
      %v1514 = vadd.f32 0.0, %v1513
      %v1515 = vpop.f32.mrb[0].mxu0
      %v1516 = vpop.f32.mrb[0].mxu0
      %v1517 = vadd.f32 0.0, %v1516
      %v1518 = vpop.f32.mrb[0].mxu0
      %1519 = vmatprep.mubr.bf16.mxu0 0
      %1520 = vmatmul.mubr.bf16.gmra.mrb[0].mxu0 %v1382
      %v1521 = vpop.f32.mrb[0].mxu0
      %v1522 = vadd.f32 0.0, %v1521
      %v1523 = vpop.f32.mrb[0].mxu0
      %v1524 = vpop.f32.mrb[0].mxu0
      %v1525 = vadd.f32 0.0, %v1524
      %v1526 = vpop.f32.mrb[0].mxu0
      %1527 = vmatprep.mubr.bf16.mxu0 0
      %1528 = vmatmul.mubr.bf16.gmra.mrb[0].mxu0 %v1385
      %v1529 = vpop.f32.mrb[0].mxu0
      %v1530 = vadd.f32 0.0, %v1529
      %v1531 = vpop.f32.mrb[0].mxu0
      %v1532 = vpop.f32.mrb[0].mxu0
      %v1533 = vadd.f32 0.0, %v1532
      %v1534 = vpop.f32.mrb[0].mxu0
      %1535 = vmatprep.mubr.bf16.mxu0 0
      %1536 = vmatmul.mubr.bf16.gmra.mrb[0].mxu0 %v1388
      %v1537 = vpop.f32.mrb[0].mxu0
      %v1538 = vadd.f32 0.0, %v1537
      %v1539 = vpop.f32.mrb[0].mxu0
      %v1540 = vpop.f32.mrb[0].mxu0
      %v1541 = vadd.f32 0.0, %v1540
      %v1542 = vpop.f32.mrb[0].mxu0
      %1543 = vmatprep.mubr.bf16.mxu0 0
      %1544 = vmatmul.mubr.bf16.gmra.mrb[0].mxu0 %v1391
      %v1545 = vpop.f32.mrb[0].mxu0
      %v1546 = vadd.f32 0.0, %v1545
      %v1547 = vpop.f32.mrb[0].mxu0
      %v1548 = vpop.f32.mrb[0].mxu0
      %v1549 = vadd.f32 0.0, %v1548
      %v1550 = vpop.f32.mrb[0].mxu0
      %1551 = vmatprep.mubr.bf16.mxu0 0
      %1552 = vmatmul.mubr.bf16.gmra.mrb[0].mxu0 %v1394
      %v1553 = vpop.f32.mrb[0].mxu0
      %v1554 = vadd.f32 0.0, %v1553
      %v1555 = vpop.f32.mrb[0].mxu0
      %v1556 = vpop.f32.mrb[0].mxu0
      %v1557 = vadd.f32 0.0, %v1556
      %v1558 = vpop.f32.mrb[0].mxu0
      %1559 = vdwg.mxu0
      %v1560 = vadd.f32 %v1266, %v1434
      %v1561 = vadd.f32 %v1267, %v1437
      %v1562 = vadd.f32 %v1268, %v1442
      %v1563 = vadd.f32 %v1269, %v1445
      %v1564 = vadd.f32 %v1270, %v1450
      %v1565 = vadd.f32 %v1271, %v1453
      %v1566 = vadd.f32 %v1272, %v1458
      %v1567 = vadd.f32 %v1273, %v1461
      %v1568 = vadd.f32 %v1274, %v1466
      %v1569 = vadd.f32 %v1275, %v1469
      %v1570 = vadd.f32 %v1276, %v1474
      %v1571 = vadd.f32 %v1277, %v1477
      %v1572 = vadd.f32 %v1278, %v1482
      %v1573 = vadd.f32 %v1279, %v1485
      %v1574 = vadd.f32 %v1280, %v1490
      %v1575 = vadd.f32 %v1281, %v1493
      %v1576 = vadd.f32 %v1282, %v1498
      %v1577 = vadd.f32 %v1283, %v1501
      %v1578 = vadd.f32 %v1284, %v1506
      %v1579 = vadd.f32 %v1285, %v1509
      %v1580 = vadd.f32 %v1286, %v1514
      %v1581 = vadd.f32 %v1287, %v1517
      %v1582 = vadd.f32 %v1288, %v1522
      %v1583 = vadd.f32 %v1289, %v1525
      %v1584 = vadd.f32 %v1290, %v1530
      %v1585 = vadd.f32 %v1291, %v1533
      %v1586 = vadd.f32 %v1292, %v1538
      %v1587 = vadd.f32 %v1293, %v1541
      %v1588 = vadd.f32 %v1294, %v1546
      %v1589 = vadd.f32 %v1295, %v1549
      %v1590 = vadd.f32 %v1296, %v1554
      %v1591 = vadd.f32 %v1297, %v1557
      %v1592 = vld [vmem:[%s1003 + $0x2] sm:$0xff]
      %v1593 = vld [vmem:[%s1003 + $0xa] sm:$0xff]
      %v1594 = vld [vmem:[%s1003 + $0x1a] sm:$0xff]
      %v1595 = vld [vmem:[%s1003 + $0x22] sm:$0xff]
      %v1596 = vld [vmem:[%s1003 + $0x32] sm:$0xff]
      %v1597 = vld [vmem:[%s1003 + $0x3a] sm:$0xff]
      %v1598 = vld [vmem:[%s1003 + $0x4a] sm:$0xff]
      %v1599 = vld [vmem:[%s1003 + $0x52] sm:$0xff]
      %v1600 = vld [vmem:[%s1003 + $0x62] sm:$0xff]
      %v1601 = vld [vmem:[%s1003 + $0x6a] sm:$0xff]
      %v1602 = vld [vmem:[%s1003 + $0x7a] sm:$0xff]
      %v1603 = vld [vmem:[%s1003 + $0x82] sm:$0xff]
      %v1604 = vld [vmem:[%s1003 + $0x92] sm:$0xff]
      %v1605 = vld [vmem:[%s1003 + $0x9a] sm:$0xff]
      %v1606 = vld [vmem:[%s1003 + $0xaa] sm:$0xff]
      %v1607 = vld [vmem:[%s1003 + $0xb2] sm:$0xff]
      %v1608 = vld [vmem:[%s1003 + $0xc2] sm:$0xff]
      %v1609 = vld [vmem:[%s1003 + $0xca] sm:$0xff]
      %v1610 = vld [vmem:[%s1003 + $0xda] sm:$0xff]
      %v1611 = vld [vmem:[%s1003 + $0xe2] sm:$0xff]
      %v1612 = vld [vmem:[%s1003 + $0xf2] sm:$0xff]
      %v1613 = vld [vmem:[%s1003 + $0xfa] sm:$0xff]
      %v1614 = vld [vmem:[%s1003 + $0x10a] sm:$0xff]
      %v1615 = vld [vmem:[%s1003 + $0x112] sm:$0xff]
      %v1616 = vld [vmem:[%s1003 + $0x122] sm:$0xff]
      %v1617 = vld [vmem:[%s1003 + $0x12a] sm:$0xff]
      %v1618 = vld [vmem:[%s1003 + $0x13a] sm:$0xff]
      %v1619 = vld [vmem:[%s1003 + $0x142] sm:$0xff]
      %v1620 = vld [vmem:[%s1003 + $0x152] sm:$0xff]
      %v1621 = vld [vmem:[%s1003 + $0x15a] sm:$0xff]
      %v1622 = vld [vmem:[%s1003 + $0x16a] sm:$0xff]
      %v1623 = vld [vmem:[%s1003 + $0x172] sm:$0xff]
      %v1624 = vpack.c.bf16 %v1593, %v1592
      %v1625 = vpack.c.bf16 %v1595, %v1594
      %v1626 = vpack.c.bf16 %v1597, %v1596
      %v1627 = vpack.c.bf16 %v1599, %v1598
      %v1628 = vpack.c.bf16 %v1601, %v1600
      %v1629 = vpack.c.bf16 %v1603, %v1602
      %v1630 = vpack.c.bf16 %v1605, %v1604
      %v1631 = vpack.c.bf16 %v1607, %v1606
      %v1632 = vpack.c.bf16 %v1609, %v1608
      %v1633 = vpack.c.bf16 %v1611, %v1610
      %v1634 = vpack.c.bf16 %v1613, %v1612
      %v1635 = vpack.c.bf16 %v1615, %v1614
      %v1636 = vpack.c.bf16 %v1617, %v1616
      %v1637 = vpack.c.bf16 %v1619, %v1618
      %v1638 = vpack.c.bf16 %v1621, %v1620
      %v1639 = vpack.c.bf16 %v1623, %v1622
      %s1640 = scalar_lea.vmem %s1, 10
      %v1641 = vld [vmem:[%s1640] sm:$0x3]
      %v1643 = vsel %vm283, %v1624, 0
      %v1646 = vsel %vm283, %v1625, 0
      %v1649 = vsel %vm283, %v1626, 0
      %v1652 = vsel %vm283, %v1627, 0
      %v1655 = vsel %vm283, %v1628, 0
      %v1658 = vsel %vm283, %v1629, 0
      %v1661 = vsel %vm283, %v1630, 0
      %v1664 = vsel %vm283, %v1631, 0
      %v1667 = vsel %vm283, %v1632, 0
      %v1670 = vsel %vm283, %v1633, 0
      %v1673 = vsel %vm283, %v1634, 0
      %v1676 = vsel %vm283, %v1635, 0
      %v1679 = vsel %vm283, %v1636, 0
      %v1682 = vsel %vm283, %v1637, 0
      %v1685 = vsel %vm283, %v1638, 0
      %v1688 = vsel %vm283, %v1639, 0
      %v1691 = vsel %vm332, %v1641, 0
      %1693 = vmatprep.subr.bf16.mxu0 0
      %1694 = vmatpush1.bf16.msra.mxu0 %v1691
      %1695 = vmatprep.subr.bf16.mxu0 0
      %1696 = vmatpush1.bf16.msra.mxu0 0
      %1697 = vmatprep.subr.bf16.mxu0 0
      %1698 = vmatpush1.bf16.msra.mxu0 0
      %1699 = vmatprep.subr.bf16.mxu0 0
      %1700 = vmatpush1.bf16.msra.mxu0 0
      %1701 = vmatprep.subr.bf16.mxu0 0
      %1702 = vmatpush1.bf16.msra.mxu0 0
      %1703 = vmatprep.subr.bf16.mxu0 0
      %1704 = vmatpush1.bf16.msra.mxu0 0
      %1705 = vmatprep.subr.bf16.mxu0 0
      %1706 = vmatpush1.bf16.msra.mxu0 0
      %1707 = vmatprep.subr.bf16.mxu0 0
      %1708 = vmatpush1.bf16.msra.mxu0 0
      %1709 = vmatprep.subr.bf16.mxu0 0
      %1710 = vmatpush1.bf16.msra.mxu0 0
      %1711 = vmatprep.subr.bf16.mxu0 0
      %1712 = vmatpush1.bf16.msra.mxu0 0
      %1713 = vmatprep.subr.bf16.mxu0 0
      %1714 = vmatpush1.bf16.msra.mxu0 0
      %1715 = vmatprep.subr.bf16.mxu0 0
      %1716 = vmatpush1.bf16.msra.mxu0 0
      %1717 = vmatprep.subr.bf16.mxu0 0
      %1718 = vmatpush1.bf16.msra.mxu0 0
      %1719 = vmatprep.subr.bf16.mxu0 0
      %1720 = vmatpush1.bf16.msra.mxu0 0
      %1721 = vmatprep.subr.bf16.mxu0 0
      %1722 = vmatpush1.bf16.msra.mxu0 0
      %1723 = vmatprep.subr.bf16.mxu0 0
      %1724 = vmatpush1.bf16.msra.mxu0 0
      %1725 = vmatprep.mubr.bf16.mxu0 0
      %1726 = vmatmul.mubr.bf16.gmra.mrb[0].mxu0 %v1643
      %v1727 = vpop.f32.mrb[0].mxu0
      %v1728 = vadd.f32 0.0, %v1727
      %v1729 = vpop.f32.mrb[0].mxu0
      %v1730 = vpop.f32.mrb[0].mxu0
      %v1731 = vadd.f32 0.0, %v1730
      %v1732 = vpop.f32.mrb[0].mxu0
      %1733 = vmatprep.mubr.bf16.mxu0 0
      %1734 = vmatmul.mubr.bf16.gmra.mrb[0].mxu0 %v1646
      %v1735 = vpop.f32.mrb[0].mxu0
      %v1736 = vadd.f32 0.0, %v1735
      %v1737 = vpop.f32.mrb[0].mxu0
      %v1738 = vpop.f32.mrb[0].mxu0
      %v1739 = vadd.f32 0.0, %v1738
      %v1740 = vpop.f32.mrb[0].mxu0
      %1741 = vmatprep.mubr.bf16.mxu0 0
      %1742 = vmatmul.mubr.bf16.gmra.mrb[0].mxu0 %v1649
      %v1743 = vpop.f32.mrb[0].mxu0
      %v1744 = vadd.f32 0.0, %v1743
      %v1745 = vpop.f32.mrb[0].mxu0
      %v1746 = vpop.f32.mrb[0].mxu0
      %v1747 = vadd.f32 0.0, %v1746
      %v1748 = vpop.f32.mrb[0].mxu0
      %1749 = vmatprep.mubr.bf16.mxu0 0
      %1750 = vmatmul.mubr.bf16.gmra.mrb[0].mxu0 %v1652
      %v1751 = vpop.f32.mrb[0].mxu0
      %v1752 = vadd.f32 0.0, %v1751
      %v1753 = vpop.f32.mrb[0].mxu0
      %v1754 = vpop.f32.mrb[0].mxu0
      %v1755 = vadd.f32 0.0, %v1754
      %v1756 = vpop.f32.mrb[0].mxu0
      %1757 = vmatprep.mubr.bf16.mxu0 0
      %1758 = vmatmul.mubr.bf16.gmra.mrb[0].mxu0 %v1655
      %v1759 = vpop.f32.mrb[0].mxu0
      %v1760 = vadd.f32 0.0, %v1759
      %v1761 = vpop.f32.mrb[0].mxu0
      %v1762 = vpop.f32.mrb[0].mxu0
      %v1763 = vadd.f32 0.0, %v1762
      %v1764 = vpop.f32.mrb[0].mxu0
      %1765 = vmatprep.mubr.bf16.mxu0 0
      %1766 = vmatmul.mubr.bf16.gmra.mrb[0].mxu0 %v1658
      %v1767 = vpop.f32.mrb[0].mxu0
      %v1768 = vadd.f32 0.0, %v1767
      %v1769 = vpop.f32.mrb[0].mxu0
      %v1770 = vpop.f32.mrb[0].mxu0
      %v1771 = vadd.f32 0.0, %v1770
      %v1772 = vpop.f32.mrb[0].mxu0
      %1773 = vmatprep.mubr.bf16.mxu0 0
      %1774 = vmatmul.mubr.bf16.gmra.mrb[0].mxu0 %v1661
      %v1775 = vpop.f32.mrb[0].mxu0
      %v1776 = vadd.f32 0.0, %v1775
      %v1777 = vpop.f32.mrb[0].mxu0
      %v1778 = vpop.f32.mrb[0].mxu0
      %v1779 = vadd.f32 0.0, %v1778
      %v1780 = vpop.f32.mrb[0].mxu0
      %1781 = vmatprep.mubr.bf16.mxu0 0
      %1782 = vmatmul.mubr.bf16.gmra.mrb[0].mxu0 %v1664
      %v1783 = vpop.f32.mrb[0].mxu0
      %v1784 = vadd.f32 0.0, %v1783
      %v1785 = vpop.f32.mrb[0].mxu0
      %v1786 = vpop.f32.mrb[0].mxu0
      %v1787 = vadd.f32 0.0, %v1786
      %v1788 = vpop.f32.mrb[0].mxu0
      %1789 = vmatprep.mubr.bf16.mxu0 0
      %1790 = vmatmul.mubr.bf16.gmra.mrb[0].mxu0 %v1667
      %v1791 = vpop.f32.mrb[0].mxu0
      %v1792 = vadd.f32 0.0, %v1791
      %v1793 = vpop.f32.mrb[0].mxu0
      %v1794 = vpop.f32.mrb[0].mxu0
      %v1795 = vadd.f32 0.0, %v1794
      %v1796 = vpop.f32.mrb[0].mxu0
      %1797 = vmatprep.mubr.bf16.mxu0 0
      %1798 = vmatmul.mubr.bf16.gmra.mrb[0].mxu0 %v1670
      %v1799 = vpop.f32.mrb[0].mxu0
      %v1800 = vadd.f32 0.0, %v1799
      %v1801 = vpop.f32.mrb[0].mxu0
      %v1802 = vpop.f32.mrb[0].mxu0
      %v1803 = vadd.f32 0.0, %v1802
      %v1804 = vpop.f32.mrb[0].mxu0
      %1805 = vmatprep.mubr.bf16.mxu0 0
      %1806 = vmatmul.mubr.bf16.gmra.mrb[0].mxu0 %v1673
      %v1807 = vpop.f32.mrb[0].mxu0
      %v1808 = vadd.f32 0.0, %v1807
      %v1809 = vpop.f32.mrb[0].mxu0
      %v1810 = vpop.f32.mrb[0].mxu0
      %v1811 = vadd.f32 0.0, %v1810
      %v1812 = vpop.f32.mrb[0].mxu0
      %1813 = vmatprep.mubr.bf16.mxu0 0
      %1814 = vmatmul.mubr.bf16.gmra.mrb[0].mxu0 %v1676
      %v1815 = vpop.f32.mrb[0].mxu0
      %v1816 = vadd.f32 0.0, %v1815
      %v1817 = vpop.f32.mrb[0].mxu0
      %v1818 = vpop.f32.mrb[0].mxu0
      %v1819 = vadd.f32 0.0, %v1818
      %v1820 = vpop.f32.mrb[0].mxu0
      %1821 = vmatprep.mubr.bf16.mxu0 0
      %1822 = vmatmul.mubr.bf16.gmra.mrb[0].mxu0 %v1679
      %v1823 = vpop.f32.mrb[0].mxu0
      %v1824 = vadd.f32 0.0, %v1823
      %v1825 = vpop.f32.mrb[0].mxu0
      %v1826 = vpop.f32.mrb[0].mxu0
      %v1827 = vadd.f32 0.0, %v1826
      %v1828 = vpop.f32.mrb[0].mxu0
      %1829 = vmatprep.mubr.bf16.mxu0 0
      %1830 = vmatmul.mubr.bf16.gmra.mrb[0].mxu0 %v1682
      %v1831 = vpop.f32.mrb[0].mxu0
      %v1832 = vadd.f32 0.0, %v1831
      %v1833 = vpop.f32.mrb[0].mxu0
      %v1834 = vpop.f32.mrb[0].mxu0
      %v1835 = vadd.f32 0.0, %v1834
      %v1836 = vpop.f32.mrb[0].mxu0
      %1837 = vmatprep.mubr.bf16.mxu0 0
      %1838 = vmatmul.mubr.bf16.gmra.mrb[0].mxu0 %v1685
      %v1839 = vpop.f32.mrb[0].mxu0
      %v1840 = vadd.f32 0.0, %v1839
      %v1841 = vpop.f32.mrb[0].mxu0
      %v1842 = vpop.f32.mrb[0].mxu0
      %v1843 = vadd.f32 0.0, %v1842
      %v1844 = vpop.f32.mrb[0].mxu0
      %1845 = vmatprep.mubr.bf16.mxu0 0
      %1846 = vmatmul.mubr.bf16.gmra.mrb[0].mxu0 %v1688
      %v1847 = vpop.f32.mrb[0].mxu0
      %v1848 = vadd.f32 0.0, %v1847
      %v1849 = vpop.f32.mrb[0].mxu0
      %v1850 = vpop.f32.mrb[0].mxu0
      %v1851 = vadd.f32 0.0, %v1850
      %v1852 = vpop.f32.mrb[0].mxu0
      %1853 = vdwg.mxu0
      %v1854 = vadd.f32 %v1560, %v1728
      %v1855 = vadd.f32 %v1561, %v1731
      %v1856 = vadd.f32 %v1562, %v1736
      %v1857 = vadd.f32 %v1563, %v1739
      %v1858 = vadd.f32 %v1564, %v1744
      %v1859 = vadd.f32 %v1565, %v1747
      %v1860 = vadd.f32 %v1566, %v1752
      %v1861 = vadd.f32 %v1567, %v1755
      %v1862 = vadd.f32 %v1568, %v1760
      %v1863 = vadd.f32 %v1569, %v1763
      %v1864 = vadd.f32 %v1570, %v1768
      %v1865 = vadd.f32 %v1571, %v1771
      %v1866 = vadd.f32 %v1572, %v1776
      %v1867 = vadd.f32 %v1573, %v1779
      %v1868 = vadd.f32 %v1574, %v1784
      %v1869 = vadd.f32 %v1575, %v1787
      %v1870 = vadd.f32 %v1576, %v1792
      %v1871 = vadd.f32 %v1577, %v1795
      %v1872 = vadd.f32 %v1578, %v1800
      %v1873 = vadd.f32 %v1579, %v1803
      %v1874 = vadd.f32 %v1580, %v1808
      %v1875 = vadd.f32 %v1581, %v1811
      %v1876 = vadd.f32 %v1582, %v1816
      %v1877 = vadd.f32 %v1583, %v1819
      %v1878 = vadd.f32 %v1584, %v1824
      %v1879 = vadd.f32 %v1585, %v1827
      %v1880 = vadd.f32 %v1586, %v1832
      %v1881 = vadd.f32 %v1587, %v1835
      %v1882 = vadd.f32 %v1588, %v1840
      %v1883 = vadd.f32 %v1589, %v1843
      %v1884 = vadd.f32 %v1590, %v1848
      %v1885 = vadd.f32 %v1591, %v1851
      %s1886 = scalar_lea.vmem %s172, 48
      %v1887 = vld [vmem:[%s1886] sm:$0xff]
      %v1888 = vld [vmem:[%s1886 + $0x8] sm:$0xff]
      %v1889 = vld [vmem:[%s1886 + $0x18] sm:$0xff]
      %v1890 = vld [vmem:[%s1886 + $0x20] sm:$0xff]
      %v1891 = vld [vmem:[%s1886 + $0x30] sm:$0xff]
      %v1892 = vld [vmem:[%s1886 + $0x38] sm:$0xff]
      %v1893 = vld [vmem:[%s1886 + $0x48] sm:$0xff]
      %v1894 = vld [vmem:[%s1886 + $0x50] sm:$0xff]
      %v1895 = vld [vmem:[%s1886 + $0x60] sm:$0xff]
      %v1896 = vld [vmem:[%s1886 + $0x68] sm:$0xff]
      %v1897 = vld [vmem:[%s1886 + $0x78] sm:$0xff]
      %v1898 = vld [vmem:[%s1886 + $0x80] sm:$0xff]
      %v1899 = vld [vmem:[%s1886 + $0x90] sm:$0xff]
      %v1900 = vld [vmem:[%s1886 + $0x98] sm:$0xff]
      %v1901 = vld [vmem:[%s1886 + $0xa8] sm:$0xff]
      %v1902 = vld [vmem:[%s1886 + $0xb0] sm:$0xff]
      %v1903 = vld [vmem:[%s1886 + $0xc0] sm:$0xff]
      %v1904 = vld [vmem:[%s1886 + $0xc8] sm:$0xff]
      %v1905 = vld [vmem:[%s1886 + $0xd8] sm:$0xff]
      %v1906 = vld [vmem:[%s1886 + $0xe0] sm:$0xff]
      %v1907 = vld [vmem:[%s1886 + $0xf0] sm:$0xff]
      %v1908 = vld [vmem:[%s1886 + $0xf8] sm:$0xff]
      %v1909 = vld [vmem:[%s1886 + $0x108] sm:$0xff]
      %v1910 = vld [vmem:[%s1886 + $0x110] sm:$0xff]
      %v1911 = vld [vmem:[%s1886 + $0x120] sm:$0xff]
      %v1912 = vld [vmem:[%s1886 + $0x128] sm:$0xff]
      %v1913 = vld [vmem:[%s1886 + $0x138] sm:$0xff]
      %v1914 = vld [vmem:[%s1886 + $0x140] sm:$0xff]
      %v1915 = vld [vmem:[%s1886 + $0x150] sm:$0xff]
      %v1916 = vld [vmem:[%s1886 + $0x158] sm:$0xff]
      %v1917 = vld [vmem:[%s1886 + $0x168] sm:$0xff]
      %v1918 = vld [vmem:[%s1886 + $0x170] sm:$0xff]
      %v1919 = vpack.c.bf16 %v1888, %v1887
      %v1920 = vpack.c.bf16 %v1890, %v1889
      %v1921 = vpack.c.bf16 %v1892, %v1891
      %v1922 = vpack.c.bf16 %v1894, %v1893
      %v1923 = vpack.c.bf16 %v1896, %v1895
      %v1924 = vpack.c.bf16 %v1898, %v1897
      %v1925 = vpack.c.bf16 %v1900, %v1899
      %v1926 = vpack.c.bf16 %v1902, %v1901
      %v1927 = vpack.c.bf16 %v1904, %v1903
      %v1928 = vpack.c.bf16 %v1906, %v1905
      %v1929 = vpack.c.bf16 %v1908, %v1907
      %v1930 = vpack.c.bf16 %v1910, %v1909
      %v1931 = vpack.c.bf16 %v1912, %v1911
      %v1932 = vpack.c.bf16 %v1914, %v1913
      %v1933 = vpack.c.bf16 %v1916, %v1915
      %v1934 = vpack.c.bf16 %v1918, %v1917
      %s1935 = scalar_lea.vmem %s1, 12
      %v1936 = vld [vmem:[%s1935] sm:$0x3]
      %v1938 = vsel %vm283, %v1919, 0
      %v1941 = vsel %vm283, %v1920, 0
      %v1944 = vsel %vm283, %v1921, 0
      %v1947 = vsel %vm283, %v1922, 0
      %v1950 = vsel %vm283, %v1923, 0
      %v1953 = vsel %vm283, %v1924, 0
      %v1956 = vsel %vm283, %v1925, 0
      %v1959 = vsel %vm283, %v1926, 0
      %v1962 = vsel %vm283, %v1927, 0
      %v1965 = vsel %vm283, %v1928, 0
      %v1968 = vsel %vm283, %v1929, 0
      %v1971 = vsel %vm283, %v1930, 0
      %v1974 = vsel %vm283, %v1931, 0
      %v1977 = vsel %vm283, %v1932, 0
      %v1980 = vsel %vm283, %v1933, 0
      %v1983 = vsel %vm283, %v1934, 0
      %v1986 = vsel %vm332, %v1936, 0
      %1988 = vmatprep.subr.bf16.mxu0 0
      %1989 = vmatpush1.bf16.msra.mxu0 %v1986
      %1990 = vmatprep.subr.bf16.mxu0 0
      %1991 = vmatpush1.bf16.msra.mxu0 0
      %1992 = vmatprep.subr.bf16.mxu0 0
      %1993 = vmatpush1.bf16.msra.mxu0 0
      %1994 = vmatprep.subr.bf16.mxu0 0
      %1995 = vmatpush1.bf16.msra.mxu0 0
      %1996 = vmatprep.subr.bf16.mxu0 0
      %1997 = vmatpush1.bf16.msra.mxu0 0
      %1998 = vmatprep.subr.bf16.mxu0 0
      %1999 = vmatpush1.bf16.msra.mxu0 0
      %2000 = vmatprep.subr.bf16.mxu0 0
      %2001 = vmatpush1.bf16.msra.mxu0 0
      %2002 = vmatprep.subr.bf16.mxu0 0
      %2003 = vmatpush1.bf16.msra.mxu0 0
      %2004 = vmatprep.subr.bf16.mxu0 0
      %2005 = vmatpush1.bf16.msra.mxu0 0
      %2006 = vmatprep.subr.bf16.mxu0 0
      %2007 = vmatpush1.bf16.msra.mxu0 0
      %2008 = vmatprep.subr.bf16.mxu0 0
      %2009 = vmatpush1.bf16.msra.mxu0 0
      %2010 = vmatprep.subr.bf16.mxu0 0
      %2011 = vmatpush1.bf16.msra.mxu0 0
      %2012 = vmatprep.subr.bf16.mxu0 0
      %2013 = vmatpush1.bf16.msra.mxu0 0
      %2014 = vmatprep.subr.bf16.mxu0 0
      %2015 = vmatpush1.bf16.msra.mxu0 0
      %2016 = vmatprep.subr.bf16.mxu0 0
      %2017 = vmatpush1.bf16.msra.mxu0 0
      %2018 = vmatprep.subr.bf16.mxu0 0
      %2019 = vmatpush1.bf16.msra.mxu0 0
      %2020 = vmatprep.mubr.bf16.mxu0 0
      %2021 = vmatmul.mubr.bf16.gmra.mrb[0].mxu0 %v1938
      %v2022 = vpop.f32.mrb[0].mxu0
      %v2023 = vadd.f32 0.0, %v2022
      %v2024 = vpop.f32.mrb[0].mxu0
      %v2025 = vpop.f32.mrb[0].mxu0
      %v2026 = vadd.f32 0.0, %v2025
      %v2027 = vpop.f32.mrb[0].mxu0
      %2028 = vmatprep.mubr.bf16.mxu0 0
      %2029 = vmatmul.mubr.bf16.gmra.mrb[0].mxu0 %v1941
      %v2030 = vpop.f32.mrb[0].mxu0
      %v2031 = vadd.f32 0.0, %v2030
      %v2032 = vpop.f32.mrb[0].mxu0
      %v2033 = vpop.f32.mrb[0].mxu0
      %v2034 = vadd.f32 0.0, %v2033
      %v2035 = vpop.f32.mrb[0].mxu0
      %2036 = vmatprep.mubr.bf16.mxu0 0
      %2037 = vmatmul.mubr.bf16.gmra.mrb[0].mxu0 %v1944
      %v2038 = vpop.f32.mrb[0].mxu0
      %v2039 = vadd.f32 0.0, %v2038
      %v2040 = vpop.f32.mrb[0].mxu0
      %v2041 = vpop.f32.mrb[0].mxu0
      %v2042 = vadd.f32 0.0, %v2041
      %v2043 = vpop.f32.mrb[0].mxu0
      %2044 = vmatprep.mubr.bf16.mxu0 0
      %2045 = vmatmul.mubr.bf16.gmra.mrb[0].mxu0 %v1947
      %v2046 = vpop.f32.mrb[0].mxu0
      %v2047 = vadd.f32 0.0, %v2046
      %v2048 = vpop.f32.mrb[0].mxu0
      %v2049 = vpop.f32.mrb[0].mxu0
      %v2050 = vadd.f32 0.0, %v2049
      %v2051 = vpop.f32.mrb[0].mxu0
      %2052 = vmatprep.mubr.bf16.mxu0 0
      %2053 = vmatmul.mubr.bf16.gmra.mrb[0].mxu0 %v1950
      %v2054 = vpop.f32.mrb[0].mxu0
      %v2055 = vadd.f32 0.0, %v2054
      %v2056 = vpop.f32.mrb[0].mxu0
      %v2057 = vpop.f32.mrb[0].mxu0
      %v2058 = vadd.f32 0.0, %v2057
      %v2059 = vpop.f32.mrb[0].mxu0
      %2060 = vmatprep.mubr.bf16.mxu0 0
      %2061 = vmatmul.mubr.bf16.gmra.mrb[0].mxu0 %v1953
      %v2062 = vpop.f32.mrb[0].mxu0
      %v2063 = vadd.f32 0.0, %v2062
      %v2064 = vpop.f32.mrb[0].mxu0
      %v2065 = vpop.f32.mrb[0].mxu0
      %v2066 = vadd.f32 0.0, %v2065
      %v2067 = vpop.f32.mrb[0].mxu0
      %2068 = vmatprep.mubr.bf16.mxu0 0
      %2069 = vmatmul.mubr.bf16.gmra.mrb[0].mxu0 %v1956
      %v2070 = vpop.f32.mrb[0].mxu0
      %v2071 = vadd.f32 0.0, %v2070
      %v2072 = vpop.f32.mrb[0].mxu0
      %v2073 = vpop.f32.mrb[0].mxu0
      %v2074 = vadd.f32 0.0, %v2073
      %v2075 = vpop.f32.mrb[0].mxu0
      %2076 = vmatprep.mubr.bf16.mxu0 0
      %2077 = vmatmul.mubr.bf16.gmra.mrb[0].mxu0 %v1959
      %v2078 = vpop.f32.mrb[0].mxu0
      %v2079 = vadd.f32 0.0, %v2078
      %v2080 = vpop.f32.mrb[0].mxu0
      %v2081 = vpop.f32.mrb[0].mxu0
      %v2082 = vadd.f32 0.0, %v2081
      %v2083 = vpop.f32.mrb[0].mxu0
      %2084 = vmatprep.mubr.bf16.mxu0 0
      %2085 = vmatmul.mubr.bf16.gmra.mrb[0].mxu0 %v1962
      %v2086 = vpop.f32.mrb[0].mxu0
      %v2087 = vadd.f32 0.0, %v2086
      %v2088 = vpop.f32.mrb[0].mxu0
      %v2089 = vpop.f32.mrb[0].mxu0
      %v2090 = vadd.f32 0.0, %v2089
      %v2091 = vpop.f32.mrb[0].mxu0
      %2092 = vmatprep.mubr.bf16.mxu0 0
      %2093 = vmatmul.mubr.bf16.gmra.mrb[0].mxu0 %v1965
      %v2094 = vpop.f32.mrb[0].mxu0
      %v2095 = vadd.f32 0.0, %v2094
      %v2096 = vpop.f32.mrb[0].mxu0
      %v2097 = vpop.f32.mrb[0].mxu0
      %v2098 = vadd.f32 0.0, %v2097
      %v2099 = vpop.f32.mrb[0].mxu0
      %2100 = vmatprep.mubr.bf16.mxu0 0
      %2101 = vmatmul.mubr.bf16.gmra.mrb[0].mxu0 %v1968
      %v2102 = vpop.f32.mrb[0].mxu0
      %v2103 = vadd.f32 0.0, %v2102
      %v2104 = vpop.f32.mrb[0].mxu0
      %v2105 = vpop.f32.mrb[0].mxu0
      %v2106 = vadd.f32 0.0, %v2105
      %v2107 = vpop.f32.mrb[0].mxu0
      %2108 = vmatprep.mubr.bf16.mxu0 0
      %2109 = vmatmul.mubr.bf16.gmra.mrb[0].mxu0 %v1971
      %v2110 = vpop.f32.mrb[0].mxu0
      %v2111 = vadd.f32 0.0, %v2110
      %v2112 = vpop.f32.mrb[0].mxu0
      %v2113 = vpop.f32.mrb[0].mxu0
      %v2114 = vadd.f32 0.0, %v2113
      %v2115 = vpop.f32.mrb[0].mxu0
      %2116 = vmatprep.mubr.bf16.mxu0 0
      %2117 = vmatmul.mubr.bf16.gmra.mrb[0].mxu0 %v1974
      %v2118 = vpop.f32.mrb[0].mxu0
      %v2119 = vadd.f32 0.0, %v2118
      %v2120 = vpop.f32.mrb[0].mxu0
      %v2121 = vpop.f32.mrb[0].mxu0
      %v2122 = vadd.f32 0.0, %v2121
      %v2123 = vpop.f32.mrb[0].mxu0
      %2124 = vmatprep.mubr.bf16.mxu0 0
      %2125 = vmatmul.mubr.bf16.gmra.mrb[0].mxu0 %v1977
      %v2126 = vpop.f32.mrb[0].mxu0
      %v2127 = vadd.f32 0.0, %v2126
      %v2128 = vpop.f32.mrb[0].mxu0
      %v2129 = vpop.f32.mrb[0].mxu0
      %v2130 = vadd.f32 0.0, %v2129
      %v2131 = vpop.f32.mrb[0].mxu0
      %2132 = vmatprep.mubr.bf16.mxu0 0
      %2133 = vmatmul.mubr.bf16.gmra.mrb[0].mxu0 %v1980
      %v2134 = vpop.f32.mrb[0].mxu0
      %v2135 = vadd.f32 0.0, %v2134
      %v2136 = vpop.f32.mrb[0].mxu0
      %v2137 = vpop.f32.mrb[0].mxu0
      %v2138 = vadd.f32 0.0, %v2137
      %v2139 = vpop.f32.mrb[0].mxu0
      %2140 = vmatprep.mubr.bf16.mxu0 0
      %2141 = vmatmul.mubr.bf16.gmra.mrb[0].mxu0 %v1983
      %v2142 = vpop.f32.mrb[0].mxu0
      %v2143 = vadd.f32 0.0, %v2142
      %v2144 = vpop.f32.mrb[0].mxu0
      %v2145 = vpop.f32.mrb[0].mxu0
      %v2146 = vadd.f32 0.0, %v2145
      %v2147 = vpop.f32.mrb[0].mxu0
      %2148 = vdwg.mxu0
      %v2149 = vadd.f32 %v1854, %v2023
      %v2150 = vadd.f32 %v1855, %v2026
      %v2151 = vadd.f32 %v1856, %v2031
      %v2152 = vadd.f32 %v1857, %v2034
      %v2153 = vadd.f32 %v1858, %v2039
      %v2154 = vadd.f32 %v1859, %v2042
      %v2155 = vadd.f32 %v1860, %v2047
      %v2156 = vadd.f32 %v1861, %v2050
      %v2157 = vadd.f32 %v1862, %v2055
      %v2158 = vadd.f32 %v1863, %v2058
      %v2159 = vadd.f32 %v1864, %v2063
      %v2160 = vadd.f32 %v1865, %v2066
      %v2161 = vadd.f32 %v1866, %v2071
      %v2162 = vadd.f32 %v1867, %v2074
      %v2163 = vadd.f32 %v1868, %v2079
      %v2164 = vadd.f32 %v1869, %v2082
      %v2165 = vadd.f32 %v1870, %v2087
      %v2166 = vadd.f32 %v1871, %v2090
      %v2167 = vadd.f32 %v1872, %v2095
      %v2168 = vadd.f32 %v1873, %v2098
      %v2169 = vadd.f32 %v1874, %v2103
      %v2170 = vadd.f32 %v1875, %v2106
      %v2171 = vadd.f32 %v1876, %v2111
      %v2172 = vadd.f32 %v1877, %v2114
      %v2173 = vadd.f32 %v1878, %v2119
      %v2174 = vadd.f32 %v1879, %v2122
      %v2175 = vadd.f32 %v1880, %v2127
      %v2176 = vadd.f32 %v1881, %v2130
      %v2177 = vadd.f32 %v1882, %v2135
      %v2178 = vadd.f32 %v1883, %v2138
      %v2179 = vadd.f32 %v1884, %v2143
      %v2180 = vadd.f32 %v1885, %v2146
      %v2181 = vld [vmem:[%s1886 + $0x1] sm:$0xff]
      %v2182 = vld [vmem:[%s1886 + $0x9] sm:$0xff]
      %v2183 = vld [vmem:[%s1886 + $0x19] sm:$0xff]
      %v2184 = vld [vmem:[%s1886 + $0x21] sm:$0xff]
      %v2185 = vld [vmem:[%s1886 + $0x31] sm:$0xff]
      %v2186 = vld [vmem:[%s1886 + $0x39] sm:$0xff]
      %v2187 = vld [vmem:[%s1886 + $0x49] sm:$0xff]
      %v2188 = vld [vmem:[%s1886 + $0x51] sm:$0xff]
      %v2189 = vld [vmem:[%s1886 + $0x61] sm:$0xff]
      %v2190 = vld [vmem:[%s1886 + $0x69] sm:$0xff]
      %v2191 = vld [vmem:[%s1886 + $0x79] sm:$0xff]
      %v2192 = vld [vmem:[%s1886 + $0x81] sm:$0xff]
      %v2193 = vld [vmem:[%s1886 + $0x91] sm:$0xff]
      %v2194 = vld [vmem:[%s1886 + $0x99] sm:$0xff]
      %v2195 = vld [vmem:[%s1886 + $0xa9] sm:$0xff]
      %v2196 = vld [vmem:[%s1886 + $0xb1] sm:$0xff]
      %v2197 = vld [vmem:[%s1886 + $0xc1] sm:$0xff]
      %v2198 = vld [vmem:[%s1886 + $0xc9] sm:$0xff]
      %v2199 = vld [vmem:[%s1886 + $0xd9] sm:$0xff]
      %v2200 = vld [vmem:[%s1886 + $0xe1] sm:$0xff]
      %v2201 = vld [vmem:[%s1886 + $0xf1] sm:$0xff]
      %v2202 = vld [vmem:[%s1886 + $0xf9] sm:$0xff]
      %v2203 = vld [vmem:[%s1886 + $0x109] sm:$0xff]
      %v2204 = vld [vmem:[%s1886 + $0x111] sm:$0xff]
      %v2205 = vld [vmem:[%s1886 + $0x121] sm:$0xff]
      %v2206 = vld [vmem:[%s1886 + $0x129] sm:$0xff]
      %v2207 = vld [vmem:[%s1886 + $0x139] sm:$0xff]
      %v2208 = vld [vmem:[%s1886 + $0x141] sm:$0xff]
      %v2209 = vld [vmem:[%s1886 + $0x151] sm:$0xff]
      %v2210 = vld [vmem:[%s1886 + $0x159] sm:$0xff]
      %v2211 = vld [vmem:[%s1886 + $0x169] sm:$0xff]
      %v2212 = vld [vmem:[%s1886 + $0x171] sm:$0xff]
      %v2213 = vpack.c.bf16 %v2182, %v2181
      %v2214 = vpack.c.bf16 %v2184, %v2183
      %v2215 = vpack.c.bf16 %v2186, %v2185
      %v2216 = vpack.c.bf16 %v2188, %v2187
      %v2217 = vpack.c.bf16 %v2190, %v2189
      %v2218 = vpack.c.bf16 %v2192, %v2191
      %v2219 = vpack.c.bf16 %v2194, %v2193
      %v2220 = vpack.c.bf16 %v2196, %v2195
      %v2221 = vpack.c.bf16 %v2198, %v2197
      %v2222 = vpack.c.bf16 %v2200, %v2199
      %v2223 = vpack.c.bf16 %v2202, %v2201
      %v2224 = vpack.c.bf16 %v2204, %v2203
      %v2225 = vpack.c.bf16 %v2206, %v2205
      %v2226 = vpack.c.bf16 %v2208, %v2207
      %v2227 = vpack.c.bf16 %v2210, %v2209
      %v2228 = vpack.c.bf16 %v2212, %v2211
      %s2229 = scalar_lea.vmem %s1, 14
      %v2230 = vld [vmem:[%s2229] sm:$0x3]
      %v2232 = vsel %vm283, %v2213, 0
      %v2235 = vsel %vm283, %v2214, 0
      %v2238 = vsel %vm283, %v2215, 0
      %v2241 = vsel %vm283, %v2216, 0
      %v2244 = vsel %vm283, %v2217, 0
      %v2247 = vsel %vm283, %v2218, 0
      %v2250 = vsel %vm283, %v2219, 0
      %v2253 = vsel %vm283, %v2220, 0
      %v2256 = vsel %vm283, %v2221, 0
      %v2259 = vsel %vm283, %v2222, 0
      %v2262 = vsel %vm283, %v2223, 0
      %v2265 = vsel %vm283, %v2224, 0
      %v2268 = vsel %vm283, %v2225, 0
      %v2271 = vsel %vm283, %v2226, 0
      %v2274 = vsel %vm283, %v2227, 0
      %v2277 = vsel %vm283, %v2228, 0
      %v2280 = vsel %vm332, %v2230, 0
      %2282 = vmatprep.subr.bf16.mxu0 0
      %2283 = vmatpush1.bf16.msra.mxu0 %v2280
      %2284 = vmatprep.subr.bf16.mxu0 0
      %2285 = vmatpush1.bf16.msra.mxu0 0
      %2286 = vmatprep.subr.bf16.mxu0 0
      %2287 = vmatpush1.bf16.msra.mxu0 0
      %2288 = vmatprep.subr.bf16.mxu0 0
      %2289 = vmatpush1.bf16.msra.mxu0 0
      %2290 = vmatprep.subr.bf16.mxu0 0
      %2291 = vmatpush1.bf16.msra.mxu0 0
      %2292 = vmatprep.subr.bf16.mxu0 0
      %2293 = vmatpush1.bf16.msra.mxu0 0
      %2294 = vmatprep.subr.bf16.mxu0 0
      %2295 = vmatpush1.bf16.msra.mxu0 0
      %2296 = vmatprep.subr.bf16.mxu0 0
      %2297 = vmatpush1.bf16.msra.mxu0 0
      %2298 = vmatprep.subr.bf16.mxu0 0
      %2299 = vmatpush1.bf16.msra.mxu0 0
      %2300 = vmatprep.subr.bf16.mxu0 0
      %2301 = vmatpush1.bf16.msra.mxu0 0
      %2302 = vmatprep.subr.bf16.mxu0 0
      %2303 = vmatpush1.bf16.msra.mxu0 0
      %2304 = vmatprep.subr.bf16.mxu0 0
      %2305 = vmatpush1.bf16.msra.mxu0 0
      %2306 = vmatprep.subr.bf16.mxu0 0
      %2307 = vmatpush1.bf16.msra.mxu0 0
      %2308 = vmatprep.subr.bf16.mxu0 0
      %2309 = vmatpush1.bf16.msra.mxu0 0
      %2310 = vmatprep.subr.bf16.mxu0 0
      %2311 = vmatpush1.bf16.msra.mxu0 0
      %2312 = vmatprep.subr.bf16.mxu0 0
      %2313 = vmatpush1.bf16.msra.mxu0 0
      %2314 = vmatprep.mubr.bf16.mxu0 0
      %2315 = vmatmul.mubr.bf16.gmra.mrb[0].mxu0 %v2232
      %v2316 = vpop.f32.mrb[0].mxu0
      %v2317 = vadd.f32 0.0, %v2316
      %v2318 = vpop.f32.mrb[0].mxu0
      %v2319 = vpop.f32.mrb[0].mxu0
      %v2320 = vadd.f32 0.0, %v2319
      %v2321 = vpop.f32.mrb[0].mxu0
      %2322 = vmatprep.mubr.bf16.mxu0 0
      %2323 = vmatmul.mubr.bf16.gmra.mrb[0].mxu0 %v2235
      %v2324 = vpop.f32.mrb[0].mxu0
      %v2325 = vadd.f32 0.0, %v2324
      %v2326 = vpop.f32.mrb[0].mxu0
      %v2327 = vpop.f32.mrb[0].mxu0
      %v2328 = vadd.f32 0.0, %v2327
      %v2329 = vpop.f32.mrb[0].mxu0
      %2330 = vmatprep.mubr.bf16.mxu0 0
      %2331 = vmatmul.mubr.bf16.gmra.mrb[0].mxu0 %v2238
      %v2332 = vpop.f32.mrb[0].mxu0
      %v2333 = vadd.f32 0.0, %v2332
      %v2334 = vpop.f32.mrb[0].mxu0
      %v2335 = vpop.f32.mrb[0].mxu0
      %v2336 = vadd.f32 0.0, %v2335
      %v2337 = vpop.f32.mrb[0].mxu0
      %2338 = vmatprep.mubr.bf16.mxu0 0
      %2339 = vmatmul.mubr.bf16.gmra.mrb[0].mxu0 %v2241
      %v2340 = vpop.f32.mrb[0].mxu0
      %v2341 = vadd.f32 0.0, %v2340
      %v2342 = vpop.f32.mrb[0].mxu0
      %v2343 = vpop.f32.mrb[0].mxu0
      %v2344 = vadd.f32 0.0, %v2343
      %v2345 = vpop.f32.mrb[0].mxu0
      %2346 = vmatprep.mubr.bf16.mxu0 0
      %2347 = vmatmul.mubr.bf16.gmra.mrb[0].mxu0 %v2244
      %v2348 = vpop.f32.mrb[0].mxu0
      %v2349 = vadd.f32 0.0, %v2348
      %v2350 = vpop.f32.mrb[0].mxu0
      %v2351 = vpop.f32.mrb[0].mxu0
      %v2352 = vadd.f32 0.0, %v2351
      %v2353 = vpop.f32.mrb[0].mxu0
      %2354 = vmatprep.mubr.bf16.mxu0 0
      %2355 = vmatmul.mubr.bf16.gmra.mrb[0].mxu0 %v2247
      %v2356 = vpop.f32.mrb[0].mxu0
      %v2357 = vadd.f32 0.0, %v2356
      %v2358 = vpop.f32.mrb[0].mxu0
      %v2359 = vpop.f32.mrb[0].mxu0
      %v2360 = vadd.f32 0.0, %v2359
      %v2361 = vpop.f32.mrb[0].mxu0
      %2362 = vmatprep.mubr.bf16.mxu0 0
      %2363 = vmatmul.mubr.bf16.gmra.mrb[0].mxu0 %v2250
      %v2364 = vpop.f32.mrb[0].mxu0
      %v2365 = vadd.f32 0.0, %v2364
      %v2366 = vpop.f32.mrb[0].mxu0
      %v2367 = vpop.f32.mrb[0].mxu0
      %v2368 = vadd.f32 0.0, %v2367
      %v2369 = vpop.f32.mrb[0].mxu0
      %2370 = vmatprep.mubr.bf16.mxu0 0
      %2371 = vmatmul.mubr.bf16.gmra.mrb[0].mxu0 %v2253
      %v2372 = vpop.f32.mrb[0].mxu0
      %v2373 = vadd.f32 0.0, %v2372
      %v2374 = vpop.f32.mrb[0].mxu0
      %v2375 = vpop.f32.mrb[0].mxu0
      %v2376 = vadd.f32 0.0, %v2375
      %v2377 = vpop.f32.mrb[0].mxu0
      %2378 = vmatprep.mubr.bf16.mxu0 0
      %2379 = vmatmul.mubr.bf16.gmra.mrb[0].mxu0 %v2256
      %v2380 = vpop.f32.mrb[0].mxu0
      %v2381 = vadd.f32 0.0, %v2380
      %v2382 = vpop.f32.mrb[0].mxu0
      %v2383 = vpop.f32.mrb[0].mxu0
      %v2384 = vadd.f32 0.0, %v2383
      %v2385 = vpop.f32.mrb[0].mxu0
      %2386 = vmatprep.mubr.bf16.mxu0 0
      %2387 = vmatmul.mubr.bf16.gmra.mrb[0].mxu0 %v2259
      %v2388 = vpop.f32.mrb[0].mxu0
      %v2389 = vadd.f32 0.0, %v2388
      %v2390 = vpop.f32.mrb[0].mxu0
      %v2391 = vpop.f32.mrb[0].mxu0
      %v2392 = vadd.f32 0.0, %v2391
      %v2393 = vpop.f32.mrb[0].mxu0
      %2394 = vmatprep.mubr.bf16.mxu0 0
      %2395 = vmatmul.mubr.bf16.gmra.mrb[0].mxu0 %v2262
      %v2396 = vpop.f32.mrb[0].mxu0
      %v2397 = vadd.f32 0.0, %v2396
      %v2398 = vpop.f32.mrb[0].mxu0
      %v2399 = vpop.f32.mrb[0].mxu0
      %v2400 = vadd.f32 0.0, %v2399
      %v2401 = vpop.f32.mrb[0].mxu0
      %2402 = vmatprep.mubr.bf16.mxu0 0
      %2403 = vmatmul.mubr.bf16.gmra.mrb[0].mxu0 %v2265
      %v2404 = vpop.f32.mrb[0].mxu0
      %v2405 = vadd.f32 0.0, %v2404
      %v2406 = vpop.f32.mrb[0].mxu0
      %v2407 = vpop.f32.mrb[0].mxu0
      %v2408 = vadd.f32 0.0, %v2407
      %v2409 = vpop.f32.mrb[0].mxu0
      %2410 = vmatprep.mubr.bf16.mxu0 0
      %2411 = vmatmul.mubr.bf16.gmra.mrb[0].mxu0 %v2268
      %v2412 = vpop.f32.mrb[0].mxu0
      %v2413 = vadd.f32 0.0, %v2412
      %v2414 = vpop.f32.mrb[0].mxu0
      %v2415 = vpop.f32.mrb[0].mxu0
      %v2416 = vadd.f32 0.0, %v2415
      %v2417 = vpop.f32.mrb[0].mxu0
      %2418 = vmatprep.mubr.bf16.mxu0 0
      %2419 = vmatmul.mubr.bf16.gmra.mrb[0].mxu0 %v2271
      %v2420 = vpop.f32.mrb[0].mxu0
      %v2421 = vadd.f32 0.0, %v2420
      %v2422 = vpop.f32.mrb[0].mxu0
      %v2423 = vpop.f32.mrb[0].mxu0
      %v2424 = vadd.f32 0.0, %v2423
      %v2425 = vpop.f32.mrb[0].mxu0
      %2426 = vmatprep.mubr.bf16.mxu0 0
      %2427 = vmatmul.mubr.bf16.gmra.mrb[0].mxu0 %v2274
      %v2428 = vpop.f32.mrb[0].mxu0
      %v2429 = vadd.f32 0.0, %v2428
      %v2430 = vpop.f32.mrb[0].mxu0
      %v2431 = vpop.f32.mrb[0].mxu0
      %v2432 = vadd.f32 0.0, %v2431
      %v2433 = vpop.f32.mrb[0].mxu0
      %2434 = vmatprep.mubr.bf16.mxu0 0
      %2435 = vmatmul.mubr.bf16.gmra.mrb[0].mxu0 %v2277
      %v2436 = vpop.f32.mrb[0].mxu0
      %v2437 = vadd.f32 0.0, %v2436
      %v2438 = vpop.f32.mrb[0].mxu0
      %v2439 = vpop.f32.mrb[0].mxu0
      %v2440 = vadd.f32 0.0, %v2439
      %v2441 = vpop.f32.mrb[0].mxu0
      %2442 = vdwg.mxu0
      %v2443 = vadd.f32 %v2149, %v2317
      %v2444 = vadd.f32 %v2150, %v2320
      %v2445 = vadd.f32 %v2151, %v2325
      %v2446 = vadd.f32 %v2152, %v2328
      %v2447 = vadd.f32 %v2153, %v2333
      %v2448 = vadd.f32 %v2154, %v2336
      %v2449 = vadd.f32 %v2155, %v2341
      %v2450 = vadd.f32 %v2156, %v2344
      %v2451 = vadd.f32 %v2157, %v2349
      %v2452 = vadd.f32 %v2158, %v2352
      %v2453 = vadd.f32 %v2159, %v2357
      %v2454 = vadd.f32 %v2160, %v2360
      %v2455 = vadd.f32 %v2161, %v2365
      %v2456 = vadd.f32 %v2162, %v2368
      %v2457 = vadd.f32 %v2163, %v2373
      %v2458 = vadd.f32 %v2164, %v2376
      %v2459 = vadd.f32 %v2165, %v2381
      %v2460 = vadd.f32 %v2166, %v2384
      %v2461 = vadd.f32 %v2167, %v2389
      %v2462 = vadd.f32 %v2168, %v2392
      %v2463 = vadd.f32 %v2169, %v2397
      %v2464 = vadd.f32 %v2170, %v2400
      %v2465 = vadd.f32 %v2171, %v2405
      %v2466 = vadd.f32 %v2172, %v2408
      %v2467 = vadd.f32 %v2173, %v2413
      %v2468 = vadd.f32 %v2174, %v2416
      %v2469 = vadd.f32 %v2175, %v2421
      %v2470 = vadd.f32 %v2176, %v2424
      %v2471 = vadd.f32 %v2177, %v2429
      %v2472 = vadd.f32 %v2178, %v2432
      %v2473 = vadd.f32 %v2179, %v2437
      %v2474 = vadd.f32 %v2180, %v2440
      %v2475 = vld [vmem:[%s1886 + $0x2] sm:$0xff]
      %v2476 = vld [vmem:[%s1886 + $0xa] sm:$0xff]
      %v2477 = vld [vmem:[%s1886 + $0x1a] sm:$0xff]
      %v2478 = vld [vmem:[%s1886 + $0x22] sm:$0xff]
      %v2479 = vld [vmem:[%s1886 + $0x32] sm:$0xff]
      %v2480 = vld [vmem:[%s1886 + $0x3a] sm:$0xff]
      %v2481 = vld [vmem:[%s1886 + $0x4a] sm:$0xff]
      %v2482 = vld [vmem:[%s1886 + $0x52] sm:$0xff]
      %v2483 = vld [vmem:[%s1886 + $0x62] sm:$0xff]
      %v2484 = vld [vmem:[%s1886 + $0x6a] sm:$0xff]
      %v2485 = vld [vmem:[%s1886 + $0x7a] sm:$0xff]
      %v2486 = vld [vmem:[%s1886 + $0x82] sm:$0xff]
      %v2487 = vld [vmem:[%s1886 + $0x92] sm:$0xff]
      %v2488 = vld [vmem:[%s1886 + $0x9a] sm:$0xff]
      %v2489 = vld [vmem:[%s1886 + $0xaa] sm:$0xff]
      %v2490 = vld [vmem:[%s1886 + $0xb2] sm:$0xff]
      %v2491 = vld [vmem:[%s1886 + $0xc2] sm:$0xff]
      %v2492 = vld [vmem:[%s1886 + $0xca] sm:$0xff]
      %v2493 = vld [vmem:[%s1886 + $0xda] sm:$0xff]
      %v2494 = vld [vmem:[%s1886 + $0xe2] sm:$0xff]
      %v2495 = vld [vmem:[%s1886 + $0xf2] sm:$0xff]
      %v2496 = vld [vmem:[%s1886 + $0xfa] sm:$0xff]
      %v2497 = vld [vmem:[%s1886 + $0x10a] sm:$0xff]
      %v2498 = vld [vmem:[%s1886 + $0x112] sm:$0xff]
      %v2499 = vld [vmem:[%s1886 + $0x122] sm:$0xff]
      %v2500 = vld [vmem:[%s1886 + $0x12a] sm:$0xff]
      %v2501 = vld [vmem:[%s1886 + $0x13a] sm:$0xff]
      %v2502 = vld [vmem:[%s1886 + $0x142] sm:$0xff]
      %v2503 = vld [vmem:[%s1886 + $0x152] sm:$0xff]
      %v2504 = vld [vmem:[%s1886 + $0x15a] sm:$0xff]
      %v2505 = vld [vmem:[%s1886 + $0x16a] sm:$0xff]
      %v2506 = vld [vmem:[%s1886 + $0x172] sm:$0xff]
      %v2507 = vpack.c.bf16 %v2476, %v2475
      %v2508 = vpack.c.bf16 %v2478, %v2477
      %v2509 = vpack.c.bf16 %v2480, %v2479
      %v2510 = vpack.c.bf16 %v2482, %v2481
      %v2511 = vpack.c.bf16 %v2484, %v2483
      %v2512 = vpack.c.bf16 %v2486, %v2485
      %v2513 = vpack.c.bf16 %v2488, %v2487
      %v2514 = vpack.c.bf16 %v2490, %v2489
      %v2515 = vpack.c.bf16 %v2492, %v2491
      %v2516 = vpack.c.bf16 %v2494, %v2493
      %v2517 = vpack.c.bf16 %v2496, %v2495
      %v2518 = vpack.c.bf16 %v2498, %v2497
      %v2519 = vpack.c.bf16 %v2500, %v2499
      %v2520 = vpack.c.bf16 %v2502, %v2501
      %v2521 = vpack.c.bf16 %v2504, %v2503
      %v2522 = vpack.c.bf16 %v2506, %v2505
      %s2523 = scalar_lea.vmem %s1, 16
      %v2524 = vld [vmem:[%s2523] sm:$0x3]
      %v2526 = vsel %vm283, %v2507, 0
      %v2529 = vsel %vm283, %v2508, 0
      %v2532 = vsel %vm283, %v2509, 0
      %v2535 = vsel %vm283, %v2510, 0
      %v2538 = vsel %vm283, %v2511, 0
      %v2541 = vsel %vm283, %v2512, 0
      %v2544 = vsel %vm283, %v2513, 0
      %v2547 = vsel %vm283, %v2514, 0
      %v2550 = vsel %vm283, %v2515, 0
      %v2553 = vsel %vm283, %v2516, 0
      %v2556 = vsel %vm283, %v2517, 0
      %v2559 = vsel %vm283, %v2518, 0
      %v2562 = vsel %vm283, %v2519, 0
      %v2565 = vsel %vm283, %v2520, 0
      %v2568 = vsel %vm283, %v2521, 0
      %v2571 = vsel %vm283, %v2522, 0
      %v2574 = vsel %vm332, %v2524, 0
      %2576 = vmatprep.subr.bf16.mxu0 0
      %2577 = vmatpush1.bf16.msra.mxu0 %v2574
      %2578 = vmatprep.subr.bf16.mxu0 0
      %2579 = vmatpush1.bf16.msra.mxu0 0
      %2580 = vmatprep.subr.bf16.mxu0 0
      %2581 = vmatpush1.bf16.msra.mxu0 0
      %2582 = vmatprep.subr.bf16.mxu0 0
      %2583 = vmatpush1.bf16.msra.mxu0 0
      %2584 = vmatprep.subr.bf16.mxu0 0
      %2585 = vmatpush1.bf16.msra.mxu0 0
      %2586 = vmatprep.subr.bf16.mxu0 0
      %2587 = vmatpush1.bf16.msra.mxu0 0
      %2588 = vmatprep.subr.bf16.mxu0 0
      %2589 = vmatpush1.bf16.msra.mxu0 0
      %2590 = vmatprep.subr.bf16.mxu0 0
      %2591 = vmatpush1.bf16.msra.mxu0 0
      %2592 = vmatprep.subr.bf16.mxu0 0
      %2593 = vmatpush1.bf16.msra.mxu0 0
      %2594 = vmatprep.subr.bf16.mxu0 0
      %2595 = vmatpush1.bf16.msra.mxu0 0
      %2596 = vmatprep.subr.bf16.mxu0 0
      %2597 = vmatpush1.bf16.msra.mxu0 0
      %2598 = vmatprep.subr.bf16.mxu0 0
      %2599 = vmatpush1.bf16.msra.mxu0 0
      %2600 = vmatprep.subr.bf16.mxu0 0
      %2601 = vmatpush1.bf16.msra.mxu0 0
      %2602 = vmatprep.subr.bf16.mxu0 0
      %2603 = vmatpush1.bf16.msra.mxu0 0
      %2604 = vmatprep.subr.bf16.mxu0 0
      %2605 = vmatpush1.bf16.msra.mxu0 0
      %2606 = vmatprep.subr.bf16.mxu0 0
      %2607 = vmatpush1.bf16.msra.mxu0 0
      %2608 = vmatprep.mubr.bf16.mxu0 0
      %2609 = vmatmul.mubr.bf16.gmra.mrb[0].mxu0 %v2526
      %v2610 = vpop.f32.mrb[0].mxu0
      %v2611 = vadd.f32 0.0, %v2610
      %v2612 = vpop.f32.mrb[0].mxu0
      %v2613 = vpop.f32.mrb[0].mxu0
      %v2614 = vadd.f32 0.0, %v2613
      %v2615 = vpop.f32.mrb[0].mxu0
      %2616 = vmatprep.mubr.bf16.mxu0 0
      %2617 = vmatmul.mubr.bf16.gmra.mrb[0].mxu0 %v2529
      %v2618 = vpop.f32.mrb[0].mxu0
      %v2619 = vadd.f32 0.0, %v2618
      %v2620 = vpop.f32.mrb[0].mxu0
      %v2621 = vpop.f32.mrb[0].mxu0
      %v2622 = vadd.f32 0.0, %v2621
      %v2623 = vpop.f32.mrb[0].mxu0
      %2624 = vmatprep.mubr.bf16.mxu0 0
      %2625 = vmatmul.mubr.bf16.gmra.mrb[0].mxu0 %v2532
      %v2626 = vpop.f32.mrb[0].mxu0
      %v2627 = vadd.f32 0.0, %v2626
      %v2628 = vpop.f32.mrb[0].mxu0
      %v2629 = vpop.f32.mrb[0].mxu0
      %v2630 = vadd.f32 0.0, %v2629
      %v2631 = vpop.f32.mrb[0].mxu0
      %2632 = vmatprep.mubr.bf16.mxu0 0
      %2633 = vmatmul.mubr.bf16.gmra.mrb[0].mxu0 %v2535
      %v2634 = vpop.f32.mrb[0].mxu0
      %v2635 = vadd.f32 0.0, %v2634
      %v2636 = vpop.f32.mrb[0].mxu0
      %v2637 = vpop.f32.mrb[0].mxu0
      %v2638 = vadd.f32 0.0, %v2637
      %v2639 = vpop.f32.mrb[0].mxu0
      %2640 = vmatprep.mubr.bf16.mxu0 0
      %2641 = vmatmul.mubr.bf16.gmra.mrb[0].mxu0 %v2538
      %v2642 = vpop.f32.mrb[0].mxu0
      %v2643 = vadd.f32 0.0, %v2642
      %v2644 = vpop.f32.mrb[0].mxu0
      %v2645 = vpop.f32.mrb[0].mxu0
      %v2646 = vadd.f32 0.0, %v2645
      %v2647 = vpop.f32.mrb[0].mxu0
      %2648 = vmatprep.mubr.bf16.mxu0 0
      %2649 = vmatmul.mubr.bf16.gmra.mrb[0].mxu0 %v2541
      %v2650 = vpop.f32.mrb[0].mxu0
      %v2651 = vadd.f32 0.0, %v2650
      %v2652 = vpop.f32.mrb[0].mxu0
      %v2653 = vpop.f32.mrb[0].mxu0
      %v2654 = vadd.f32 0.0, %v2653
      %v2655 = vpop.f32.mrb[0].mxu0
      %2656 = vmatprep.mubr.bf16.mxu0 0
      %2657 = vmatmul.mubr.bf16.gmra.mrb[0].mxu0 %v2544
      %v2658 = vpop.f32.mrb[0].mxu0
      %v2659 = vadd.f32 0.0, %v2658
      %v2660 = vpop.f32.mrb[0].mxu0
      %v2661 = vpop.f32.mrb[0].mxu0
      %v2662 = vadd.f32 0.0, %v2661
      %v2663 = vpop.f32.mrb[0].mxu0
      %2664 = vmatprep.mubr.bf16.mxu0 0
      %2665 = vmatmul.mubr.bf16.gmra.mrb[0].mxu0 %v2547
      %v2666 = vpop.f32.mrb[0].mxu0
      %v2667 = vadd.f32 0.0, %v2666
      %v2668 = vpop.f32.mrb[0].mxu0
      %v2669 = vpop.f32.mrb[0].mxu0
      %v2670 = vadd.f32 0.0, %v2669
      %v2671 = vpop.f32.mrb[0].mxu0
      %2672 = vmatprep.mubr.bf16.mxu0 0
      %2673 = vmatmul.mubr.bf16.gmra.mrb[0].mxu0 %v2550
      %v2674 = vpop.f32.mrb[0].mxu0
      %v2675 = vadd.f32 0.0, %v2674
      %v2676 = vpop.f32.mrb[0].mxu0
      %v2677 = vpop.f32.mrb[0].mxu0
      %v2678 = vadd.f32 0.0, %v2677
      %v2679 = vpop.f32.mrb[0].mxu0
      %2680 = vmatprep.mubr.bf16.mxu0 0
      %2681 = vmatmul.mubr.bf16.gmra.mrb[0].mxu0 %v2553
      %v2682 = vpop.f32.mrb[0].mxu0
      %v2683 = vadd.f32 0.0, %v2682
      %v2684 = vpop.f32.mrb[0].mxu0
      %v2685 = vpop.f32.mrb[0].mxu0
      %v2686 = vadd.f32 0.0, %v2685
      %v2687 = vpop.f32.mrb[0].mxu0
      %2688 = vmatprep.mubr.bf16.mxu0 0
      %2689 = vmatmul.mubr.bf16.gmra.mrb[0].mxu0 %v2556
      %v2690 = vpop.f32.mrb[0].mxu0
      %v2691 = vadd.f32 0.0, %v2690
      %v2692 = vpop.f32.mrb[0].mxu0
      %v2693 = vpop.f32.mrb[0].mxu0
      %v2694 = vadd.f32 0.0, %v2693
      %v2695 = vpop.f32.mrb[0].mxu0
      %2696 = vmatprep.mubr.bf16.mxu0 0
      %2697 = vmatmul.mubr.bf16.gmra.mrb[0].mxu0 %v2559
      %v2698 = vpop.f32.mrb[0].mxu0
      %v2699 = vadd.f32 0.0, %v2698
      %v2700 = vpop.f32.mrb[0].mxu0
      %v2701 = vpop.f32.mrb[0].mxu0
      %v2702 = vadd.f32 0.0, %v2701
      %v2703 = vpop.f32.mrb[0].mxu0
      %2704 = vmatprep.mubr.bf16.mxu0 0
      %2705 = vmatmul.mubr.bf16.gmra.mrb[0].mxu0 %v2562
      %v2706 = vpop.f32.mrb[0].mxu0
      %v2707 = vadd.f32 0.0, %v2706
      %v2708 = vpop.f32.mrb[0].mxu0
      %v2709 = vpop.f32.mrb[0].mxu0
      %v2710 = vadd.f32 0.0, %v2709
      %v2711 = vpop.f32.mrb[0].mxu0
      %2712 = vmatprep.mubr.bf16.mxu0 0
      %2713 = vmatmul.mubr.bf16.gmra.mrb[0].mxu0 %v2565
      %v2714 = vpop.f32.mrb[0].mxu0
      %v2715 = vadd.f32 0.0, %v2714
      %v2716 = vpop.f32.mrb[0].mxu0
      %v2717 = vpop.f32.mrb[0].mxu0
      %v2718 = vadd.f32 0.0, %v2717
      %v2719 = vpop.f32.mrb[0].mxu0
      %2720 = vmatprep.mubr.bf16.mxu0 0
      %2721 = vmatmul.mubr.bf16.gmra.mrb[0].mxu0 %v2568
      %v2722 = vpop.f32.mrb[0].mxu0
      %v2723 = vadd.f32 0.0, %v2722
      %v2724 = vpop.f32.mrb[0].mxu0
      %v2725 = vpop.f32.mrb[0].mxu0
      %v2726 = vadd.f32 0.0, %v2725
      %v2727 = vpop.f32.mrb[0].mxu0
      %2728 = vmatprep.mubr.bf16.mxu0 0
      %2729 = vmatmul.mubr.bf16.gmra.mrb[0].mxu0 %v2571
      %v2730 = vpop.f32.mrb[0].mxu0
      %v2731 = vadd.f32 0.0, %v2730
      %v2732 = vpop.f32.mrb[0].mxu0
      %v2733 = vpop.f32.mrb[0].mxu0
      %v2734 = vadd.f32 0.0, %v2733
      %v2735 = vpop.f32.mrb[0].mxu0
      %2736 = vdwg.mxu0
      %v2737 = vadd.f32 %v2443, %v2611
      %v2738 = vadd.f32 %v2444, %v2614
      %v2739 = vadd.f32 %v2445, %v2619
      %v2740 = vadd.f32 %v2446, %v2622
      %v2741 = vadd.f32 %v2447, %v2627
      %v2742 = vadd.f32 %v2448, %v2630
      %v2743 = vadd.f32 %v2449, %v2635
      %v2744 = vadd.f32 %v2450, %v2638
      %v2745 = vadd.f32 %v2451, %v2643
      %v2746 = vadd.f32 %v2452, %v2646
      %v2747 = vadd.f32 %v2453, %v2651
      %v2748 = vadd.f32 %v2454, %v2654
      %v2749 = vadd.f32 %v2455, %v2659
      %v2750 = vadd.f32 %v2456, %v2662
      %v2751 = vadd.f32 %v2457, %v2667
      %v2752 = vadd.f32 %v2458, %v2670
      %v2753 = vadd.f32 %v2459, %v2675
      %v2754 = vadd.f32 %v2460, %v2678
      %v2755 = vadd.f32 %v2461, %v2683
      %v2756 = vadd.f32 %v2462, %v2686
      %v2757 = vadd.f32 %v2463, %v2691
      %v2758 = vadd.f32 %v2464, %v2694
      %v2759 = vadd.f32 %v2465, %v2699
      %v2760 = vadd.f32 %v2466, %v2702
      %v2761 = vadd.f32 %v2467, %v2707
      %v2762 = vadd.f32 %v2468, %v2710
      %v2763 = vadd.f32 %v2469, %v2715
      %v2764 = vadd.f32 %v2470, %v2718
      %v2765 = vadd.f32 %v2471, %v2723
      %v2766 = vadd.f32 %v2472, %v2726
      %v2767 = vadd.f32 %v2473, %v2731
      %v2768 = vadd.f32 %v2474, %v2734
      %vm2769 = vcmask 64512
      %2770 = vst.msk [vmem:[%s177] sm:$0xff] %vm2769, %v2737
      %2771 = vst.msk [vmem:[%s177 + $0x8] sm:$0xff] %vm2769, %v2738
      %2772 = vst.msk [vmem:[%s177 + $0x10] sm:$0xff] %vm2769, %v2739
      %2773 = vst.msk [vmem:[%s177 + $0x18] sm:$0xff] %vm2769, %v2740
      %2774 = vst.msk [vmem:[%s177 + $0x20] sm:$0xff] %vm2769, %v2741
      %2775 = vst.msk [vmem:[%s177 + $0x28] sm:$0xff] %vm2769, %v2742
      %2776 = vst.msk [vmem:[%s177 + $0x30] sm:$0xff] %vm2769, %v2743
      %2777 = vst.msk [vmem:[%s177 + $0x38] sm:$0xff] %vm2769, %v2744
      %2778 = vst.msk [vmem:[%s177 + $0x40] sm:$0xff] %vm2769, %v2745
      %2779 = vst.msk [vmem:[%s177 + $0x48] sm:$0xff] %vm2769, %v2746
      %2780 = vst.msk [vmem:[%s177 + $0x50] sm:$0xff] %vm2769, %v2747
      %2781 = vst.msk [vmem:[%s177 + $0x58] sm:$0xff] %vm2769, %v2748
      %2782 = vst.msk [vmem:[%s177 + $0x60] sm:$0xff] %vm2769, %v2749
      %2783 = vst.msk [vmem:[%s177 + $0x68] sm:$0xff] %vm2769, %v2750
      %2784 = vst.msk [vmem:[%s177 + $0x70] sm:$0xff] %vm2769, %v2751
      %2785 = vst.msk [vmem:[%s177 + $0x78] sm:$0xff] %vm2769, %v2752
      %2786 = vst.msk [vmem:[%s177 + $0x80] sm:$0xff] %vm2769, %v2753
      %2787 = vst.msk [vmem:[%s177 + $0x88] sm:$0xff] %vm2769, %v2754
      %2788 = vst.msk [vmem:[%s177 + $0x90] sm:$0xff] %vm2769, %v2755
      %2789 = vst.msk [vmem:[%s177 + $0x98] sm:$0xff] %vm2769, %v2756
      %2790 = vst.msk [vmem:[%s177 + $0xa0] sm:$0xff] %vm2769, %v2757
      %2791 = vst.msk [vmem:[%s177 + $0xa8] sm:$0xff] %vm2769, %v2758
      %2792 = vst.msk [vmem:[%s177 + $0xb0] sm:$0xff] %vm2769, %v2759
      %2793 = vst.msk [vmem:[%s177 + $0xb8] sm:$0xff] %vm2769, %v2760
      %2794 = vst.msk [vmem:[%s177 + $0xc0] sm:$0xff] %vm2769, %v2761
      %2795 = vst.msk [vmem:[%s177 + $0xc8] sm:$0xff] %vm2769, %v2762
      %2796 = vst.msk [vmem:[%s177 + $0xd0] sm:$0xff] %vm2769, %v2763
      %2797 = vst.msk [vmem:[%s177 + $0xd8] sm:$0xff] %vm2769, %v2764
      %2798 = vst.msk [vmem:[%s177 + $0xe0] sm:$0xff] %vm2769, %v2765
      %2799 = vst.msk [vmem:[%s177 + $0xe8] sm:$0xff] %vm2769, %v2766
      %2800 = vst.msk [vmem:[%s177 + $0xf0] sm:$0xff] %vm2769, %v2767
      %2801 = vst.msk [vmem:[%s177 + $0xf8] sm:$0xff] %vm2769, %v2768
      %v2802 = vsel %vm2769, %v2737, 0.0
      %v2803 = vsel %vm2769, %v2738, 0.0
      %v2804 = vadd.f32 %v2802, %v2803
      %v2805 = vsel %vm2769, %v2739, 0.0
      %v2806 = vadd.f32 %v2804, %v2805
      %v2807 = vsel %vm2769, %v2740, 0.0
      %v2808 = vadd.f32 %v2806, %v2807
      %v2809 = vsel %vm2769, %v2741, 0.0
      %v2810 = vadd.f32 %v2808, %v2809
      %v2811 = vsel %vm2769, %v2742, 0.0
      %v2812 = vadd.f32 %v2810, %v2811
      %v2813 = vsel %vm2769, %v2743, 0.0
      %v2814 = vadd.f32 %v2812, %v2813
      %v2815 = vsel %vm2769, %v2744, 0.0
      %v2816 = vadd.f32 %v2814, %v2815
      %v2817 = vsel %vm2769, %v2745, 0.0
      %v2818 = vadd.f32 %v2816, %v2817
      %v2819 = vsel %vm2769, %v2746, 0.0
      %v2820 = vadd.f32 %v2818, %v2819
      %v2821 = vsel %vm2769, %v2747, 0.0
      %v2822 = vadd.f32 %v2820, %v2821
      %v2823 = vsel %vm2769, %v2748, 0.0
      %v2824 = vadd.f32 %v2822, %v2823
      %v2825 = vsel %vm2769, %v2749, 0.0
      %v2826 = vadd.f32 %v2824, %v2825
      %v2827 = vsel %vm2769, %v2750, 0.0
      %v2828 = vadd.f32 %v2826, %v2827
      %v2829 = vsel %vm2769, %v2751, 0.0
      %v2830 = vadd.f32 %v2828, %v2829
      %v2831 = vsel %vm2769, %v2752, 0.0
      %v2832 = vadd.f32 %v2830, %v2831
      %v2833 = vsel %vm2769, %v2753, 0.0
      %v2834 = vadd.f32 %v2832, %v2833
      %v2835 = vsel %vm2769, %v2754, 0.0
      %v2836 = vadd.f32 %v2834, %v2835
      %v2837 = vsel %vm2769, %v2755, 0.0
      %v2838 = vadd.f32 %v2836, %v2837
      %v2839 = vsel %vm2769, %v2756, 0.0
      %v2840 = vadd.f32 %v2838, %v2839
      %v2841 = vsel %vm2769, %v2757, 0.0
      %v2842 = vadd.f32 %v2840, %v2841
      %v2843 = vsel %vm2769, %v2758, 0.0
      %v2844 = vadd.f32 %v2842, %v2843
      %v2845 = vsel %vm2769, %v2759, 0.0
      %v2846 = vadd.f32 %v2844, %v2845
      %v2847 = vsel %vm2769, %v2760, 0.0
      %v2848 = vadd.f32 %v2846, %v2847
      %v2849 = vsel %vm2769, %v2761, 0.0
      %v2850 = vadd.f32 %v2848, %v2849
      %v2851 = vsel %vm2769, %v2762, 0.0
      %v2852 = vadd.f32 %v2850, %v2851
      %v2853 = vsel %vm2769, %v2763, 0.0
      %v2854 = vadd.f32 %v2852, %v2853
      %v2855 = vsel %vm2769, %v2764, 0.0
      %v2856 = vadd.f32 %v2854, %v2855
      %v2857 = vsel %vm2769, %v2765, 0.0
      %v2858 = vadd.f32 %v2856, %v2857
      %v2859 = vsel %vm2769, %v2766, 0.0
      %v2860 = vadd.f32 %v2858, %v2859
      %v2861 = vsel %vm2769, %v2767, 0.0
      %v2862 = vadd.f32 %v2860, %v2861
      %v2863 = vsel %vm2769, %v2768, 0.0
      %v2864 = vadd.f32 %v2862, %v2863
      %v2865 = vrot.slane %v2864, 4
      %v2866 = vadd.f32 %v2864, %v2865
      %v2867 = vrot.slane %v2866, 2
      %v2868 = vadd.f32 %v2866, %v2867
      %v2869 = vrot.slane %v2868, 1
      %v2870 = vadd.f32 %v2868, %v2869
      %v2871 = vmul.f32 %v2737, %v2737
      %v2872 = vmul.f32 %v2738, %v2738
      %v2873 = vmul.f32 %v2739, %v2739
      %v2874 = vmul.f32 %v2740, %v2740
      %v2875 = vmul.f32 %v2741, %v2741
      %v2876 = vmul.f32 %v2742, %v2742
      %v2877 = vmul.f32 %v2743, %v2743
      %v2878 = vmul.f32 %v2744, %v2744
      %v2879 = vmul.f32 %v2745, %v2745
      %v2880 = vmul.f32 %v2746, %v2746
      %v2881 = vmul.f32 %v2747, %v2747
      %v2882 = vmul.f32 %v2748, %v2748
      %v2883 = vmul.f32 %v2749, %v2749
      %v2884 = vmul.f32 %v2750, %v2750
      %v2885 = vmul.f32 %v2751, %v2751
      %v2886 = vmul.f32 %v2752, %v2752
      %v2887 = vmul.f32 %v2753, %v2753
      %v2888 = vmul.f32 %v2754, %v2754
      %v2889 = vmul.f32 %v2755, %v2755
      %v2890 = vmul.f32 %v2756, %v2756
      %v2891 = vmul.f32 %v2757, %v2757
      %v2892 = vmul.f32 %v2758, %v2758
      %v2893 = vmul.f32 %v2759, %v2759
      %v2894 = vmul.f32 %v2760, %v2760
      %v2895 = vmul.f32 %v2761, %v2761
      %v2896 = vmul.f32 %v2762, %v2762
      %v2897 = vmul.f32 %v2763, %v2763
      %v2898 = vmul.f32 %v2764, %v2764
      %v2899 = vmul.f32 %v2765, %v2765
      %v2900 = vmul.f32 %v2766, %v2766
      %v2901 = vmul.f32 %v2767, %v2767
      %v2902 = vmul.f32 %v2768, %v2768
      %v2903 = vsel %vm2769, %v2871, 0.0
      %v2904 = vsel %vm2769, %v2872, 0.0
      %v2905 = vadd.f32 %v2903, %v2904
      %v2906 = vsel %vm2769, %v2873, 0.0
      %v2907 = vadd.f32 %v2905, %v2906
      %v2908 = vsel %vm2769, %v2874, 0.0
      %v2909 = vadd.f32 %v2907, %v2908
      %v2910 = vsel %vm2769, %v2875, 0.0
      %v2911 = vadd.f32 %v2909, %v2910
      %v2912 = vsel %vm2769, %v2876, 0.0
      %v2913 = vadd.f32 %v2911, %v2912
      %v2914 = vsel %vm2769, %v2877, 0.0
      %v2915 = vadd.f32 %v2913, %v2914
      %v2916 = vsel %vm2769, %v2878, 0.0
      %v2917 = vadd.f32 %v2915, %v2916
      %v2918 = vsel %vm2769, %v2879, 0.0
      %v2919 = vadd.f32 %v2917, %v2918
      %v2920 = vsel %vm2769, %v2880, 0.0
      %v2921 = vadd.f32 %v2919, %v2920
      %v2922 = vsel %vm2769, %v2881, 0.0
      %v2923 = vadd.f32 %v2921, %v2922
      %v2924 = vsel %vm2769, %v2882, 0.0
      %v2925 = vadd.f32 %v2923, %v2924
      %v2926 = vsel %vm2769, %v2883, 0.0
      %v2927 = vadd.f32 %v2925, %v2926
      %v2928 = vsel %vm2769, %v2884, 0.0
      %v2929 = vadd.f32 %v2927, %v2928
      %v2930 = vsel %vm2769, %v2885, 0.0
      %v2931 = vadd.f32 %v2929, %v2930
      %v2932 = vsel %vm2769, %v2886, 0.0
      %v2933 = vadd.f32 %v2931, %v2932
      %v2934 = vsel %vm2769, %v2887, 0.0
      %v2935 = vadd.f32 %v2933, %v2934
      %v2936 = vsel %vm2769, %v2888, 0.0
      %v2937 = vadd.f32 %v2935, %v2936
      %v2938 = vsel %vm2769, %v2889, 0.0
      %v2939 = vadd.f32 %v2937, %v2938
      %v2940 = vsel %vm2769, %v2890, 0.0
      %v2941 = vadd.f32 %v2939, %v2940
      %v2942 = vsel %vm2769, %v2891, 0.0
      %v2943 = vadd.f32 %v2941, %v2942
      %v2944 = vsel %vm2769, %v2892, 0.0
      %v2945 = vadd.f32 %v2943, %v2944
      %v2946 = vsel %vm2769, %v2893, 0.0
      %v2947 = vadd.f32 %v2945, %v2946
      %v2948 = vsel %vm2769, %v2894, 0.0
      %v2949 = vadd.f32 %v2947, %v2948
      %v2950 = vsel %vm2769, %v2895, 0.0
      %v2951 = vadd.f32 %v2949, %v2950
      %v2952 = vsel %vm2769, %v2896, 0.0
      %v2953 = vadd.f32 %v2951, %v2952
      %v2954 = vsel %vm2769, %v2897, 0.0
      %v2955 = vadd.f32 %v2953, %v2954
      %v2956 = vsel %vm2769, %v2898, 0.0
      %v2957 = vadd.f32 %v2955, %v2956
      %v2958 = vsel %vm2769, %v2899, 0.0
      %v2959 = vadd.f32 %v2957, %v2958
      %v2960 = vsel %vm2769, %v2900, 0.0
      %v2961 = vadd.f32 %v2959, %v2960
      %v2962 = vsel %vm2769, %v2901, 0.0
      %v2963 = vadd.f32 %v2961, %v2962
      %v2964 = vsel %vm2769, %v2902, 0.0
      %v2965 = vadd.f32 %v2963, %v2964
      %v2966 = vrot.slane %v2965, 4
      %v2967 = vadd.f32 %v2965, %v2966
      %v2968 = vrot.slane %v2967, 2
      %v2969 = vadd.f32 %v2967, %v2968
      %v2970 = vrot.slane %v2969, 1
      %v2971 = vadd.f32 %v2969, %v2970
      %vm2972 = vcmask 1040384
      %v2973 = vsel %vm2972, %v2870, %v2971
      %vm2974 = vcmask 58368
      %2975 = vst.msk [vmem:[%s182] sm:$0x3] %vm2974, %v2973
      %s2976 = smul.u32 32, %s15
      %p2977 = scmp.lt.s32.totalorder %s2976, 63
      %s2978 = scalar_select %p2977, %s2976, 63
      %s2979 = smul.addr %s2978, 8
      %s2980 = scalar_lea.vmem %s2, %s2979
      %p2981 = scmp.lt.s32.totalorder %s15, 1
      %s2982 = scalar_select %p2981, %s15, 1
      %s2983 = smul.addr %s2982, 2
      %s2984 = scalar_lea.vmem %s3, %s2983
      // Predicated region
      $region29: #{conv_block_forward.2} parent=27 // pred_check
        %p2985 = pneg %p80
      $region30: #{conv_block_forward.2} parent=27 // pred_check_branch
        %2987 = sbr.rel (%p2985) target = $region32
      $region31: #{conv_block_forward.2} parent=27 // pred_region
        %s2988 = smul.u32 32, %s15
      $region32: #{conv_block_forward.2} parent=27 // pred_fallthru
        _
      // Predicated region
      $region33: #{conv_block_forward.2} parent=27 // pred_check
        %p2989 = pneg %p106
      $region34: #{conv_block_forward.2} parent=27 // pred_check_branch
        %2991 = sbr.rel (%p2989) target = $region36
      $region35: #{conv_block_forward.2} parent=27 // pred_region
        _
      $region36: #{conv_block_forward.2} parent=27 // pred_fallthru
        _
    $region28: #{conv_block_forward.2} parent=5 // pred_fallthru
      _
    %p2992 = scmp.le.s32.totalorder 2, %s10
    // Predicated region
    $region37: #{conv_block_forward.2} parent=5 // pred_check
      %p2993 = pneg %p2992
    $region38: #{conv_block_forward.2} parent=5 // pred_check_branch
      %2995 = sbr.rel (%p2993) target = $region40
    $region39: #{conv_block_forward.2} parent=5 // pred_region
      %s2996 = ssub.s32 %s10, 2
      // Predicated region
      $region41: #{conv_block_forward.2} parent=39 // pred_check
        %p2997 = pneg %p86
      $region42: #{conv_block_forward.2} parent=39 // pred_check_branch
        %2999 = sbr.rel (%p2997) target = $region44
      $region43: #{conv_block_forward.2} parent=39 // pred_region
        %s3000 = smul.u32 32, %s16
        %p3001 = scmp.lt.s32.totalorder %s3000, 63
        %s3002 = scalar_select %p3001, %s3000, 63
        %s3003 = smul.addr %s3002, 8
        %s3004 = scalar_lea.vmem %s2, %s3003
      $region44: #{conv_block_forward.2} parent=39 // pred_fallthru
        _
      // Predicated region
      $region45: #{conv_block_forward.2} parent=39 // pred_check
        %p3005 = pneg %p112
      $region46: #{conv_block_forward.2} parent=39 // pred_check_branch
        %3007 = sbr.rel (%p3005) target = $region48
      $region47: #{conv_block_forward.2} parent=39 // pred_region
        %p3008 = scmp.lt.s32.totalorder %s16, 1
        %s3009 = scalar_select %p3008, %s16, 1
        %s3010 = smul.addr %s3009, 2
        %s3011 = scalar_lea.vmem %s3, %s3010
      $region48: #{conv_block_forward.2} parent=39 // pred_fallthru
        _
    $region40: #{conv_block_forward.2} parent=5 // pred_fallthru
      _
  $region6: #{conv_block_forward.2} parent=0 // loop_footer
    %s14 = sadd.s32 1, %s10
  $region7: #{conv_block_forward.2} parent=0 // loop_footer_branch
    %9 = sbr.rel target = $region3
  $region8: #{conv_block_forward.2} parent=0 // loop_exit
    _

</llo_original>
